<compile_context>
chip_gen: v6e
topology: v6e:2x2x1
jax: 0.10.0
libtpu: 0.0.40
codegen_flags: <defaults>
</compile_context>

<pallas_src>
import jax
import jax.numpy as jnp
from jax.experimental import pallas as pl
from jax.experimental.pallas import tpu as pltpu

LIP = 0.909


def _lipswish(u):
    return LIP * u * jax.nn.sigmoid(u)


def _disc_kernel(y0_ref, dx_ref, tb_ref,
                 iw0_ref, ib0_ref, iw1_ref, ib1_ref, iw2_ref, ib2_ref,
                 fwh_ref, fw1_ref, fb1_ref, fw2p_ref, fb2p_ref,
                 rw_ref, out_ref):
    """One batch block of the full forward pass (everything fits comfortably in VMEM).

    y0_ref  : (TB, C)        ys_coeffs[:, 0, :] block
    dx_ref  : (T-1, TB, C)   raw path increments (NOT expanded by H)
    tb_ref  : (T, M)         precomputed time bias:  t * fw0[0, :] + fb0
    fwh_ref : (H, M)         h-rows of the func-MLP first layer
    fw2p_ref: (M, C*H)       last func-MLP layer, channel-major packed
    rw_ref  : (1, H)         readout weight (bias + batch mean handled in the wrapper)
    out_ref : (TB, 1)        per-row scores (no readout bias)
    """
    H = iw2_ref.shape[1]
    CH = fw2p_ref.shape[1]
    C = CH // H
    n_steps = dx_ref.shape[0]                      # T - 1 reversible-Heun steps (dt = 1)

    def mm(a, b):
        # Cast the activation to the weight dtype (bf16 if requested by the wrapper on
        # v6e/v7x); accumulate in f32 on the MXU either way.
        return jnp.dot(a.astype(b.dtype), b, preferred_element_type=jnp.float32)

    # Loop-invariant weight loads (all tiny).  Bias rows stay (1, *) and are added with
    # an implicit sublane broadcast — no materialized (TB, *) broadcasts held live.
    fwh = fwh_ref[...]
    fw1 = fw1_ref[...]
    fw2p = fw2p_ref[...]
    fb1 = fb1_ref[...]                             # (1, M)
    fb2 = fb2p_ref[...]                            # (1, CH)

    # Only the tiny (1, M) time-bias rows are pre-sliced; dX rows are read at the point
    # of use inside the unrolled loop so they are never live across the recurrence.
    tb_rows = [tb_ref[t:t + 1, :] for t in range(n_steps + 1)]

    def vector_field(t, dx_t, h):
        # func MLP([t, h]) with the t-column folded into tb_rows[t].  The last layer is
        # channel-major packed, so the PyTorch .view(B, H, C) + dX contraction becomes
        # one matmul + one tanh + C static (TB, 1) lane-broadcast multiply-adds.
        u = _lipswish(mm(h, fwh) + tb_rows[t])
        u = _lipswish(mm(u, fw1) + fb1)
        v = jnp.tanh(mm(u, fw2p) + fb2)                        # (TB, C*H)
        acc = v[:, 0:H] * dx_t[:, 0:1]
        for c in range(1, C):                                  # C is tiny & static
            acc = acc + v[:, c * H:(c + 1) * H] * dx_t[:, c:c + 1]
        return acc                                             # (TB, H)

    # ---- initial MLP (tanh=False): h0 = MLP(Y0) ----
    h = _lipswish(mm(y0_ref[...], iw0_ref[...]) + ib0_ref[...])
    h = _lipswish(mm(h, iw1_ref[...]) + ib1_ref[...])
    y = mm(h, iw2_ref[...]) + ib2_ref[...]

    # ---- reversible Heun, dt = 1, zero diffusion; fully unrolled (small static T) ----
    # torchcde's linear interpolation uses the *left* interval derivative at knot t, so
    # F(t = n+1) pairs with dX row n (and F(0) clamps to row 0).  Carries stay f32.
    z = y
    f = vector_field(0, dx_ref[0], z)
    for n in range(n_steps):
        z_new = 2.0 * y - z + f
        f_new = vector_field(n + 1, dx_ref[n], z_new)
        y = y + 0.5 * (f + f_new)
        z, f = z_new, f_new

    # Readout weight only — the scalar bias and batch mean are a wrapper-side epilogue.
    out_ref[...] = jnp.sum(y * rw_ref[...], axis=-1, keepdims=True)
    # TODO(synk): for large T (> ~16) restructure with a second "arbitrary" time grid
    # axis (dX blocked (1, TB, C) per step, Heun carries in VMEM scratch with pl.when
    # init/finalize) so VMEM stays bounded independent of T (matters on v7x's 64 MiB).


def _pick_batch_block(batch, max_block=256):
    """Largest multiple-of-8 batch block <= max_block dividing `batch`, capped at
    batch // 2 (when batch >= 16) so the "parallel" grid axis always has >= 2 blocks to
    shard across v7x's two TensorCores.  Big blocks fill MXU rows (every other matmul
    dim here is << 128 lanes) and amortize the ~0.35 us per-grid-step overhead."""
    if batch <= 8 or batch % 8 != 0:
        return batch                      # single block; full-dim block is always legal
    cap = min(max_block, batch)
    if batch >= 16:
        cap = min(cap, max((batch // 2) // 8 * 8, 8))
    tb = (cap // 8) * 8
    while batch % tb:
        tb -= 8
    return tb


def init_params(key, data_size, hidden_size, mlp_size):
    """Deterministic synthetic parameters (shapes follow the PyTorch module)."""
    C, H, M = 1 + data_size, hidden_size, mlp_size

    def linear(k, fan_in, fan_out):
        kw, kb = jax.random.split(k)
        bound = 1.0 / (fan_in ** 0.5)
        w = jax.random.uniform(kw, (fan_in, fan_out), jnp.float32, -bound, bound)
        b = jax.random.uniform(kb, (1, fan_out), jnp.float32, -bound, bound)
        return w, b

    ks = jax.random.split(key, 7)
    p = {}
    p['iw0'], p['ib0'] = linear(ks[0], C, M)            # initial MLP (tanh=False)
    p['iw1'], p['ib1'] = linear(ks[1], M, M)
    p['iw2'], p['ib2'] = linear(ks[2], M, H)
    p['fw0'], p['fb0'] = linear(ks[3], 1 + H, M)        # DiscriminatorFunc MLP (tanh=True)
    p['fw1'], p['fb1'] = linear(ks[4], M, M)
    p['fw2'], p['fb2'] = linear(ks[5], M, H * C)
    p['rw'],  p['rb']  = linear(ks[6], H, 1)            # readout
    return p


def discriminator_forward(ys_coeffs, p, *, matmul_dtype=jnp.float32, max_block=256):
    B, T, C = ys_coeffs.shape
    M = p['iw0'].shape[1]
    H = p['iw2'].shape[1]
    CH = C * H

    # Cheap one-time glue in XLA: initial value, raw time-major path increments,
    # time-bias table and channel-major repack of the last func-MLP layer.
    y0 = ys_coeffs[:, 0, :]                                              # (B, C)
    dx = jnp.transpose(ys_coeffs[:, 1:, :] - ys_coeffs[:, :-1, :],
                       (1, 0, 2))                                        # (T-1, B, C)
    tb = (jnp.arange(T, dtype=jnp.float32)[:, None] * p['fw0'][:1, :]
          + p['fb0'])                                                    # (T, M)
    fwh = p['fw0'][1:, :]                                                # (H, M)
    fw2p = p['fw2'].reshape(M, H, C).transpose(0, 2, 1).reshape(M, CH)   # channel-major
    fb2p = p['fb2'].reshape(1, H, C).transpose(0, 2, 1).reshape(1, CH)
    rw = p['rw'].reshape(1, H)

    # Only matmul operands get the (optional) low-precision cast; biases / tb / dx /
    # carries stay f32.  Use matmul_dtype=jnp.bfloat16 on v6e/v7x for MXU-native speed.
    wd = matmul_dtype
    iw0, iw1, iw2 = p['iw0'].astype(wd), p['iw1'].astype(wd), p['iw2'].astype(wd)
    fwh, fw1, fw2p = fwh.astype(wd), p['fw1'].astype(wd), fw2p.astype(wd)

    TB = _pick_batch_block(B, max_block=max_block)
    nb = B // TB

    def full(shape):
        zeros = (0,) * len(shape)
        return pl.BlockSpec(shape, lambda i: zeros)

    # Invariant weight/bias/tb blocks are tiny; they could additionally be marked
    # single-buffered (pipeline_mode=pl.Buffered(1)) for extra headroom at huge TB.
    in_specs = [
        pl.BlockSpec((TB, C), lambda i: (i, 0)),              # y0    (batch-blocked)
        pl.BlockSpec((T - 1, TB, C), lambda i: (0, i, 0)),    # dx    (batch-blocked, raw)
        full((T, M)),                                         # tb
        full((C, M)), full((1, M)),                           # iw0, ib0
        full((M, M)), full((1, M)),                           # iw1, ib1
        full((M, H)), full((1, H)),                           # iw2, ib2
        full((H, M)),                                         # fwh
        full((M, M)), full((1, M)),                           # fw1, fb1
        full((M, CH)), full((1, CH)),                         # fw2p, fb2p
        full((1, H)),                                         # rw
    ]

    # VMEM limit from the actual block sizes (x2 double-buffering) plus generous
    # headroom for unrolled intermediates; clamped to v7x's 64 MiB physical VMEM.
    block_elems = (TB * C + (T - 1) * TB * C + T * M + C * M + M + M * M + M
                   + M * H + H + H * M + M * M + M + M * CH + CH + H + TB)
    est = 2 * block_elems * 4
    vmem_limit = int(min(64 << 20, max(8 << 20, 4 * est + (2 << 20))))

    scores = pl.pallas_call(
        _disc_kernel,
        out_shape=jax.ShapeDtypeStruct((B, 1), jnp.float32),
        grid=(nb,),
        in_specs=in_specs,
        out_specs=pl.BlockSpec((TB, 1), lambda i: (i, 0)),
        compiler_params=pltpu.CompilerParams(
            dimension_semantics=("parallel",),      # batch blocks -> both TCs on v7x
            vmem_limit_bytes=vmem_limit),
    )(y0, dx, tb,
      iw0, p['ib0'], iw1, p['ib1'], iw2, p['ib2'],
      fwh, fw1, p['fb1'], fw2p, fb2p, rw)

    # Readout bias + batch mean are an affine epilogue: mean(y@rw + rb) = mean(y@rw) + rb.
    return jnp.mean(scores) + p['rb'][0, 0]


def reference_forward(ys_coeffs, p):
    """Pure-JAX reference of the same math (for a correctness check)."""
    B, T, C = ys_coeffs.shape
    H = p['iw2'].shape[1]

    def lipswish(u):
        return LIP * u * jax.nn.sigmoid(u)

    def mlp(x, w0, b0, w1, b1, w2, b2, tanh):
        h = lipswish(x @ w0 + b0)
        h = lipswish(h @ w1 + b1)
        o = h @ w2 + b2
        return jnp.tanh(o) if tanh else o

    dX = ys_coeffs[:, 1:] - ys_coeffs[:, :-1]                            # (B, T-1, C)
    y = mlp(ys_coeffs[:, 0], p['iw0'], p['ib0'], p['iw1'], p['ib1'],
            p['iw2'], p['ib2'], False)

    def F(t_int, h):
        idx = int(min(max(t_int - 1, 0), T - 2))
        th = jnp.concatenate([jnp.full((B, 1), float(t_int), jnp.float32), h], axis=1)
        vf = mlp(th, p['fw0'], p['fb0'], p['fw1'], p['fb1'],
                 p['fw2'], p['fb2'], True).reshape(B, H, C)
        return jnp.einsum('bhc,bc->bh', vf, dX[:, idx])

    z = y
    f = F(0, z)
    for n in range(T - 1):
        z1 = 2.0 * y - z + f
        f1 = F(n + 1, z1)
        y = y + 0.5 * (f + f1)
        z, f = z1, f1

    score = y @ p['rw'] + p['rb']
    return jnp.mean(score)


if __name__ == "__main__":
    # Small shapes consistent with the module; batch=16 exercises a 2-block parallel grid.
    batch, data_size, hidden_size, mlp_size, t_size = 16, 4, 16, 32, 8

    key = jax.random.PRNGKey(0)
    kp, kx = jax.random.split(key)
    params = init_params(kp, data_size, hidden_size, mlp_size)

    # ys_coeffs: channel 0 = time (SDE-GAN convention), remaining channels = data path.
    t_chan = jnp.broadcast_to(
        jnp.arange(t_size, dtype=jnp.float32)[None, :, None], (batch, t_size, 1))
    vals = 0.5 * jax.random.normal(kx, (batch, t_size, data_size), dtype=jnp.float32)
    ys_coeffs = jnp.concatenate([t_chan, vals], axis=-1)                 # (B, T, 1+D)

    score = jax.block_until_ready(discriminator_forward(ys_coeffs, params))

    with jax.default_matmul_precision('float32'):
        ref = jax.block_until_ready(reference_forward(ys_coeffs, params))

    assert jnp.isfinite(score), score
    assert abs(float(score) - float(ref)) < 1e-2 + 1e-2 * abs(float(ref)), (score, ref)
    print("KERNEL_OK")
</pallas_src>

<mosaic_0001>
module attributes {stable_mosaic.version = 11 : i64} {
  func.func @_disc_kernel(%arg0: i32, %arg1: memref<8x5xf32, #tpu.memory_space<vmem>>, %arg2: memref<7x8x5xf32, #tpu.memory_space<vmem>>, %arg3: memref<8x32xf32, #tpu.memory_space<vmem>>, %arg4: memref<5x32xf32, #tpu.memory_space<vmem>>, %arg5: memref<1x32xf32, #tpu.memory_space<vmem>>, %arg6: memref<32x32xf32, #tpu.memory_space<vmem>>, %arg7: memref<1x32xf32, #tpu.memory_space<vmem>>, %arg8: memref<32x16xf32, #tpu.memory_space<vmem>>, %arg9: memref<1x16xf32, #tpu.memory_space<vmem>>, %arg10: memref<16x32xf32, #tpu.memory_space<vmem>>, %arg11: memref<32x32xf32, #tpu.memory_space<vmem>>, %arg12: memref<1x32xf32, #tpu.memory_space<vmem>>, %arg13: memref<32x80xf32, #tpu.memory_space<vmem>>, %arg14: memref<1x80xf32, #tpu.memory_space<vmem>>, %arg15: memref<1x16xf32, #tpu.memory_space<vmem>>, %arg16: memref<8x1xf32, #tpu.memory_space<vmem>>) attributes {dimension_semantics = [#tpu.dimension_semantics<parallel>], iteration_bounds = array<i64: 2>, scalar_prefetch = 0 : i64, scratch_operands = 0 : i64, tpu.core_type = #tpu.core_type<tc>, window_params = [{transform_indices = @transform_0, window_bounds = array<i64: 8, 5>}, {transform_indices = @transform_1, window_bounds = array<i64: 7, 8, 5>}, {pipeline_mode = #tpu.pipeline_mode<synchronous>, transform_indices = @transform_2, window_bounds = array<i64: 8, 32>}, {pipeline_mode = #tpu.pipeline_mode<synchronous>, transform_indices = @transform_3, window_bounds = array<i64: 5, 32>}, {pipeline_mode = #tpu.pipeline_mode<synchronous>, transform_indices = @transform_4, window_bounds = array<i64: 1, 32>}, {pipeline_mode = #tpu.pipeline_mode<synchronous>, transform_indices = @transform_5, window_bounds = array<i64: 32, 32>}, {pipeline_mode = #tpu.pipeline_mode<synchronous>, transform_indices = @transform_6, window_bounds = array<i64: 1, 32>}, {pipeline_mode = #tpu.pipeline_mode<synchronous>, transform_indices = @transform_7, window_bounds = array<i64: 32, 16>}, {pipeline_mode = #tpu.pipeline_mode<synchronous>, transform_indices = @transform_8, window_bounds = array<i64: 1, 16>}, {pipeline_mode = #tpu.pipeline_mode<synchronous>, transform_indices = @transform_9, window_bounds = array<i64: 16, 32>}, {pipeline_mode = #tpu.pipeline_mode<synchronous>, transform_indices = @transform_10, window_bounds = array<i64: 32, 32>}, {pipeline_mode = #tpu.pipeline_mode<synchronous>, transform_indices = @transform_11, window_bounds = array<i64: 1, 32>}, {pipeline_mode = #tpu.pipeline_mode<synchronous>, transform_indices = @transform_12, window_bounds = array<i64: 32, 80>}, {pipeline_mode = #tpu.pipeline_mode<synchronous>, transform_indices = @transform_13, window_bounds = array<i64: 1, 80>}, {pipeline_mode = #tpu.pipeline_mode<synchronous>, transform_indices = @transform_14, window_bounds = array<i64: 1, 16>}, {transform_indices = @transform_15, window_bounds = array<i64: 8, 1>}]} {
    %c0 = arith.constant 0 : index
    %c0_0 = arith.constant 0 : index
    %0 = vector.load %arg10[%c0, %c0_0] : memref<16x32xf32, #tpu.memory_space<vmem>>, vector<16x32xf32>
    %c0_1 = arith.constant 0 : index
    %c0_2 = arith.constant 0 : index
    %1 = vector.load %arg11[%c0_1, %c0_2] : memref<32x32xf32, #tpu.memory_space<vmem>>, vector<32x32xf32>
    %c0_3 = arith.constant 0 : index
    %c0_4 = arith.constant 0 : index
    %2 = vector.load %arg13[%c0_3, %c0_4] : memref<32x80xf32, #tpu.memory_space<vmem>>, vector<32x80xf32>
    %c0_5 = arith.constant 0 : index
    %c0_6 = arith.constant 0 : index
    %3 = vector.load %arg12[%c0_5, %c0_6] : memref<1x32xf32, #tpu.memory_space<vmem>>, vector<1x32xf32>
    %c0_7 = arith.constant 0 : index
    %c0_8 = arith.constant 0 : index
    %4 = vector.load %arg14[%c0_7, %c0_8] : memref<1x80xf32, #tpu.memory_space<vmem>>, vector<1x80xf32>
    %c0_9 = arith.constant 0 : index
    %c0_10 = arith.constant 0 : index
    %5 = vector.load %arg3[%c0_9, %c0_10] : memref<8x32xf32, #tpu.memory_space<vmem>>, vector<1x32xf32>
    %c1 = arith.constant 1 : index
    %c0_11 = arith.constant 0 : index
    %6 = vector.load %arg3[%c1, %c0_11] : memref<8x32xf32, #tpu.memory_space<vmem>>, vector<1x32xf32>
    %c2 = arith.constant 2 : index
    %c0_12 = arith.constant 0 : index
    %7 = vector.load %arg3[%c2, %c0_12] : memref<8x32xf32, #tpu.memory_space<vmem>>, vector<1x32xf32>
    %c3 = arith.constant 3 : index
    %c0_13 = arith.constant 0 : index
    %8 = vector.load %arg3[%c3, %c0_13] : memref<8x32xf32, #tpu.memory_space<vmem>>, vector<1x32xf32>
    %c4 = arith.constant 4 : index
    %c0_14 = arith.constant 0 : index
    %9 = vector.load %arg3[%c4, %c0_14] : memref<8x32xf32, #tpu.memory_space<vmem>>, vector<1x32xf32>
    %c5 = arith.constant 5 : index
    %c0_15 = arith.constant 0 : index
    %10 = vector.load %arg3[%c5, %c0_15] : memref<8x32xf32, #tpu.memory_space<vmem>>, vector<1x32xf32>
    %c6 = arith.constant 6 : index
    %c0_16 = arith.constant 0 : index
    %11 = vector.load %arg3[%c6, %c0_16] : memref<8x32xf32, #tpu.memory_space<vmem>>, vector<1x32xf32>
    %c7 = arith.constant 7 : index
    %c0_17 = arith.constant 0 : index
    %12 = vector.load %arg3[%c7, %c0_17] : memref<8x32xf32, #tpu.memory_space<vmem>>, vector<1x32xf32>
    %c0_18 = arith.constant 0 : index
    %c0_19 = arith.constant 0 : index
    %13 = vector.load %arg1[%c0_18, %c0_19] : memref<8x5xf32, #tpu.memory_space<vmem>>, vector<8x5xf32>
    %c0_20 = arith.constant 0 : index
    %c0_21 = arith.constant 0 : index
    %14 = vector.load %arg4[%c0_20, %c0_21] : memref<5x32xf32, #tpu.memory_space<vmem>>, vector<5x32xf32>
    %cst = arith.constant dense<0.000000e+00> : vector<8x32xf32>
    %15 = tpu.matmul %13, %14, %cst {dimension_numbers = #tpu.dot_dimension_numbers<[1], [0], [0], [1], [0, 0, 1, 1], [], []>} : vector<8x5xf32>, vector<5x32xf32>, vector<8x32xf32> -> vector<8x32xf32>
    %c0_22 = arith.constant 0 : index
    %c0_23 = arith.constant 0 : index
    %16 = vector.load %arg5[%c0_22, %c0_23] : memref<1x32xf32, #tpu.memory_space<vmem>>, vector<1x32xf32>
    %17 = vector.broadcast %16 : vector<1x32xf32> to vector<8x32xf32>
    %18 = arith.addf %15, %17 : vector<8x32xf32>
    %cst_24 = arith.constant 0.908999979 : f32
    %19 = vector.broadcast %cst_24 : f32 to vector<8x32xf32>
    %20 = arith.mulf %19, %18 : vector<8x32xf32>
    %21 = arith.negf %18 : vector<8x32xf32>
    %22 = math.exp %21 : vector<8x32xf32>
    %cst_25 = arith.constant 1.000000e+00 : f32
    %23 = vector.broadcast %cst_25 : f32 to vector<8x32xf32>
    %24 = arith.addf %23, %22 : vector<8x32xf32>
    %25 = arith.divf %23, %24 : vector<8x32xf32>
    %26 = arith.mulf %20, %25 : vector<8x32xf32>
    %c0_26 = arith.constant 0 : index
    %c0_27 = arith.constant 0 : index
    %27 = vector.load %arg6[%c0_26, %c0_27] : memref<32x32xf32, #tpu.memory_space<vmem>>, vector<32x32xf32>
    %cst_28 = arith.constant dense<0.000000e+00> : vector<8x32xf32>
    %28 = tpu.matmul %26, %27, %cst_28 {dimension_numbers = #tpu.dot_dimension_numbers<[1], [0], [0], [1], [0, 0, 1, 1], [], []>} : vector<8x32xf32>, vector<32x32xf32>, vector<8x32xf32> -> vector<8x32xf32>
    %c0_29 = arith.constant 0 : index
    %c0_30 = arith.constant 0 : index
    %29 = vector.load %arg7[%c0_29, %c0_30] : memref<1x32xf32, #tpu.memory_space<vmem>>, vector<1x32xf32>
    %30 = vector.broadcast %29 : vector<1x32xf32> to vector<8x32xf32>
    %31 = arith.addf %28, %30 : vector<8x32xf32>
    %cst_31 = arith.constant 0.908999979 : f32
    %32 = vector.broadcast %cst_31 : f32 to vector<8x32xf32>
    %33 = arith.mulf %32, %31 : vector<8x32xf32>
    %34 = arith.negf %31 : vector<8x32xf32>
    %35 = math.exp %34 : vector<8x32xf32>
    %cst_32 = arith.constant 1.000000e+00 : f32
    %36 = vector.broadcast %cst_32 : f32 to vector<8x32xf32>
    %37 = arith.addf %36, %35 : vector<8x32xf32>
    %38 = arith.divf %36, %37 : vector<8x32xf32>
    %39 = arith.mulf %33, %38 : vector<8x32xf32>
    %c0_33 = arith.constant 0 : index
    %c0_34 = arith.constant 0 : index
    %40 = vector.load %arg8[%c0_33, %c0_34] : memref<32x16xf32, #tpu.memory_space<vmem>>, vector<32x16xf32>
    %cst_35 = arith.constant dense<0.000000e+00> : vector<8x16xf32>
    %41 = tpu.matmul %39, %40, %cst_35 {dimension_numbers = #tpu.dot_dimension_numbers<[1], [0], [0], [1], [0, 0, 1, 1], [], []>} : vector<8x32xf32>, vector<32x16xf32>, vector<8x16xf32> -> vector<8x16xf32>
    %c0_36 = arith.constant 0 : index
    %c0_37 = arith.constant 0 : index
    %42 = vector.load %arg9[%c0_36, %c0_37] : memref<1x16xf32, #tpu.memory_space<vmem>>, vector<1x16xf32>
    %43 = vector.broadcast %42 : vector<1x16xf32> to vector<8x16xf32>
    %44 = arith.addf %41, %43 : vector<8x16xf32>
    %c0_38 = arith.constant 0 : index
    %c0_39 = arith.constant 0 : index
    %c0_40 = arith.constant 0 : index
    %45 = vector.load %arg2[%c0_38, %c0_39, %c0_40] : memref<7x8x5xf32, #tpu.memory_space<vmem>>, vector<1x8x5xf32>
    %46 = vector.shape_cast %45 : vector<1x8x5xf32> to vector<8x5xf32>
    %cst_41 = arith.constant dense<0.000000e+00> : vector<8x32xf32>
    %47 = tpu.matmul %44, %0, %cst_41 {dimension_numbers = #tpu.dot_dimension_numbers<[1], [0], [0], [1], [0, 0, 1, 1], [], []>} : vector<8x16xf32>, vector<16x32xf32>, vector<8x32xf32> -> vector<8x32xf32>
    %48 = vector.broadcast %5 : vector<1x32xf32> to vector<8x32xf32>
    %49 = arith.addf %47, %48 : vector<8x32xf32>
    %cst_42 = arith.constant 0.908999979 : f32
    %50 = vector.broadcast %cst_42 : f32 to vector<8x32xf32>
    %51 = arith.mulf %50, %49 : vector<8x32xf32>
    %52 = arith.negf %49 : vector<8x32xf32>
    %53 = math.exp %52 : vector<8x32xf32>
    %cst_43 = arith.constant 1.000000e+00 : f32
    %54 = vector.broadcast %cst_43 : f32 to vector<8x32xf32>
    %55 = arith.addf %54, %53 : vector<8x32xf32>
    %56 = arith.divf %54, %55 : vector<8x32xf32>
    %57 = arith.mulf %51, %56 : vector<8x32xf32>
    %cst_44 = arith.constant dense<0.000000e+00> : vector<8x32xf32>
    %58 = tpu.matmul %57, %1, %cst_44 {dimension_numbers = #tpu.dot_dimension_numbers<[1], [0], [0], [1], [0, 0, 1, 1], [], []>} : vector<8x32xf32>, vector<32x32xf32>, vector<8x32xf32> -> vector<8x32xf32>
    %59 = vector.broadcast %3 : vector<1x32xf32> to vector<8x32xf32>
    %60 = arith.addf %58, %59 : vector<8x32xf32>
    %cst_45 = arith.constant 0.908999979 : f32
    %61 = vector.broadcast %cst_45 : f32 to vector<8x32xf32>
    %62 = arith.mulf %61, %60 : vector<8x32xf32>
    %63 = arith.negf %60 : vector<8x32xf32>
    %64 = math.exp %63 : vector<8x32xf32>
    %cst_46 = arith.constant 1.000000e+00 : f32
    %65 = vector.broadcast %cst_46 : f32 to vector<8x32xf32>
    %66 = arith.addf %65, %64 : vector<8x32xf32>
    %67 = arith.divf %65, %66 : vector<8x32xf32>
    %68 = arith.mulf %62, %67 : vector<8x32xf32>
    %cst_47 = arith.constant dense<0.000000e+00> : vector<8x80xf32>
    %69 = tpu.matmul %68, %2, %cst_47 {dimension_numbers = #tpu.dot_dimension_numbers<[1], [0], [0], [1], [0, 0, 1, 1], [], []>} : vector<8x32xf32>, vector<32x80xf32>, vector<8x80xf32> -> vector<8x80xf32>
    %70 = vector.broadcast %4 : vector<1x80xf32> to vector<8x80xf32>
    %71 = arith.addf %69, %70 : vector<8x80xf32>
    %72 = math.tanh %71 : vector<8x80xf32>
    %73 = vector.extract_strided_slice %72 {offsets = [0, 0], sizes = [8, 16], strides = [1, 1]} : vector<8x80xf32> to vector<8x16xf32>
    %74 = vector.extract_strided_slice %46 {offsets = [0, 0], sizes = [8, 1], strides = [1, 1]} : vector<8x5xf32> to vector<8x1xf32>
    %75 = vector.broadcast %74 : vector<8x1xf32> to vector<8x16xf32>
    %76 = arith.mulf %73, %75 : vector<8x16xf32>
    %77 = vector.extract_strided_slice %72 {offsets = [0, 16], sizes = [8, 16], strides = [1, 1]} : vector<8x80xf32> to vector<8x16xf32>
    %78 = vector.extract_strided_slice %46 {offsets = [0, 1], sizes = [8, 1], strides = [1, 1]} : vector<8x5xf32> to vector<8x1xf32>
    %79 = vector.broadcast %78 : vector<8x1xf32> to vector<8x16xf32>
    %80 = arith.mulf %77, %79 : vector<8x16xf32>
    %81 = arith.addf %76, %80 : vector<8x16xf32>
    %82 = vector.extract_strided_slice %72 {offsets = [0, 32], sizes = [8, 16], strides = [1, 1]} : vector<8x80xf32> to vector<8x16xf32>
    %83 = vector.extract_strided_slice %46 {offsets = [0, 2], sizes = [8, 1], strides = [1, 1]} : vector<8x5xf32> to vector<8x1xf32>
    %84 = vector.broadcast %83 : vector<8x1xf32> to vector<8x16xf32>
    %85 = arith.mulf %82, %84 : vector<8x16xf32>
    %86 = arith.addf %81, %85 : vector<8x16xf32>
    %87 = vector.extract_strided_slice %72 {offsets = [0, 48], sizes = [8, 16], strides = [1, 1]} : vector<8x80xf32> to vector<8x16xf32>
    %88 = vector.extract_strided_slice %46 {offsets = [0, 3], sizes = [8, 1], strides = [1, 1]} : vector<8x5xf32> to vector<8x1xf32>
    %89 = vector.broadcast %88 : vector<8x1xf32> to vector<8x16xf32>
    %90 = arith.mulf %87, %89 : vector<8x16xf32>
    %91 = arith.addf %86, %90 : vector<8x16xf32>
    %92 = vector.extract_strided_slice %72 {offsets = [0, 64], sizes = [8, 16], strides = [1, 1]} : vector<8x80xf32> to vector<8x16xf32>
    %93 = vector.extract_strided_slice %46 {offsets = [0, 4], sizes = [8, 1], strides = [1, 1]} : vector<8x5xf32> to vector<8x1xf32>
    %94 = vector.broadcast %93 : vector<8x1xf32> to vector<8x16xf32>
    %95 = arith.mulf %92, %94 : vector<8x16xf32>
    %96 = arith.addf %91, %95 : vector<8x16xf32>
    %cst_48 = arith.constant 2.000000e+00 : f32
    %97 = vector.broadcast %cst_48 : f32 to vector<8x16xf32>
    %98 = arith.mulf %97, %44 : vector<8x16xf32>
    %99 = arith.subf %98, %44 : vector<8x16xf32>
    %100 = arith.addf %99, %96 : vector<8x16xf32>
    %c0_49 = arith.constant 0 : index
    %c0_50 = arith.constant 0 : index
    %c0_51 = arith.constant 0 : index
    %101 = vector.load %arg2[%c0_49, %c0_50, %c0_51] : memref<7x8x5xf32, #tpu.memory_space<vmem>>, vector<1x8x5xf32>
    %102 = vector.shape_cast %101 : vector<1x8x5xf32> to vector<8x5xf32>
    %cst_52 = arith.constant dense<0.000000e+00> : vector<8x32xf32>
    %103 = tpu.matmul %100, %0, %cst_52 {dimension_numbers = #tpu.dot_dimension_numbers<[1], [0], [0], [1], [0, 0, 1, 1], [], []>} : vector<8x16xf32>, vector<16x32xf32>, vector<8x32xf32> -> vector<8x32xf32>
    %104 = vector.broadcast %6 : vector<1x32xf32> to vector<8x32xf32>
    %105 = arith.addf %103, %104 : vector<8x32xf32>
    %cst_53 = arith.constant 0.908999979 : f32
    %106 = vector.broadcast %cst_53 : f32 to vector<8x32xf32>
    %107 = arith.mulf %106, %105 : vector<8x32xf32>
    %108 = arith.negf %105 : vector<8x32xf32>
    %109 = math.exp %108 : vector<8x32xf32>
    %cst_54 = arith.constant 1.000000e+00 : f32
    %110 = vector.broadcast %cst_54 : f32 to vector<8x32xf32>
    %111 = arith.addf %110, %109 : vector<8x32xf32>
    %112 = arith.divf %110, %111 : vector<8x32xf32>
    %113 = arith.mulf %107, %112 : vector<8x32xf32>
    %cst_55 = arith.constant dense<0.000000e+00> : vector<8x32xf32>
    %114 = tpu.matmul %113, %1, %cst_55 {dimension_numbers = #tpu.dot_dimension_numbers<[1], [0], [0], [1], [0, 0, 1, 1], [], []>} : vector<8x32xf32>, vector<32x32xf32>, vector<8x32xf32> -> vector<8x32xf32>
    %115 = vector.broadcast %3 : vector<1x32xf32> to vector<8x32xf32>
    %116 = arith.addf %114, %115 : vector<8x32xf32>
    %cst_56 = arith.constant 0.908999979 : f32
    %117 = vector.broadcast %cst_56 : f32 to vector<8x32xf32>
    %118 = arith.mulf %117, %116 : vector<8x32xf32>
    %119 = arith.negf %116 : vector<8x32xf32>
    %120 = math.exp %119 : vector<8x32xf32>
    %cst_57 = arith.constant 1.000000e+00 : f32
    %121 = vector.broadcast %cst_57 : f32 to vector<8x32xf32>
    %122 = arith.addf %121, %120 : vector<8x32xf32>
    %123 = arith.divf %121, %122 : vector<8x32xf32>
    %124 = arith.mulf %118, %123 : vector<8x32xf32>
    %cst_58 = arith.constant dense<0.000000e+00> : vector<8x80xf32>
    %125 = tpu.matmul %124, %2, %cst_58 {dimension_numbers = #tpu.dot_dimension_numbers<[1], [0], [0], [1], [0, 0, 1, 1], [], []>} : vector<8x32xf32>, vector<32x80xf32>, vector<8x80xf32> -> vector<8x80xf32>
    %126 = vector.broadcast %4 : vector<1x80xf32> to vector<8x80xf32>
    %127 = arith.addf %125, %126 : vector<8x80xf32>
    %128 = math.tanh %127 : vector<8x80xf32>
    %129 = vector.extract_strided_slice %128 {offsets = [0, 0], sizes = [8, 16], strides = [1, 1]} : vector<8x80xf32> to vector<8x16xf32>
    %130 = vector.extract_strided_slice %102 {offsets = [0, 0], sizes = [8, 1], strides = [1, 1]} : vector<8x5xf32> to vector<8x1xf32>
    %131 = vector.broadcast %130 : vector<8x1xf32> to vector<8x16xf32>
    %132 = arith.mulf %129, %131 : vector<8x16xf32>
    %133 = vector.extract_strided_slice %128 {offsets = [0, 16], sizes = [8, 16], strides = [1, 1]} : vector<8x80xf32> to vector<8x16xf32>
    %134 = vector.extract_strided_slice %102 {offsets = [0, 1], sizes = [8, 1], strides = [1, 1]} : vector<8x5xf32> to vector<8x1xf32>
    %135 = vector.broadcast %134 : vector<8x1xf32> to vector<8x16xf32>
    %136 = arith.mulf %133, %135 : vector<8x16xf32>
    %137 = arith.addf %132, %136 : vector<8x16xf32>
    %138 = vector.extract_strided_slice %128 {offsets = [0, 32], sizes = [8, 16], strides = [1, 1]} : vector<8x80xf32> to vector<8x16xf32>
    %139 = vector.extract_strided_slice %102 {offsets = [0, 2], sizes = [8, 1], strides = [1, 1]} : vector<8x5xf32> to vector<8x1xf32>
    %140 = vector.broadcast %139 : vector<8x1xf32> to vector<8x16xf32>
    %141 = arith.mulf %138, %140 : vector<8x16xf32>
    %142 = arith.addf %137, %141 : vector<8x16xf32>
    %143 = vector.extract_strided_slice %128 {offsets = [0, 48], sizes = [8, 16], strides = [1, 1]} : vector<8x80xf32> to vector<8x16xf32>
    %144 = vector.extract_strided_slice %102 {offsets = [0, 3], sizes = [8, 1], strides = [1, 1]} : vector<8x5xf32> to vector<8x1xf32>
    %145 = vector.broadcast %144 : vector<8x1xf32> to vector<8x16xf32>
    %146 = arith.mulf %143, %145 : vector<8x16xf32>
    %147 = arith.addf %142, %146 : vector<8x16xf32>
    %148 = vector.extract_strided_slice %128 {offsets = [0, 64], sizes = [8, 16], strides = [1, 1]} : vector<8x80xf32> to vector<8x16xf32>
    %149 = vector.extract_strided_slice %102 {offsets = [0, 4], sizes = [8, 1], strides = [1, 1]} : vector<8x5xf32> to vector<8x1xf32>
    %150 = vector.broadcast %149 : vector<8x1xf32> to vector<8x16xf32>
    %151 = arith.mulf %148, %150 : vector<8x16xf32>
    %152 = arith.addf %147, %151 : vector<8x16xf32>
    %153 = arith.addf %96, %152 : vector<8x16xf32>
    %cst_59 = arith.constant 5.000000e-01 : f32
    %154 = vector.broadcast %cst_59 : f32 to vector<8x16xf32>
    %155 = arith.mulf %154, %153 : vector<8x16xf32>
    %156 = arith.addf %44, %155 : vector<8x16xf32>
    %cst_60 = arith.constant 2.000000e+00 : f32
    %157 = vector.broadcast %cst_60 : f32 to vector<8x16xf32>
    %158 = arith.mulf %157, %156 : vector<8x16xf32>
    %159 = arith.subf %158, %100 : vector<8x16xf32>
    %160 = arith.addf %159, %152 : vector<8x16xf32>
    %c1_61 = arith.constant 1 : index
    %c0_62 = arith.constant 0 : index
    %c0_63 = arith.constant 0 : index
    %161 = vector.load %arg2[%c1_61, %c0_62, %c0_63] : memref<7x8x5xf32, #tpu.memory_space<vmem>>, vector<1x8x5xf32>
    %162 = vector.shape_cast %161 : vector<1x8x5xf32> to vector<8x5xf32>
    %cst_64 = arith.constant dense<0.000000e+00> : vector<8x32xf32>
    %163 = tpu.matmul %160, %0, %cst_64 {dimension_numbers = #tpu.dot_dimension_numbers<[1], [0], [0], [1], [0, 0, 1, 1], [], []>} : vector<8x16xf32>, vector<16x32xf32>, vector<8x32xf32> -> vector<8x32xf32>
    %164 = vector.broadcast %7 : vector<1x32xf32> to vector<8x32xf32>
    %165 = arith.addf %163, %164 : vector<8x32xf32>
    %cst_65 = arith.constant 0.908999979 : f32
    %166 = vector.broadcast %cst_65 : f32 to vector<8x32xf32>
    %167 = arith.mulf %166, %165 : vector<8x32xf32>
    %168 = arith.negf %165 : vector<8x32xf32>
    %169 = math.exp %168 : vector<8x32xf32>
    %cst_66 = arith.constant 1.000000e+00 : f32
    %170 = vector.broadcast %cst_66 : f32 to vector<8x32xf32>
    %171 = arith.addf %170, %169 : vector<8x32xf32>
    %172 = arith.divf %170, %171 : vector<8x32xf32>
    %173 = arith.mulf %167, %172 : vector<8x32xf32>
    %cst_67 = arith.constant dense<0.000000e+00> : vector<8x32xf32>
    %174 = tpu.matmul %173, %1, %cst_67 {dimension_numbers = #tpu.dot_dimension_numbers<[1], [0], [0], [1], [0, 0, 1, 1], [], []>} : vector<8x32xf32>, vector<32x32xf32>, vector<8x32xf32> -> vector<8x32xf32>
    %175 = vector.broadcast %3 : vector<1x32xf32> to vector<8x32xf32>
    %176 = arith.addf %174, %175 : vector<8x32xf32>
    %cst_68 = arith.constant 0.908999979 : f32
    %177 = vector.broadcast %cst_68 : f32 to vector<8x32xf32>
    %178 = arith.mulf %177, %176 : vector<8x32xf32>
    %179 = arith.negf %176 : vector<8x32xf32>
    %180 = math.exp %179 : vector<8x32xf32>
    %cst_69 = arith.constant 1.000000e+00 : f32
    %181 = vector.broadcast %cst_69 : f32 to vector<8x32xf32>
    %182 = arith.addf %181, %180 : vector<8x32xf32>
    %183 = arith.divf %181, %182 : vector<8x32xf32>
    %184 = arith.mulf %178, %183 : vector<8x32xf32>
    %cst_70 = arith.constant dense<0.000000e+00> : vector<8x80xf32>
    %185 = tpu.matmul %184, %2, %cst_70 {dimension_numbers = #tpu.dot_dimension_numbers<[1], [0], [0], [1], [0, 0, 1, 1], [], []>} : vector<8x32xf32>, vector<32x80xf32>, vector<8x80xf32> -> vector<8x80xf32>
    %186 = vector.broadcast %4 : vector<1x80xf32> to vector<8x80xf32>
    %187 = arith.addf %185, %186 : vector<8x80xf32>
    %188 = math.tanh %187 : vector<8x80xf32>
    %189 = vector.extract_strided_slice %188 {offsets = [0, 0], sizes = [8, 16], strides = [1, 1]} : vector<8x80xf32> to vector<8x16xf32>
    %190 = vector.extract_strided_slice %162 {offsets = [0, 0], sizes = [8, 1], strides = [1, 1]} : vector<8x5xf32> to vector<8x1xf32>
    %191 = vector.broadcast %190 : vector<8x1xf32> to vector<8x16xf32>
    %192 = arith.mulf %189, %191 : vector<8x16xf32>
    %193 = vector.extract_strided_slice %188 {offsets = [0, 16], sizes = [8, 16], strides = [1, 1]} : vector<8x80xf32> to vector<8x16xf32>
    %194 = vector.extract_strided_slice %162 {offsets = [0, 1], sizes = [8, 1], strides = [1, 1]} : vector<8x5xf32> to vector<8x1xf32>
    %195 = vector.broadcast %194 : vector<8x1xf32> to vector<8x16xf32>
    %196 = arith.mulf %193, %195 : vector<8x16xf32>
    %197 = arith.addf %192, %196 : vector<8x16xf32>
    %198 = vector.extract_strided_slice %188 {offsets = [0, 32], sizes = [8, 16], strides = [1, 1]} : vector<8x80xf32> to vector<8x16xf32>
    %199 = vector.extract_strided_slice %162 {offsets = [0, 2], sizes = [8, 1], strides = [1, 1]} : vector<8x5xf32> to vector<8x1xf32>
    %200 = vector.broadcast %199 : vector<8x1xf32> to vector<8x16xf32>
    %201 = arith.mulf %198, %200 : vector<8x16xf32>
    %202 = arith.addf %197, %201 : vector<8x16xf32>
    %203 = vector.extract_strided_slice %188 {offsets = [0, 48], sizes = [8, 16], strides = [1, 1]} : vector<8x80xf32> to vector<8x16xf32>
    %204 = vector.extract_strided_slice %162 {offsets = [0, 3], sizes = [8, 1], strides = [1, 1]} : vector<8x5xf32> to vector<8x1xf32>
    %205 = vector.broadcast %204 : vector<8x1xf32> to vector<8x16xf32>
    %206 = arith.mulf %203, %205 : vector<8x16xf32>
    %207 = arith.addf %202, %206 : vector<8x16xf32>
    %208 = vector.extract_strided_slice %188 {offsets = [0, 64], sizes = [8, 16], strides = [1, 1]} : vector<8x80xf32> to vector<8x16xf32>
    %209 = vector.extract_strided_slice %162 {offsets = [0, 4], sizes = [8, 1], strides = [1, 1]} : vector<8x5xf32> to vector<8x1xf32>
    %210 = vector.broadcast %209 : vector<8x1xf32> to vector<8x16xf32>
    %211 = arith.mulf %208, %210 : vector<8x16xf32>
    %212 = arith.addf %207, %211 : vector<8x16xf32>
    %213 = arith.addf %152, %212 : vector<8x16xf32>
    %cst_71 = arith.constant 5.000000e-01 : f32
    %214 = vector.broadcast %cst_71 : f32 to vector<8x16xf32>
    %215 = arith.mulf %214, %213 : vector<8x16xf32>
    %216 = arith.addf %156, %215 : vector<8x16xf32>
    %cst_72 = arith.constant 2.000000e+00 : f32
    %217 = vector.broadcast %cst_72 : f32 to vector<8x16xf32>
    %218 = arith.mulf %217, %216 : vector<8x16xf32>
    %219 = arith.subf %218, %160 : vector<8x16xf32>
    %220 = arith.addf %219, %212 : vector<8x16xf32>
    %c2_73 = arith.constant 2 : index
    %c0_74 = arith.constant 0 : index
    %c0_75 = arith.constant 0 : index
    %221 = vector.load %arg2[%c2_73, %c0_74, %c0_75] : memref<7x8x5xf32, #tpu.memory_space<vmem>>, vector<1x8x5xf32>
    %222 = vector.shape_cast %221 : vector<1x8x5xf32> to vector<8x5xf32>
    %cst_76 = arith.constant dense<0.000000e+00> : vector<8x32xf32>
    %223 = tpu.matmul %220, %0, %cst_76 {dimension_numbers = #tpu.dot_dimension_numbers<[1], [0], [0], [1], [0, 0, 1, 1], [], []>} : vector<8x16xf32>, vector<16x32xf32>, vector<8x32xf32> -> vector<8x32xf32>
    %224 = vector.broadcast %8 : vector<1x32xf32> to vector<8x32xf32>
    %225 = arith.addf %223, %224 : vector<8x32xf32>
    %cst_77 = arith.constant 0.908999979 : f32
    %226 = vector.broadcast %cst_77 : f32 to vector<8x32xf32>
    %227 = arith.mulf %226, %225 : vector<8x32xf32>
    %228 = arith.negf %225 : vector<8x32xf32>
    %229 = math.exp %228 : vector<8x32xf32>
    %cst_78 = arith.constant 1.000000e+00 : f32
    %230 = vector.broadcast %cst_78 : f32 to vector<8x32xf32>
    %231 = arith.addf %230, %229 : vector<8x32xf32>
    %232 = arith.divf %230, %231 : vector<8x32xf32>
    %233 = arith.mulf %227, %232 : vector<8x32xf32>
    %cst_79 = arith.constant dense<0.000000e+00> : vector<8x32xf32>
    %234 = tpu.matmul %233, %1, %cst_79 {dimension_numbers = #tpu.dot_dimension_numbers<[1], [0], [0], [1], [0, 0, 1, 1], [], []>} : vector<8x32xf32>, vector<32x32xf32>, vector<8x32xf32> -> vector<8x32xf32>
    %235 = vector.broadcast %3 : vector<1x32xf32> to vector<8x32xf32>
    %236 = arith.addf %234, %235 : vector<8x32xf32>
    %cst_80 = arith.constant 0.908999979 : f32
    %237 = vector.broadcast %cst_80 : f32 to vector<8x32xf32>
    %238 = arith.mulf %237, %236 : vector<8x32xf32>
    %239 = arith.negf %236 : vector<8x32xf32>
    %240 = math.exp %239 : vector<8x32xf32>
    %cst_81 = arith.constant 1.000000e+00 : f32
    %241 = vector.broadcast %cst_81 : f32 to vector<8x32xf32>
    %242 = arith.addf %241, %240 : vector<8x32xf32>
    %243 = arith.divf %241, %242 : vector<8x32xf32>
    %244 = arith.mulf %238, %243 : vector<8x32xf32>
    %cst_82 = arith.constant dense<0.000000e+00> : vector<8x80xf32>
    %245 = tpu.matmul %244, %2, %cst_82 {dimension_numbers = #tpu.dot_dimension_numbers<[1], [0], [0], [1], [0, 0, 1, 1], [], []>} : vector<8x32xf32>, vector<32x80xf32>, vector<8x80xf32> -> vector<8x80xf32>
    %246 = vector.broadcast %4 : vector<1x80xf32> to vector<8x80xf32>
    %247 = arith.addf %245, %246 : vector<8x80xf32>
    %248 = math.tanh %247 : vector<8x80xf32>
    %249 = vector.extract_strided_slice %248 {offsets = [0, 0], sizes = [8, 16], strides = [1, 1]} : vector<8x80xf32> to vector<8x16xf32>
    %250 = vector.extract_strided_slice %222 {offsets = [0, 0], sizes = [8, 1], strides = [1, 1]} : vector<8x5xf32> to vector<8x1xf32>
    %251 = vector.broadcast %250 : vector<8x1xf32> to vector<8x16xf32>
    %252 = arith.mulf %249, %251 : vector<8x16xf32>
    %253 = vector.extract_strided_slice %248 {offsets = [0, 16], sizes = [8, 16], strides = [1, 1]} : vector<8x80xf32> to vector<8x16xf32>
    %254 = vector.extract_strided_slice %222 {offsets = [0, 1], sizes = [8, 1], strides = [1, 1]} : vector<8x5xf32> to vector<8x1xf32>
    %255 = vector.broadcast %254 : vector<8x1xf32> to vector<8x16xf32>
    %256 = arith.mulf %253, %255 : vector<8x16xf32>
    %257 = arith.addf %252, %256 : vector<8x16xf32>
    %258 = vector.extract_strided_slice %248 {offsets = [0, 32], sizes = [8, 16], strides = [1, 1]} : vector<8x80xf32> to vector<8x16xf32>
    %259 = vector.extract_strided_slice %222 {offsets = [0, 2], sizes = [8, 1], strides = [1, 1]} : vector<8x5xf32> to vector<8x1xf32>
    %260 = vector.broadcast %259 : vector<8x1xf32> to vector<8x16xf32>
    %261 = arith.mulf %258, %260 : vector<8x16xf32>
    %262 = arith.addf %257, %261 : vector<8x16xf32>
    %263 = vector.extract_strided_slice %248 {offsets = [0, 48], sizes = [8, 16], strides = [1, 1]} : vector<8x80xf32> to vector<8x16xf32>
    %264 = vector.extract_strided_slice %222 {offsets = [0, 3], sizes = [8, 1], strides = [1, 1]} : vector<8x5xf32> to vector<8x1xf32>
    %265 = vector.broadcast %264 : vector<8x1xf32> to vector<8x16xf32>
    %266 = arith.mulf %263, %265 : vector<8x16xf32>
    %267 = arith.addf %262, %266 : vector<8x16xf32>
    %268 = vector.extract_strided_slice %248 {offsets = [0, 64], sizes = [8, 16], strides = [1, 1]} : vector<8x80xf32> to vector<8x16xf32>
    %269 = vector.extract_strided_slice %222 {offsets = [0, 4], sizes = [8, 1], strides = [1, 1]} : vector<8x5xf32> to vector<8x1xf32>
    %270 = vector.broadcast %269 : vector<8x1xf32> to vector<8x16xf32>
    %271 = arith.mulf %268, %270 : vector<8x16xf32>
    %272 = arith.addf %267, %271 : vector<8x16xf32>
    %273 = arith.addf %212, %272 : vector<8x16xf32>
    %cst_83 = arith.constant 5.000000e-01 : f32
    %274 = vector.broadcast %cst_83 : f32 to vector<8x16xf32>
    %275 = arith.mulf %274, %273 : vector<8x16xf32>
    %276 = arith.addf %216, %275 : vector<8x16xf32>
    %cst_84 = arith.constant 2.000000e+00 : f32
    %277 = vector.broadcast %cst_84 : f32 to vector<8x16xf32>
    %278 = arith.mulf %277, %276 : vector<8x16xf32>
    %279 = arith.subf %278, %220 : vector<8x16xf32>
    %280 = arith.addf %279, %272 : vector<8x16xf32>
    %c3_85 = arith.constant 3 : index
    %c0_86 = arith.constant 0 : index
    %c0_87 = arith.constant 0 : index
    %281 = vector.load %arg2[%c3_85, %c0_86, %c0_87] : memref<7x8x5xf32, #tpu.memory_space<vmem>>, vector<1x8x5xf32>
    %282 = vector.shape_cast %281 : vector<1x8x5xf32> to vector<8x5xf32>
    %cst_88 = arith.constant dense<0.000000e+00> : vector<8x32xf32>
    %283 = tpu.matmul %280, %0, %cst_88 {dimension_numbers = #tpu.dot_dimension_numbers<[1], [0], [0], [1], [0, 0, 1, 1], [], []>} : vector<8x16xf32>, vector<16x32xf32>, vector<8x32xf32> -> vector<8x32xf32>
    %284 = vector.broadcast %9 : vector<1x32xf32> to vector<8x32xf32>
    %285 = arith.addf %283, %284 : vector<8x32xf32>
    %cst_89 = arith.constant 0.908999979 : f32
    %286 = vector.broadcast %cst_89 : f32 to vector<8x32xf32>
    %287 = arith.mulf %286, %285 : vector<8x32xf32>
    %288 = arith.negf %285 : vector<8x32xf32>
    %289 = math.exp %288 : vector<8x32xf32>
    %cst_90 = arith.constant 1.000000e+00 : f32
    %290 = vector.broadcast %cst_90 : f32 to vector<8x32xf32>
    %291 = arith.addf %290, %289 : vector<8x32xf32>
    %292 = arith.divf %290, %291 : vector<8x32xf32>
    %293 = arith.mulf %287, %292 : vector<8x32xf32>
    %cst_91 = arith.constant dense<0.000000e+00> : vector<8x32xf32>
    %294 = tpu.matmul %293, %1, %cst_91 {dimension_numbers = #tpu.dot_dimension_numbers<[1], [0], [0], [1], [0, 0, 1, 1], [], []>} : vector<8x32xf32>, vector<32x32xf32>, vector<8x32xf32> -> vector<8x32xf32>
    %295 = vector.broadcast %3 : vector<1x32xf32> to vector<8x32xf32>
    %296 = arith.addf %294, %295 : vector<8x32xf32>
    %cst_92 = arith.constant 0.908999979 : f32
    %297 = vector.broadcast %cst_92 : f32 to vector<8x32xf32>
    %298 = arith.mulf %297, %296 : vector<8x32xf32>
    %299 = arith.negf %296 : vector<8x32xf32>
    %300 = math.exp %299 : vector<8x32xf32>
    %cst_93 = arith.constant 1.000000e+00 : f32
    %301 = vector.broadcast %cst_93 : f32 to vector<8x32xf32>
    %302 = arith.addf %301, %300 : vector<8x32xf32>
    %303 = arith.divf %301, %302 : vector<8x32xf32>
    %304 = arith.mulf %298, %303 : vector<8x32xf32>
    %cst_94 = arith.constant dense<0.000000e+00> : vector<8x80xf32>
    %305 = tpu.matmul %304, %2, %cst_94 {dimension_numbers = #tpu.dot_dimension_numbers<[1], [0], [0], [1], [0, 0, 1, 1], [], []>} : vector<8x32xf32>, vector<32x80xf32>, vector<8x80xf32> -> vector<8x80xf32>
    %306 = vector.broadcast %4 : vector<1x80xf32> to vector<8x80xf32>
    %307 = arith.addf %305, %306 : vector<8x80xf32>
    %308 = math.tanh %307 : vector<8x80xf32>
    %309 = vector.extract_strided_slice %308 {offsets = [0, 0], sizes = [8, 16], strides = [1, 1]} : vector<8x80xf32> to vector<8x16xf32>
    %310 = vector.extract_strided_slice %282 {offsets = [0, 0], sizes = [8, 1], strides = [1, 1]} : vector<8x5xf32> to vector<8x1xf32>
    %311 = vector.broadcast %310 : vector<8x1xf32> to vector<8x16xf32>
    %312 = arith.mulf %309, %311 : vector<8x16xf32>
    %313 = vector.extract_strided_slice %308 {offsets = [0, 16], sizes = [8, 16], strides = [1, 1]} : vector<8x80xf32> to vector<8x16xf32>
    %314 = vector.extract_strided_slice %282 {offsets = [0, 1], sizes = [8, 1], strides = [1, 1]} : vector<8x5xf32> to vector<8x1xf32>
    %315 = vector.broadcast %314 : vector<8x1xf32> to vector<8x16xf32>
    %316 = arith.mulf %313, %315 : vector<8x16xf32>
    %317 = arith.addf %312, %316 : vector<8x16xf32>
    %318 = vector.extract_strided_slice %308 {offsets = [0, 32], sizes = [8, 16], strides = [1, 1]} : vector<8x80xf32> to vector<8x16xf32>
    %319 = vector.extract_strided_slice %282 {offsets = [0, 2], sizes = [8, 1], strides = [1, 1]} : vector<8x5xf32> to vector<8x1xf32>
    %320 = vector.broadcast %319 : vector<8x1xf32> to vector<8x16xf32>
    %321 = arith.mulf %318, %320 : vector<8x16xf32>
    %322 = arith.addf %317, %321 : vector<8x16xf32>
    %323 = vector.extract_strided_slice %308 {offsets = [0, 48], sizes = [8, 16], strides = [1, 1]} : vector<8x80xf32> to vector<8x16xf32>
    %324 = vector.extract_strided_slice %282 {offsets = [0, 3], sizes = [8, 1], strides = [1, 1]} : vector<8x5xf32> to vector<8x1xf32>
    %325 = vector.broadcast %324 : vector<8x1xf32> to vector<8x16xf32>
    %326 = arith.mulf %323, %325 : vector<8x16xf32>
    %327 = arith.addf %322, %326 : vector<8x16xf32>
    %328 = vector.extract_strided_slice %308 {offsets = [0, 64], sizes = [8, 16], strides = [1, 1]} : vector<8x80xf32> to vector<8x16xf32>
    %329 = vector.extract_strided_slice %282 {offsets = [0, 4], sizes = [8, 1], strides = [1, 1]} : vector<8x5xf32> to vector<8x1xf32>
    %330 = vector.broadcast %329 : vector<8x1xf32> to vector<8x16xf32>
    %331 = arith.mulf %328, %330 : vector<8x16xf32>
    %332 = arith.addf %327, %331 : vector<8x16xf32>
    %333 = arith.addf %272, %332 : vector<8x16xf32>
    %cst_95 = arith.constant 5.000000e-01 : f32
    %334 = vector.broadcast %cst_95 : f32 to vector<8x16xf32>
    %335 = arith.mulf %334, %333 : vector<8x16xf32>
    %336 = arith.addf %276, %335 : vector<8x16xf32>
    %cst_96 = arith.constant 2.000000e+00 : f32
    %337 = vector.broadcast %cst_96 : f32 to vector<8x16xf32>
    %338 = arith.mulf %337, %336 : vector<8x16xf32>
    %339 = arith.subf %338, %280 : vector<8x16xf32>
    %340 = arith.addf %339, %332 : vector<8x16xf32>
    %c4_97 = arith.constant 4 : index
    %c0_98 = arith.constant 0 : index
    %c0_99 = arith.constant 0 : index
    %341 = vector.load %arg2[%c4_97, %c0_98, %c0_99] : memref<7x8x5xf32, #tpu.memory_space<vmem>>, vector<1x8x5xf32>
    %342 = vector.shape_cast %341 : vector<1x8x5xf32> to vector<8x5xf32>
    %cst_100 = arith.constant dense<0.000000e+00> : vector<8x32xf32>
    %343 = tpu.matmul %340, %0, %cst_100 {dimension_numbers = #tpu.dot_dimension_numbers<[1], [0], [0], [1], [0, 0, 1, 1], [], []>} : vector<8x16xf32>, vector<16x32xf32>, vector<8x32xf32> -> vector<8x32xf32>
    %344 = vector.broadcast %10 : vector<1x32xf32> to vector<8x32xf32>
    %345 = arith.addf %343, %344 : vector<8x32xf32>
    %cst_101 = arith.constant 0.908999979 : f32
    %346 = vector.broadcast %cst_101 : f32 to vector<8x32xf32>
    %347 = arith.mulf %346, %345 : vector<8x32xf32>
    %348 = arith.negf %345 : vector<8x32xf32>
    %349 = math.exp %348 : vector<8x32xf32>
    %cst_102 = arith.constant 1.000000e+00 : f32
    %350 = vector.broadcast %cst_102 : f32 to vector<8x32xf32>
    %351 = arith.addf %350, %349 : vector<8x32xf32>
    %352 = arith.divf %350, %351 : vector<8x32xf32>
    %353 = arith.mulf %347, %352 : vector<8x32xf32>
    %cst_103 = arith.constant dense<0.000000e+00> : vector<8x32xf32>
    %354 = tpu.matmul %353, %1, %cst_103 {dimension_numbers = #tpu.dot_dimension_numbers<[1], [0], [0], [1], [0, 0, 1, 1], [], []>} : vector<8x32xf32>, vector<32x32xf32>, vector<8x32xf32> -> vector<8x32xf32>
    %355 = vector.broadcast %3 : vector<1x32xf32> to vector<8x32xf32>
    %356 = arith.addf %354, %355 : vector<8x32xf32>
    %cst_104 = arith.constant 0.908999979 : f32
    %357 = vector.broadcast %cst_104 : f32 to vector<8x32xf32>
    %358 = arith.mulf %357, %356 : vector<8x32xf32>
    %359 = arith.negf %356 : vector<8x32xf32>
    %360 = math.exp %359 : vector<8x32xf32>
    %cst_105 = arith.constant 1.000000e+00 : f32
    %361 = vector.broadcast %cst_105 : f32 to vector<8x32xf32>
    %362 = arith.addf %361, %360 : vector<8x32xf32>
    %363 = arith.divf %361, %362 : vector<8x32xf32>
    %364 = arith.mulf %358, %363 : vector<8x32xf32>
    %cst_106 = arith.constant dense<0.000000e+00> : vector<8x80xf32>
    %365 = tpu.matmul %364, %2, %cst_106 {dimension_numbers = #tpu.dot_dimension_numbers<[1], [0], [0], [1], [0, 0, 1, 1], [], []>} : vector<8x32xf32>, vector<32x80xf32>, vector<8x80xf32> -> vector<8x80xf32>
    %366 = vector.broadcast %4 : vector<1x80xf32> to vector<8x80xf32>
    %367 = arith.addf %365, %366 : vector<8x80xf32>
    %368 = math.tanh %367 : vector<8x80xf32>
    %369 = vector.extract_strided_slice %368 {offsets = [0, 0], sizes = [8, 16], strides = [1, 1]} : vector<8x80xf32> to vector<8x16xf32>
    %370 = vector.extract_strided_slice %342 {offsets = [0, 0], sizes = [8, 1], strides = [1, 1]} : vector<8x5xf32> to vector<8x1xf32>
    %371 = vector.broadcast %370 : vector<8x1xf32> to vector<8x16xf32>
    %372 = arith.mulf %369, %371 : vector<8x16xf32>
    %373 = vector.extract_strided_slice %368 {offsets = [0, 16], sizes = [8, 16], strides = [1, 1]} : vector<8x80xf32> to vector<8x16xf32>
    %374 = vector.extract_strided_slice %342 {offsets = [0, 1], sizes = [8, 1], strides = [1, 1]} : vector<8x5xf32> to vector<8x1xf32>
    %375 = vector.broadcast %374 : vector<8x1xf32> to vector<8x16xf32>
    %376 = arith.mulf %373, %375 : vector<8x16xf32>
    %377 = arith.addf %372, %376 : vector<8x16xf32>
    %378 = vector.extract_strided_slice %368 {offsets = [0, 32], sizes = [8, 16], strides = [1, 1]} : vector<8x80xf32> to vector<8x16xf32>
    %379 = vector.extract_strided_slice %342 {offsets = [0, 2], sizes = [8, 1], strides = [1, 1]} : vector<8x5xf32> to vector<8x1xf32>
    %380 = vector.broadcast %379 : vector<8x1xf32> to vector<8x16xf32>
    %381 = arith.mulf %378, %380 : vector<8x16xf32>
    %382 = arith.addf %377, %381 : vector<8x16xf32>
    %383 = vector.extract_strided_slice %368 {offsets = [0, 48], sizes = [8, 16], strides = [1, 1]} : vector<8x80xf32> to vector<8x16xf32>
    %384 = vector.extract_strided_slice %342 {offsets = [0, 3], sizes = [8, 1], strides = [1, 1]} : vector<8x5xf32> to vector<8x1xf32>
    %385 = vector.broadcast %384 : vector<8x1xf32> to vector<8x16xf32>
    %386 = arith.mulf %383, %385 : vector<8x16xf32>
    %387 = arith.addf %382, %386 : vector<8x16xf32>
    %388 = vector.extract_strided_slice %368 {offsets = [0, 64], sizes = [8, 16], strides = [1, 1]} : vector<8x80xf32> to vector<8x16xf32>
    %389 = vector.extract_strided_slice %342 {offsets = [0, 4], sizes = [8, 1], strides = [1, 1]} : vector<8x5xf32> to vector<8x1xf32>
    %390 = vector.broadcast %389 : vector<8x1xf32> to vector<8x16xf32>
    %391 = arith.mulf %388, %390 : vector<8x16xf32>
    %392 = arith.addf %387, %391 : vector<8x16xf32>
    %393 = arith.addf %332, %392 : vector<8x16xf32>
    %cst_107 = arith.constant 5.000000e-01 : f32
    %394 = vector.broadcast %cst_107 : f32 to vector<8x16xf32>
    %395 = arith.mulf %394, %393 : vector<8x16xf32>
    %396 = arith.addf %336, %395 : vector<8x16xf32>
    %cst_108 = arith.constant 2.000000e+00 : f32
    %397 = vector.broadcast %cst_108 : f32 to vector<8x16xf32>
    %398 = arith.mulf %397, %396 : vector<8x16xf32>
    %399 = arith.subf %398, %340 : vector<8x16xf32>
    %400 = arith.addf %399, %392 : vector<8x16xf32>
    %c5_109 = arith.constant 5 : index
    %c0_110 = arith.constant 0 : index
    %c0_111 = arith.constant 0 : index
    %401 = vector.load %arg2[%c5_109, %c0_110, %c0_111] : memref<7x8x5xf32, #tpu.memory_space<vmem>>, vector<1x8x5xf32>
    %402 = vector.shape_cast %401 : vector<1x8x5xf32> to vector<8x5xf32>
    %cst_112 = arith.constant dense<0.000000e+00> : vector<8x32xf32>
    %403 = tpu.matmul %400, %0, %cst_112 {dimension_numbers = #tpu.dot_dimension_numbers<[1], [0], [0], [1], [0, 0, 1, 1], [], []>} : vector<8x16xf32>, vector<16x32xf32>, vector<8x32xf32> -> vector<8x32xf32>
    %404 = vector.broadcast %11 : vector<1x32xf32> to vector<8x32xf32>
    %405 = arith.addf %403, %404 : vector<8x32xf32>
    %cst_113 = arith.constant 0.908999979 : f32
    %406 = vector.broadcast %cst_113 : f32 to vector<8x32xf32>
    %407 = arith.mulf %406, %405 : vector<8x32xf32>
    %408 = arith.negf %405 : vector<8x32xf32>
    %409 = math.exp %408 : vector<8x32xf32>
    %cst_114 = arith.constant 1.000000e+00 : f32
    %410 = vector.broadcast %cst_114 : f32 to vector<8x32xf32>
    %411 = arith.addf %410, %409 : vector<8x32xf32>
    %412 = arith.divf %410, %411 : vector<8x32xf32>
    %413 = arith.mulf %407, %412 : vector<8x32xf32>
    %cst_115 = arith.constant dense<0.000000e+00> : vector<8x32xf32>
    %414 = tpu.matmul %413, %1, %cst_115 {dimension_numbers = #tpu.dot_dimension_numbers<[1], [0], [0], [1], [0, 0, 1, 1], [], []>} : vector<8x32xf32>, vector<32x32xf32>, vector<8x32xf32> -> vector<8x32xf32>
    %415 = vector.broadcast %3 : vector<1x32xf32> to vector<8x32xf32>
    %416 = arith.addf %414, %415 : vector<8x32xf32>
    %cst_116 = arith.constant 0.908999979 : f32
    %417 = vector.broadcast %cst_116 : f32 to vector<8x32xf32>
    %418 = arith.mulf %417, %416 : vector<8x32xf32>
    %419 = arith.negf %416 : vector<8x32xf32>
    %420 = math.exp %419 : vector<8x32xf32>
    %cst_117 = arith.constant 1.000000e+00 : f32
    %421 = vector.broadcast %cst_117 : f32 to vector<8x32xf32>
    %422 = arith.addf %421, %420 : vector<8x32xf32>
    %423 = arith.divf %421, %422 : vector<8x32xf32>
    %424 = arith.mulf %418, %423 : vector<8x32xf32>
    %cst_118 = arith.constant dense<0.000000e+00> : vector<8x80xf32>
    %425 = tpu.matmul %424, %2, %cst_118 {dimension_numbers = #tpu.dot_dimension_numbers<[1], [0], [0], [1], [0, 0, 1, 1], [], []>} : vector<8x32xf32>, vector<32x80xf32>, vector<8x80xf32> -> vector<8x80xf32>
    %426 = vector.broadcast %4 : vector<1x80xf32> to vector<8x80xf32>
    %427 = arith.addf %425, %426 : vector<8x80xf32>
    %428 = math.tanh %427 : vector<8x80xf32>
    %429 = vector.extract_strided_slice %428 {offsets = [0, 0], sizes = [8, 16], strides = [1, 1]} : vector<8x80xf32> to vector<8x16xf32>
    %430 = vector.extract_strided_slice %402 {offsets = [0, 0], sizes = [8, 1], strides = [1, 1]} : vector<8x5xf32> to vector<8x1xf32>
    %431 = vector.broadcast %430 : vector<8x1xf32> to vector<8x16xf32>
    %432 = arith.mulf %429, %431 : vector<8x16xf32>
    %433 = vector.extract_strided_slice %428 {offsets = [0, 16], sizes = [8, 16], strides = [1, 1]} : vector<8x80xf32> to vector<8x16xf32>
    %434 = vector.extract_strided_slice %402 {offsets = [0, 1], sizes = [8, 1], strides = [1, 1]} : vector<8x5xf32> to vector<8x1xf32>
    %435 = vector.broadcast %434 : vector<8x1xf32> to vector<8x16xf32>
    %436 = arith.mulf %433, %435 : vector<8x16xf32>
    %437 = arith.addf %432, %436 : vector<8x16xf32>
    %438 = vector.extract_strided_slice %428 {offsets = [0, 32], sizes = [8, 16], strides = [1, 1]} : vector<8x80xf32> to vector<8x16xf32>
    %439 = vector.extract_strided_slice %402 {offsets = [0, 2], sizes = [8, 1], strides = [1, 1]} : vector<8x5xf32> to vector<8x1xf32>
    %440 = vector.broadcast %439 : vector<8x1xf32> to vector<8x16xf32>
    %441 = arith.mulf %438, %440 : vector<8x16xf32>
    %442 = arith.addf %437, %441 : vector<8x16xf32>
    %443 = vector.extract_strided_slice %428 {offsets = [0, 48], sizes = [8, 16], strides = [1, 1]} : vector<8x80xf32> to vector<8x16xf32>
    %444 = vector.extract_strided_slice %402 {offsets = [0, 3], sizes = [8, 1], strides = [1, 1]} : vector<8x5xf32> to vector<8x1xf32>
    %445 = vector.broadcast %444 : vector<8x1xf32> to vector<8x16xf32>
    %446 = arith.mulf %443, %445 : vector<8x16xf32>
    %447 = arith.addf %442, %446 : vector<8x16xf32>
    %448 = vector.extract_strided_slice %428 {offsets = [0, 64], sizes = [8, 16], strides = [1, 1]} : vector<8x80xf32> to vector<8x16xf32>
    %449 = vector.extract_strided_slice %402 {offsets = [0, 4], sizes = [8, 1], strides = [1, 1]} : vector<8x5xf32> to vector<8x1xf32>
    %450 = vector.broadcast %449 : vector<8x1xf32> to vector<8x16xf32>
    %451 = arith.mulf %448, %450 : vector<8x16xf32>
    %452 = arith.addf %447, %451 : vector<8x16xf32>
    %453 = arith.addf %392, %452 : vector<8x16xf32>
    %cst_119 = arith.constant 5.000000e-01 : f32
    %454 = vector.broadcast %cst_119 : f32 to vector<8x16xf32>
    %455 = arith.mulf %454, %453 : vector<8x16xf32>
    %456 = arith.addf %396, %455 : vector<8x16xf32>
    %cst_120 = arith.constant 2.000000e+00 : f32
    %457 = vector.broadcast %cst_120 : f32 to vector<8x16xf32>
    %458 = arith.mulf %457, %456 : vector<8x16xf32>
    %459 = arith.subf %458, %400 : vector<8x16xf32>
    %460 = arith.addf %459, %452 : vector<8x16xf32>
    %c6_121 = arith.constant 6 : index
    %c0_122 = arith.constant 0 : index
    %c0_123 = arith.constant 0 : index
    %461 = vector.load %arg2[%c6_121, %c0_122, %c0_123] : memref<7x8x5xf32, #tpu.memory_space<vmem>>, vector<1x8x5xf32>
    %462 = vector.shape_cast %461 : vector<1x8x5xf32> to vector<8x5xf32>
    %cst_124 = arith.constant dense<0.000000e+00> : vector<8x32xf32>
    %463 = tpu.matmul %460, %0, %cst_124 {dimension_numbers = #tpu.dot_dimension_numbers<[1], [0], [0], [1], [0, 0, 1, 1], [], []>} : vector<8x16xf32>, vector<16x32xf32>, vector<8x32xf32> -> vector<8x32xf32>
    %464 = vector.broadcast %12 : vector<1x32xf32> to vector<8x32xf32>
    %465 = arith.addf %463, %464 : vector<8x32xf32>
    %cst_125 = arith.constant 0.908999979 : f32
    %466 = vector.broadcast %cst_125 : f32 to vector<8x32xf32>
    %467 = arith.mulf %466, %465 : vector<8x32xf32>
    %468 = arith.negf %465 : vector<8x32xf32>
    %469 = math.exp %468 : vector<8x32xf32>
    %cst_126 = arith.constant 1.000000e+00 : f32
    %470 = vector.broadcast %cst_126 : f32 to vector<8x32xf32>
    %471 = arith.addf %470, %469 : vector<8x32xf32>
    %472 = arith.divf %470, %471 : vector<8x32xf32>
    %473 = arith.mulf %467, %472 : vector<8x32xf32>
    %cst_127 = arith.constant dense<0.000000e+00> : vector<8x32xf32>
    %474 = tpu.matmul %473, %1, %cst_127 {dimension_numbers = #tpu.dot_dimension_numbers<[1], [0], [0], [1], [0, 0, 1, 1], [], []>} : vector<8x32xf32>, vector<32x32xf32>, vector<8x32xf32> -> vector<8x32xf32>
    %475 = vector.broadcast %3 : vector<1x32xf32> to vector<8x32xf32>
    %476 = arith.addf %474, %475 : vector<8x32xf32>
    %cst_128 = arith.constant 0.908999979 : f32
    %477 = vector.broadcast %cst_128 : f32 to vector<8x32xf32>
    %478 = arith.mulf %477, %476 : vector<8x32xf32>
    %479 = arith.negf %476 : vector<8x32xf32>
    %480 = math.exp %479 : vector<8x32xf32>
    %cst_129 = arith.constant 1.000000e+00 : f32
    %481 = vector.broadcast %cst_129 : f32 to vector<8x32xf32>
    %482 = arith.addf %481, %480 : vector<8x32xf32>
    %483 = arith.divf %481, %482 : vector<8x32xf32>
    %484 = arith.mulf %478, %483 : vector<8x32xf32>
    %cst_130 = arith.constant dense<0.000000e+00> : vector<8x80xf32>
    %485 = tpu.matmul %484, %2, %cst_130 {dimension_numbers = #tpu.dot_dimension_numbers<[1], [0], [0], [1], [0, 0, 1, 1], [], []>} : vector<8x32xf32>, vector<32x80xf32>, vector<8x80xf32> -> vector<8x80xf32>
    %486 = vector.broadcast %4 : vector<1x80xf32> to vector<8x80xf32>
    %487 = arith.addf %485, %486 : vector<8x80xf32>
    %488 = math.tanh %487 : vector<8x80xf32>
    %489 = vector.extract_strided_slice %488 {offsets = [0, 0], sizes = [8, 16], strides = [1, 1]} : vector<8x80xf32> to vector<8x16xf32>
    %490 = vector.extract_strided_slice %462 {offsets = [0, 0], sizes = [8, 1], strides = [1, 1]} : vector<8x5xf32> to vector<8x1xf32>
    %491 = vector.broadcast %490 : vector<8x1xf32> to vector<8x16xf32>
    %492 = arith.mulf %489, %491 : vector<8x16xf32>
    %493 = vector.extract_strided_slice %488 {offsets = [0, 16], sizes = [8, 16], strides = [1, 1]} : vector<8x80xf32> to vector<8x16xf32>
    %494 = vector.extract_strided_slice %462 {offsets = [0, 1], sizes = [8, 1], strides = [1, 1]} : vector<8x5xf32> to vector<8x1xf32>
    %495 = vector.broadcast %494 : vector<8x1xf32> to vector<8x16xf32>
    %496 = arith.mulf %493, %495 : vector<8x16xf32>
    %497 = arith.addf %492, %496 : vector<8x16xf32>
    %498 = vector.extract_strided_slice %488 {offsets = [0, 32], sizes = [8, 16], strides = [1, 1]} : vector<8x80xf32> to vector<8x16xf32>
    %499 = vector.extract_strided_slice %462 {offsets = [0, 2], sizes = [8, 1], strides = [1, 1]} : vector<8x5xf32> to vector<8x1xf32>
    %500 = vector.broadcast %499 : vector<8x1xf32> to vector<8x16xf32>
    %501 = arith.mulf %498, %500 : vector<8x16xf32>
    %502 = arith.addf %497, %501 : vector<8x16xf32>
    %503 = vector.extract_strided_slice %488 {offsets = [0, 48], sizes = [8, 16], strides = [1, 1]} : vector<8x80xf32> to vector<8x16xf32>
    %504 = vector.extract_strided_slice %462 {offsets = [0, 3], sizes = [8, 1], strides = [1, 1]} : vector<8x5xf32> to vector<8x1xf32>
    %505 = vector.broadcast %504 : vector<8x1xf32> to vector<8x16xf32>
    %506 = arith.mulf %503, %505 : vector<8x16xf32>
    %507 = arith.addf %502, %506 : vector<8x16xf32>
    %508 = vector.extract_strided_slice %488 {offsets = [0, 64], sizes = [8, 16], strides = [1, 1]} : vector<8x80xf32> to vector<8x16xf32>
    %509 = vector.extract_strided_slice %462 {offsets = [0, 4], sizes = [8, 1], strides = [1, 1]} : vector<8x5xf32> to vector<8x1xf32>
    %510 = vector.broadcast %509 : vector<8x1xf32> to vector<8x16xf32>
    %511 = arith.mulf %508, %510 : vector<8x16xf32>
    %512 = arith.addf %507, %511 : vector<8x16xf32>
    %513 = arith.addf %452, %512 : vector<8x16xf32>
    %cst_131 = arith.constant 5.000000e-01 : f32
    %514 = vector.broadcast %cst_131 : f32 to vector<8x16xf32>
    %515 = arith.mulf %514, %513 : vector<8x16xf32>
    %516 = arith.addf %456, %515 : vector<8x16xf32>
    %c0_132 = arith.constant 0 : index
    %c0_133 = arith.constant 0 : index
    %517 = vector.load %arg15[%c0_132, %c0_133] : memref<1x16xf32, #tpu.memory_space<vmem>>, vector<1x16xf32>
    %518 = vector.broadcast %517 : vector<1x16xf32> to vector<8x16xf32>
    %519 = arith.mulf %516, %518 : vector<8x16xf32>
    %cst_134 = arith.constant dense<0.000000e+00> : vector<8xf32>
    %520 = vector.multi_reduction <add>, %519, %cst_134 [1] : vector<8x16xf32> to vector<8xf32>
    %521 = vector.shape_cast %520 : vector<8xf32> to vector<8x1xf32>
    %c0_135 = arith.constant 0 : index
    %c0_136 = arith.constant 0 : index
    %522 = vector.load %arg16[%c0_135, %c0_136] : memref<8x1xf32, #tpu.memory_space<vmem>>, vector<8x1xf32>
    tpu.vector_store %arg16[%c0_135, %c0_136], %521 {strides = array<i32>} : memref<8x1xf32, #tpu.memory_space<vmem>>, vector<8x1xf32>,
    return
  }
  func.func @transform_0(%arg0: i32) -> (i32, i32) {
    %c0_i32 = arith.constant 0 : i32
    %c0_i32_0 = arith.constant 0 : i32
    return %arg0, %c0_i32 : i32, i32
  }
  func.func @transform_1(%arg0: i32) -> (i32, i32, i32) {
    %c0_i32 = arith.constant 0 : i32
    %c0_i32_0 = arith.constant 0 : i32
    %c0_i32_1 = arith.constant 0 : i32
    return %c0_i32, %arg0, %c0_i32_0 : i32, i32, i32
  }
  func.func @transform_2(%arg0: i32) -> (i32, i32) {
    %c0_i32 = arith.constant 0 : i32
    %c0_i32_0 = arith.constant 0 : i32
    %c0_i32_1 = arith.constant 0 : i32
    return %c0_i32, %c0_i32_0 : i32, i32
  }
  func.func @transform_3(%arg0: i32) -> (i32, i32) {
    %c0_i32 = arith.constant 0 : i32
    %c0_i32_0 = arith.constant 0 : i32
    %c0_i32_1 = arith.constant 0 : i32
    return %c0_i32, %c0_i32_0 : i32, i32
  }
  func.func @transform_4(%arg0: i32) -> (i32, i32) {
    %c0_i32 = arith.constant 0 : i32
    %c0_i32_0 = arith.constant 0 : i32
    %c0_i32_1 = arith.constant 0 : i32
    return %c0_i32, %c0_i32_0 : i32, i32
  }
  func.func @transform_5(%arg0: i32) -> (i32, i32) {
    %c0_i32 = arith.constant 0 : i32
    %c0_i32_0 = arith.constant 0 : i32
    %c0_i32_1 = arith.constant 0 : i32
    return %c0_i32, %c0_i32_0 : i32, i32
  }
  func.func @transform_6(%arg0: i32) -> (i32, i32) {
    %c0_i32 = arith.constant 0 : i32
    %c0_i32_0 = arith.constant 0 : i32
    %c0_i32_1 = arith.constant 0 : i32
    return %c0_i32, %c0_i32_0 : i32, i32
  }
  func.func @transform_7(%arg0: i32) -> (i32, i32) {
    %c0_i32 = arith.constant 0 : i32
    %c0_i32_0 = arith.constant 0 : i32
    %c0_i32_1 = arith.constant 0 : i32
    return %c0_i32, %c0_i32_0 : i32, i32
  }
  func.func @transform_8(%arg0: i32) -> (i32, i32) {
    %c0_i32 = arith.constant 0 : i32
    %c0_i32_0 = arith.constant 0 : i32
    %c0_i32_1 = arith.constant 0 : i32
    return %c0_i32, %c0_i32_0 : i32, i32
  }
  func.func @transform_9(%arg0: i32) -> (i32, i32) {
    %c0_i32 = arith.constant 0 : i32
    %c0_i32_0 = arith.constant 0 : i32
    %c0_i32_1 = arith.constant 0 : i32
    return %c0_i32, %c0_i32_0 : i32, i32
  }
  func.func @transform_10(%arg0: i32) -> (i32, i32) {
    %c0_i32 = arith.constant 0 : i32
    %c0_i32_0 = arith.constant 0 : i32
    %c0_i32_1 = arith.constant 0 : i32
    return %c0_i32, %c0_i32_0 : i32, i32
  }
  func.func @transform_11(%arg0: i32) -> (i32, i32) {
    %c0_i32 = arith.constant 0 : i32
    %c0_i32_0 = arith.constant 0 : i32
    %c0_i32_1 = arith.constant 0 : i32
    return %c0_i32, %c0_i32_0 : i32, i32
  }
  func.func @transform_12(%arg0: i32) -> (i32, i32) {
    %c0_i32 = arith.constant 0 : i32
    %c0_i32_0 = arith.constant 0 : i32
    %c0_i32_1 = arith.constant 0 : i32
    return %c0_i32, %c0_i32_0 : i32, i32
  }
  func.func @transform_13(%arg0: i32) -> (i32, i32) {
    %c0_i32 = arith.constant 0 : i32
    %c0_i32_0 = arith.constant 0 : i32
    %c0_i32_1 = arith.constant 0 : i32
    return %c0_i32, %c0_i32_0 : i32, i32
  }
  func.func @transform_14(%arg0: i32) -> (i32, i32) {
    %c0_i32 = arith.constant 0 : i32
    %c0_i32_0 = arith.constant 0 : i32
    %c0_i32_1 = arith.constant 0 : i32
    return %c0_i32, %c0_i32_0 : i32, i32
  }
  func.func @transform_15(%arg0: i32) -> (i32, i32) {
    %c0_i32 = arith.constant 0 : i32
    %c0_i32_0 = arith.constant 0 : i32
    return %arg0, %c0_i32 : i32, i32
  }
}

</mosaic_0001>

<llo_original>
// kernel: tpu_custom_call.1
$region0: #{tpu_custom_call.1}
  #allocation0 [shape = 'u32[]', space=smem, size = 0x4, offset = 0x4, fixed_abs, tag = 'smem constant byte address 0x4 - core index']
  #allocation1 [shape = 'u32[144,128]{1,0:T(1,128)}', space=vmem, size = 0x12000, scoped, tag = 'internal scratch']
  %s0 = inlined_call_operand.vmem [shape: f32[16,5], index: 0, kind: input, shape index: {}]
  %s1 = inlined_call_operand.vmem [shape: f32[7,16,5], index: 1, kind: input, shape index: {}]
  %s2 = inlined_call_operand.vmem [shape: f32[8,32], index: 2, kind: input, shape index: {}]
  %s3 = inlined_call_operand.vmem [shape: f32[5,32], index: 3, kind: input, shape index: {}]
  %s4 = inlined_call_operand.vmem [shape: f32[1,32], index: 4, kind: input, shape index: {}]
  %s5 = inlined_call_operand.vmem [shape: f32[32,32], index: 5, kind: input, shape index: {}]
  %s6 = inlined_call_operand.vmem [shape: f32[1,32], index: 6, kind: input, shape index: {}]
  %s7 = inlined_call_operand.vmem [shape: f32[32,16], index: 7, kind: input, shape index: {}]
  %s8 = inlined_call_operand.vmem [shape: f32[1,16], index: 8, kind: input, shape index: {}]
  %s9 = inlined_call_operand.vmem [shape: f32[16,32], index: 9, kind: input, shape index: {}]
  %s10 = inlined_call_operand.vmem [shape: f32[32,32], index: 10, kind: input, shape index: {}]
  %s11 = inlined_call_operand.vmem [shape: f32[1,32], index: 11, kind: input, shape index: {}]
  %s12 = inlined_call_operand.vmem [shape: f32[32,80], index: 12, kind: input, shape index: {}]
  %s13 = inlined_call_operand.vmem [shape: f32[1,80], index: 13, kind: input, shape index: {}]
  %s14 = inlined_call_operand.vmem [shape: f32[1,16], index: 14, kind: input, shape index: {}]
  %s15 = inlined_call_operand.vmem [shape: f32[16,1], index: 15, kind: output, shape index: {}]
  %s16 = sld [smem:[#allocation0]]
  $region131: #{tpu_custom_call.1} parent=0
    _
  %s18 = ssub.s32 1, %s16
  %s19 = scalar_select 0, %s18, %s16
  $region1: #{tpu_custom_call.1} parent=0
    #allocation2 [shape = 'u8[57344]{0}', space=vmem, size = 0xe000, scoped, tag = 'input window, operand 1']
    loop: start=0, step=1, limit=4
    $region2: #{tpu_custom_call.1} parent=1 // loop_pre_header
      _
    $region3: #{tpu_custom_call.1} parent=1 // loop_header
      %s21 = sphi 0, %s25
      %p22 = scmp.ge.s32.totalorder %s21, 4
      %s31 = sphi 0, %s33
      %s34 = sphi 0, %s31
      %s35 = sphi 0, %s34
      %s51 = sphi 0, %s35
      %s57 = sphi 0, %s59
      %s60 = sphi 0, %s57
      %s61 = sphi 0, %s60
      %s77 = sphi 0, %s61
      %s81 = sphi 0, %s81
      %s83 = sphi 0, %s81
      %s84 = sphi 0, %s83
      %s98 = sphi 0, %s84
      %s102 = sphi 0, %s102
      %s104 = sphi 0, %s102
      %s105 = sphi 0, %s104
      %s119 = sphi 0, %s105
      %s123 = sphi 0, %s123
      %s125 = sphi 0, %s123
      %s126 = sphi 0, %s125
      %s140 = sphi 0, %s126
      %s144 = sphi 0, %s144
      %s146 = sphi 0, %s144
      %s147 = sphi 0, %s146
      %s161 = sphi 0, %s147
      %s165 = sphi 0, %s165
      %s167 = sphi 0, %s165
      %s168 = sphi 0, %s167
      %s182 = sphi 0, %s168
      %s186 = sphi 0, %s186
      %s188 = sphi 0, %s186
      %s189 = sphi 0, %s188
      %s203 = sphi 0, %s189
      %s207 = sphi 0, %s207
      %s209 = sphi 0, %s207
      %s210 = sphi 0, %s209
      %s224 = sphi 0, %s210
      %s228 = sphi 0, %s228
      %s230 = sphi 0, %s228
      %s231 = sphi 0, %s230
      %s245 = sphi 0, %s231
      %s249 = sphi 0, %s249
      %s251 = sphi 0, %s249
      %s252 = sphi 0, %s251
      %s266 = sphi 0, %s252
      %s270 = sphi 0, %s270
      %s272 = sphi 0, %s270
      %s273 = sphi 0, %s272
      %s287 = sphi 0, %s273
      %s291 = sphi 0, %s291
      %s293 = sphi 0, %s291
      %s294 = sphi 0, %s293
      %s308 = sphi 0, %s294
      %s312 = sphi 0, %s312
      %s314 = sphi 0, %s312
      %s315 = sphi 0, %s314
      %s329 = sphi 0, %s315
      %s333 = sphi 0, %s333
      %s335 = sphi 0, %s333
      %s336 = sphi 0, %s335
      %s350 = sphi 0, %s336
      %s356 = sphi 0, %s358
      %s359 = sphi 0, %s356
      %s360 = sphi 0, %s359
      %s376 = sphi 0, %s360
    $region4: #{tpu_custom_call.1} parent=1 // loop_header_branch
      %24 = sbr.rel (%p22) target = $region8
    $region5: #{tpu_custom_call.1} parent=1 // loop_body
      %s26 = ssub.s32 %s21, 1
      %s27 = ssub.s32 %s21, 2
      %s28 = sadd.s32 %s21, 1
      %s29 = ssub.s32 %s21, %s28
      %p30 = scmp.eq.s32.totalorder %s29, 0
      %s32 = sadd.s32 %s31, 1
      %s33 = scalar_select %p30, %s31, %s32
      %p36 = pneg %p30
      %p37 = scmp.eq.s32.totalorder %s21, 1
      %p38 = por %p36, %p37
      %p39 = scmp.ne.s32.totalorder %s31, %s34
      %p40 = scmp.eq.s32.totalorder %s21, 0
      %p41 = por %p39, %p40
      %p42 = scmp.ne.s32.totalorder %s31, %s34
      %p43 = scmp.eq.s32.totalorder %s26, 1
      %p44 = por %p42, %p43
      %p45 = scmp.ne.s32.totalorder %s34, %s35
      %p46 = scmp.eq.s32.totalorder %s26, 0
      %p47 = por %p45, %p46
      %p48 = scmp.ne.s32.totalorder %s34, %s35
      %p49 = scmp.eq.s32.totalorder %s27, 1
      %p50 = por %p48, %p49
      %p52 = scmp.ne.s32.totalorder %s35, %s51
      %p53 = scmp.eq.s32.totalorder %s27, 0
      %p54 = por %p52, %p53
      %s55 = ssub.s32 %s21, %s28
      %p56 = scmp.eq.s32.totalorder %s55, 0
      %s58 = sadd.s32 %s57, 1
      %s59 = scalar_select %p56, %s57, %s58
      %p62 = pneg %p56
      %p63 = scmp.eq.s32.totalorder %s21, 1
      %p64 = por %p62, %p63
      %p65 = scmp.ne.s32.totalorder %s57, %s60
      %p66 = scmp.eq.s32.totalorder %s21, 0
      %p67 = por %p65, %p66
      %p68 = scmp.ne.s32.totalorder %s57, %s60
      %p69 = scmp.eq.s32.totalorder %s26, 1
      %p70 = por %p68, %p69
      %p71 = scmp.ne.s32.totalorder %s60, %s61
      %p72 = scmp.eq.s32.totalorder %s26, 0
      %p73 = por %p71, %p72
      %p74 = scmp.ne.s32.totalorder %s60, %s61
      %p75 = scmp.eq.s32.totalorder %s27, 1
      %p76 = por %p74, %p75
      %p78 = scmp.ne.s32.totalorder %s61, %s77
      %p79 = scmp.eq.s32.totalorder %s27, 0
      %p80 = por %p78, %p79
      %s82 = sadd.s32 %s81, 1
      %p85 = scmp.eq.s32.totalorder %s21, 1
      %p86 = scmp.ne.s32.totalorder %s81, %s83
      %p87 = scmp.eq.s32.totalorder %s21, 0
      %p88 = por %p86, %p87
      %p89 = scmp.ne.s32.totalorder %s81, %s83
      %p90 = scmp.eq.s32.totalorder %s26, 1
      %p91 = por %p89, %p90
      %p92 = scmp.ne.s32.totalorder %s83, %s84
      %p93 = scmp.eq.s32.totalorder %s26, 0
      %p94 = por %p92, %p93
      %p95 = scmp.ne.s32.totalorder %s83, %s84
      %p96 = scmp.eq.s32.totalorder %s27, 1
      %p97 = por %p95, %p96
      %p99 = scmp.ne.s32.totalorder %s84, %s98
      %p100 = scmp.eq.s32.totalorder %s27, 0
      %p101 = por %p99, %p100
      %s103 = sadd.s32 %s102, 1
      %p106 = scmp.eq.s32.totalorder %s21, 1
      %p107 = scmp.ne.s32.totalorder %s102, %s104
      %p108 = scmp.eq.s32.totalorder %s21, 0
      %p109 = por %p107, %p108
      %p110 = scmp.ne.s32.totalorder %s102, %s104
      %p111 = scmp.eq.s32.totalorder %s26, 1
      %p112 = por %p110, %p111
      %p113 = scmp.ne.s32.totalorder %s104, %s105
      %p114 = scmp.eq.s32.totalorder %s26, 0
      %p115 = por %p113, %p114
      %p116 = scmp.ne.s32.totalorder %s104, %s105
      %p117 = scmp.eq.s32.totalorder %s27, 1
      %p118 = por %p116, %p117
      %p120 = scmp.ne.s32.totalorder %s105, %s119
      %p121 = scmp.eq.s32.totalorder %s27, 0
      %p122 = por %p120, %p121
      %s124 = sadd.s32 %s123, 1
      %p127 = scmp.eq.s32.totalorder %s21, 1
      %p128 = scmp.ne.s32.totalorder %s123, %s125
      %p129 = scmp.eq.s32.totalorder %s21, 0
      %p130 = por %p128, %p129
      %p131 = scmp.ne.s32.totalorder %s123, %s125
      %p132 = scmp.eq.s32.totalorder %s26, 1
      %p133 = por %p131, %p132
      %p134 = scmp.ne.s32.totalorder %s125, %s126
      %p135 = scmp.eq.s32.totalorder %s26, 0
      %p136 = por %p134, %p135
      %p137 = scmp.ne.s32.totalorder %s125, %s126
      %p138 = scmp.eq.s32.totalorder %s27, 1
      %p139 = por %p137, %p138
      %p141 = scmp.ne.s32.totalorder %s126, %s140
      %p142 = scmp.eq.s32.totalorder %s27, 0
      %p143 = por %p141, %p142
      %s145 = sadd.s32 %s144, 1
      %p148 = scmp.eq.s32.totalorder %s21, 1
      %p149 = scmp.ne.s32.totalorder %s144, %s146
      %p150 = scmp.eq.s32.totalorder %s21, 0
      %p151 = por %p149, %p150
      %p152 = scmp.ne.s32.totalorder %s144, %s146
      %p153 = scmp.eq.s32.totalorder %s26, 1
      %p154 = por %p152, %p153
      %p155 = scmp.ne.s32.totalorder %s146, %s147
      %p156 = scmp.eq.s32.totalorder %s26, 0
      %p157 = por %p155, %p156
      %p158 = scmp.ne.s32.totalorder %s146, %s147
      %p159 = scmp.eq.s32.totalorder %s27, 1
      %p160 = por %p158, %p159
      %p162 = scmp.ne.s32.totalorder %s147, %s161
      %p163 = scmp.eq.s32.totalorder %s27, 0
      %p164 = por %p162, %p163
      %s166 = sadd.s32 %s165, 1
      %p169 = scmp.eq.s32.totalorder %s21, 1
      %p170 = scmp.ne.s32.totalorder %s165, %s167
      %p171 = scmp.eq.s32.totalorder %s21, 0
      %p172 = por %p170, %p171
      %p173 = scmp.ne.s32.totalorder %s165, %s167
      %p174 = scmp.eq.s32.totalorder %s26, 1
      %p175 = por %p173, %p174
      %p176 = scmp.ne.s32.totalorder %s167, %s168
      %p177 = scmp.eq.s32.totalorder %s26, 0
      %p178 = por %p176, %p177
      %p179 = scmp.ne.s32.totalorder %s167, %s168
      %p180 = scmp.eq.s32.totalorder %s27, 1
      %p181 = por %p179, %p180
      %p183 = scmp.ne.s32.totalorder %s168, %s182
      %p184 = scmp.eq.s32.totalorder %s27, 0
      %p185 = por %p183, %p184
      %s187 = sadd.s32 %s186, 1
      %p190 = scmp.eq.s32.totalorder %s21, 1
      %p191 = scmp.ne.s32.totalorder %s186, %s188
      %p192 = scmp.eq.s32.totalorder %s21, 0
      %p193 = por %p191, %p192
      %p194 = scmp.ne.s32.totalorder %s186, %s188
      %p195 = scmp.eq.s32.totalorder %s26, 1
      %p196 = por %p194, %p195
      %p197 = scmp.ne.s32.totalorder %s188, %s189
      %p198 = scmp.eq.s32.totalorder %s26, 0
      %p199 = por %p197, %p198
      %p200 = scmp.ne.s32.totalorder %s188, %s189
      %p201 = scmp.eq.s32.totalorder %s27, 1
      %p202 = por %p200, %p201
      %p204 = scmp.ne.s32.totalorder %s189, %s203
      %p205 = scmp.eq.s32.totalorder %s27, 0
      %p206 = por %p204, %p205
      %s208 = sadd.s32 %s207, 1
      %p211 = scmp.eq.s32.totalorder %s21, 1
      %p212 = scmp.ne.s32.totalorder %s207, %s209
      %p213 = scmp.eq.s32.totalorder %s21, 0
      %p214 = por %p212, %p213
      %p215 = scmp.ne.s32.totalorder %s207, %s209
      %p216 = scmp.eq.s32.totalorder %s26, 1
      %p217 = por %p215, %p216
      %p218 = scmp.ne.s32.totalorder %s209, %s210
      %p219 = scmp.eq.s32.totalorder %s26, 0
      %p220 = por %p218, %p219
      %p221 = scmp.ne.s32.totalorder %s209, %s210
      %p222 = scmp.eq.s32.totalorder %s27, 1
      %p223 = por %p221, %p222
      %p225 = scmp.ne.s32.totalorder %s210, %s224
      %p226 = scmp.eq.s32.totalorder %s27, 0
      %p227 = por %p225, %p226
      %s229 = sadd.s32 %s228, 1
      %p232 = scmp.eq.s32.totalorder %s21, 1
      %p233 = scmp.ne.s32.totalorder %s228, %s230
      %p234 = scmp.eq.s32.totalorder %s21, 0
      %p235 = por %p233, %p234
      %p236 = scmp.ne.s32.totalorder %s228, %s230
      %p237 = scmp.eq.s32.totalorder %s26, 1
      %p238 = por %p236, %p237
      %p239 = scmp.ne.s32.totalorder %s230, %s231
      %p240 = scmp.eq.s32.totalorder %s26, 0
      %p241 = por %p239, %p240
      %p242 = scmp.ne.s32.totalorder %s230, %s231
      %p243 = scmp.eq.s32.totalorder %s27, 1
      %p244 = por %p242, %p243
      %p246 = scmp.ne.s32.totalorder %s231, %s245
      %p247 = scmp.eq.s32.totalorder %s27, 0
      %p248 = por %p246, %p247
      %s250 = sadd.s32 %s249, 1
      %p253 = scmp.eq.s32.totalorder %s21, 1
      %p254 = scmp.ne.s32.totalorder %s249, %s251
      %p255 = scmp.eq.s32.totalorder %s21, 0
      %p256 = por %p254, %p255
      %p257 = scmp.ne.s32.totalorder %s249, %s251
      %p258 = scmp.eq.s32.totalorder %s26, 1
      %p259 = por %p257, %p258
      %p260 = scmp.ne.s32.totalorder %s251, %s252
      %p261 = scmp.eq.s32.totalorder %s26, 0
      %p262 = por %p260, %p261
      %p263 = scmp.ne.s32.totalorder %s251, %s252
      %p264 = scmp.eq.s32.totalorder %s27, 1
      %p265 = por %p263, %p264
      %p267 = scmp.ne.s32.totalorder %s252, %s266
      %p268 = scmp.eq.s32.totalorder %s27, 0
      %p269 = por %p267, %p268
      %s271 = sadd.s32 %s270, 1
      %p274 = scmp.eq.s32.totalorder %s21, 1
      %p275 = scmp.ne.s32.totalorder %s270, %s272
      %p276 = scmp.eq.s32.totalorder %s21, 0
      %p277 = por %p275, %p276
      %p278 = scmp.ne.s32.totalorder %s270, %s272
      %p279 = scmp.eq.s32.totalorder %s26, 1
      %p280 = por %p278, %p279
      %p281 = scmp.ne.s32.totalorder %s272, %s273
      %p282 = scmp.eq.s32.totalorder %s26, 0
      %p283 = por %p281, %p282
      %p284 = scmp.ne.s32.totalorder %s272, %s273
      %p285 = scmp.eq.s32.totalorder %s27, 1
      %p286 = por %p284, %p285
      %p288 = scmp.ne.s32.totalorder %s273, %s287
      %p289 = scmp.eq.s32.totalorder %s27, 0
      %p290 = por %p288, %p289
      %s292 = sadd.s32 %s291, 1
      %p295 = scmp.eq.s32.totalorder %s21, 1
      %p296 = scmp.ne.s32.totalorder %s291, %s293
      %p297 = scmp.eq.s32.totalorder %s21, 0
      %p298 = por %p296, %p297
      %p299 = scmp.ne.s32.totalorder %s291, %s293
      %p300 = scmp.eq.s32.totalorder %s26, 1
      %p301 = por %p299, %p300
      %p302 = scmp.ne.s32.totalorder %s293, %s294
      %p303 = scmp.eq.s32.totalorder %s26, 0
      %p304 = por %p302, %p303
      %p305 = scmp.ne.s32.totalorder %s293, %s294
      %p306 = scmp.eq.s32.totalorder %s27, 1
      %p307 = por %p305, %p306
      %p309 = scmp.ne.s32.totalorder %s294, %s308
      %p310 = scmp.eq.s32.totalorder %s27, 0
      %p311 = por %p309, %p310
      %s313 = sadd.s32 %s312, 1
      %p316 = scmp.eq.s32.totalorder %s21, 1
      %p317 = scmp.ne.s32.totalorder %s312, %s314
      %p318 = scmp.eq.s32.totalorder %s21, 0
      %p319 = por %p317, %p318
      %p320 = scmp.ne.s32.totalorder %s312, %s314
      %p321 = scmp.eq.s32.totalorder %s26, 1
      %p322 = por %p320, %p321
      %p323 = scmp.ne.s32.totalorder %s314, %s315
      %p324 = scmp.eq.s32.totalorder %s26, 0
      %p325 = por %p323, %p324
      %p326 = scmp.ne.s32.totalorder %s314, %s315
      %p327 = scmp.eq.s32.totalorder %s27, 1
      %p328 = por %p326, %p327
      %p330 = scmp.ne.s32.totalorder %s315, %s329
      %p331 = scmp.eq.s32.totalorder %s27, 0
      %p332 = por %p330, %p331
      %s334 = sadd.s32 %s333, 1
      %p337 = scmp.eq.s32.totalorder %s21, 1
      %p338 = scmp.ne.s32.totalorder %s333, %s335
      %p339 = scmp.eq.s32.totalorder %s21, 0
      %p340 = por %p338, %p339
      %p341 = scmp.ne.s32.totalorder %s333, %s335
      %p342 = scmp.eq.s32.totalorder %s26, 1
      %p343 = por %p341, %p342
      %p344 = scmp.ne.s32.totalorder %s335, %s336
      %p345 = scmp.eq.s32.totalorder %s26, 0
      %p346 = por %p344, %p345
      %p347 = scmp.ne.s32.totalorder %s335, %s336
      %p348 = scmp.eq.s32.totalorder %s27, 1
      %p349 = por %p347, %p348
      %p351 = scmp.ne.s32.totalorder %s336, %s350
      %p352 = scmp.eq.s32.totalorder %s27, 0
      %p353 = por %p351, %p352
      %s354 = ssub.s32 %s21, %s28
      %p355 = scmp.eq.s32.totalorder %s354, 0
      %s357 = sadd.s32 %s356, 1
      %s358 = scalar_select %p355, %s356, %s357
      %p361 = pneg %p355
      %p362 = scmp.eq.s32.totalorder %s21, 1
      %p363 = por %p361, %p362
      %p364 = scmp.ne.s32.totalorder %s356, %s359
      %p365 = scmp.eq.s32.totalorder %s21, 0
      %p366 = por %p364, %p365
      %p367 = scmp.ne.s32.totalorder %s356, %s359
      %p368 = scmp.eq.s32.totalorder %s26, 1
      %p369 = por %p367, %p368
      %p370 = scmp.ne.s32.totalorder %s359, %s360
      %p371 = scmp.eq.s32.totalorder %s26, 0
      %p372 = por %p370, %p371
      %p373 = scmp.ne.s32.totalorder %s359, %s360
      %p374 = scmp.eq.s32.totalorder %s27, 1
      %p375 = por %p373, %p374
      %p377 = scmp.ne.s32.totalorder %s360, %s376
      %p378 = scmp.eq.s32.totalorder %s27, 0
      %p379 = por %p377, %p378
      %p380 = scmp.le.s32.totalorder 1, %s21
      %p381 = scmp.lt.s32.totalorder %s21, 3
      %p382 = pnand %p380, %p381
      %p383 = pneg %p382
      // Predicated region
      $region9: #{tpu_custom_call.1} parent=5 // pred_check
        _
      $region10: #{tpu_custom_call.1} parent=5 // pred_check_branch
        %385 = sbr.rel (%p382) target = $region12
      $region11: #{tpu_custom_call.1} parent=5 // pred_region
        %s386 = ssub.s32 %s21, 1
        // Predicated region
        $region13: #{tpu_custom_call.1} parent=11 // pred_check
          %p387 = pneg %p94
        $region14: #{tpu_custom_call.1} parent=11 // pred_check_branch
          %389 = sbr.rel (%p387) target = $region16
        $region15: #{tpu_custom_call.1} parent=11 // pred_region
          _
        $region16: #{tpu_custom_call.1} parent=11 // pred_fallthru
          _
        // Predicated region
        $region17: #{tpu_custom_call.1} parent=11 // pred_check
          %p390 = pneg %p115
        $region18: #{tpu_custom_call.1} parent=11 // pred_check_branch
          %392 = sbr.rel (%p390) target = $region20
        $region19: #{tpu_custom_call.1} parent=11 // pred_region
          _
        $region20: #{tpu_custom_call.1} parent=11 // pred_fallthru
          _
        // Predicated region
        $region21: #{tpu_custom_call.1} parent=11 // pred_check
          %p393 = pneg %p136
        $region22: #{tpu_custom_call.1} parent=11 // pred_check_branch
          %395 = sbr.rel (%p393) target = $region24
        $region23: #{tpu_custom_call.1} parent=11 // pred_region
          _
        $region24: #{tpu_custom_call.1} parent=11 // pred_fallthru
          _
        // Predicated region
        $region25: #{tpu_custom_call.1} parent=11 // pred_check
          %p396 = pneg %p157
        $region26: #{tpu_custom_call.1} parent=11 // pred_check_branch
          %398 = sbr.rel (%p396) target = $region28
        $region27: #{tpu_custom_call.1} parent=11 // pred_region
          _
        $region28: #{tpu_custom_call.1} parent=11 // pred_fallthru
          _
        // Predicated region
        $region29: #{tpu_custom_call.1} parent=11 // pred_check
          %p399 = pneg %p178
        $region30: #{tpu_custom_call.1} parent=11 // pred_check_branch
          %401 = sbr.rel (%p399) target = $region32
        $region31: #{tpu_custom_call.1} parent=11 // pred_region
          _
        $region32: #{tpu_custom_call.1} parent=11 // pred_fallthru
          _
        // Predicated region
        $region33: #{tpu_custom_call.1} parent=11 // pred_check
          %p402 = pneg %p199
        $region34: #{tpu_custom_call.1} parent=11 // pred_check_branch
          %404 = sbr.rel (%p402) target = $region36
        $region35: #{tpu_custom_call.1} parent=11 // pred_region
          _
        $region36: #{tpu_custom_call.1} parent=11 // pred_fallthru
          _
        // Predicated region
        $region37: #{tpu_custom_call.1} parent=11 // pred_check
          %p405 = pneg %p220
        $region38: #{tpu_custom_call.1} parent=11 // pred_check_branch
          %407 = sbr.rel (%p405) target = $region40
        $region39: #{tpu_custom_call.1} parent=11 // pred_region
          _
        $region40: #{tpu_custom_call.1} parent=11 // pred_fallthru
          _
        // Predicated region
        $region41: #{tpu_custom_call.1} parent=11 // pred_check
          %p408 = pneg %p241
        $region42: #{tpu_custom_call.1} parent=11 // pred_check_branch
          %410 = sbr.rel (%p408) target = $region44
        $region43: #{tpu_custom_call.1} parent=11 // pred_region
          _
        $region44: #{tpu_custom_call.1} parent=11 // pred_fallthru
          _
        // Predicated region
        $region45: #{tpu_custom_call.1} parent=11 // pred_check
          %p411 = pneg %p262
        $region46: #{tpu_custom_call.1} parent=11 // pred_check_branch
          %413 = sbr.rel (%p411) target = $region48
        $region47: #{tpu_custom_call.1} parent=11 // pred_region
          _
        $region48: #{tpu_custom_call.1} parent=11 // pred_fallthru
          _
        // Predicated region
        $region49: #{tpu_custom_call.1} parent=11 // pred_check
          %p414 = pneg %p283
        $region50: #{tpu_custom_call.1} parent=11 // pred_check_branch
          %416 = sbr.rel (%p414) target = $region52
        $region51: #{tpu_custom_call.1} parent=11 // pred_region
          _
        $region52: #{tpu_custom_call.1} parent=11 // pred_fallthru
          _
        // Predicated region
        $region53: #{tpu_custom_call.1} parent=11 // pred_check
          %p417 = pneg %p304
        $region54: #{tpu_custom_call.1} parent=11 // pred_check_branch
          %419 = sbr.rel (%p417) target = $region56
        $region55: #{tpu_custom_call.1} parent=11 // pred_region
          _
        $region56: #{tpu_custom_call.1} parent=11 // pred_fallthru
          _
        // Predicated region
        $region57: #{tpu_custom_call.1} parent=11 // pred_check
          %p420 = pneg %p325
        $region58: #{tpu_custom_call.1} parent=11 // pred_check_branch
          %422 = sbr.rel (%p420) target = $region60
        $region59: #{tpu_custom_call.1} parent=11 // pred_region
          _
        $region60: #{tpu_custom_call.1} parent=11 // pred_fallthru
          _
        // Predicated region
        $region61: #{tpu_custom_call.1} parent=11 // pred_check
          %p423 = pneg %p346
        $region62: #{tpu_custom_call.1} parent=11 // pred_check_branch
          %425 = sbr.rel (%p423) target = $region64
        $region63: #{tpu_custom_call.1} parent=11 // pred_region
          _
        $region64: #{tpu_custom_call.1} parent=11 // pred_fallthru
          _
      $region12: #{tpu_custom_call.1} parent=5 // pred_fallthru
        _
      %p426 = scmp.lt.s32.totalorder %s21, 2
      // Predicated region
      $region65: #{tpu_custom_call.1} parent=5 // pred_check
        %p427 = pneg %p426
      $region66: #{tpu_custom_call.1} parent=5 // pred_check_branch
        %429 = sbr.rel (%p427) target = $region68
      $region67: #{tpu_custom_call.1} parent=5 // pred_region
        // Predicated region
        $region69: #{tpu_custom_call.1} parent=67 // pred_check
          %p430 = pneg %p41
        $region70: #{tpu_custom_call.1} parent=67 // pred_check_branch
          %432 = sbr.rel (%p430) target = $region72
        $region71: #{tpu_custom_call.1} parent=67 // pred_region
          %p433 = scmp.lt.s32.totalorder %s21, 1
          %s434 = scalar_select %p433, %s21, 1
          %s435 = smul.addr %s434, 8
          %s436 = scalar_lea.vmem %s0, %s435
        $region72: #{tpu_custom_call.1} parent=67 // pred_fallthru
          _
        // Predicated region
        $region73: #{tpu_custom_call.1} parent=67 // pred_check
          %p437 = pneg %p67
        $region74: #{tpu_custom_call.1} parent=67 // pred_check_branch
          %439 = sbr.rel (%p437) target = $region76
        $region75: #{tpu_custom_call.1} parent=67 // pred_region
          %s440 = sand.u32 %s57, 1
          %s441 = sand.u32 %s57, 1
          %s442 = smul.addr %s441, 56
          %s443 = scalar_lea.vmem [#allocation2], %s442
          %s444 = smul.addr %s21, 8
          %s445 = scalar_lea.vmem %s1, %s444
          // Predicated region
          $region77: #{tpu_custom_call.1} parent=75 // pred_check
            _
          $region78: #{tpu_custom_call.1} parent=75 // pred_check_branch
            %447 = sbr.rel (0) target = $region80
          $region79: #{tpu_custom_call.1} parent=75 // pred_region
            // Predicated region
            $region81: #{tpu_custom_call.1} parent=79 // pred_check
              _
            $region82: #{tpu_custom_call.1} parent=79 // pred_check_branch
              %449 = sbr.rel (0) target = $region84
            $region83: #{tpu_custom_call.1} parent=79 // pred_region
              // Predicated region
              $region96: #{tpu_custom_call.1} parent=83 // pred_check
                _
              $region97: #{tpu_custom_call.1} parent=83 // pred_check_branch
                %477 = sbr.rel (0) target = $region99
              $region98: #{tpu_custom_call.1} parent=83 // pred_region
                loop: start=0, step=1, limit=1
                $region100: #{tpu_custom_call.1} parent=98 // loop_pre_header
                  _
                $region101: #{tpu_custom_call.1} parent=98 // loop_header
                  %s479 = sphi 0, %s483
                  %p480 = scmp.ge.s32.totalorder %s479, 1
                  %s484 = sphi %s445, %s445
                  %s485 = sphi %s443, %s443
                $region102: #{tpu_custom_call.1} parent=98 // loop_header_branch
                  %482 = sbr.rel (%p480) target = $region106
                $region103: #{tpu_custom_call.1} parent=98 // loop_body
                  %v486 = vld [vmem:[%s484] sm:$0xff]
                  %487 = vst [vmem:[%s485] sm:$0xff] %v486
                  %v488 = vld [vmem:[%s484 + $0x10] sm:$0xff]
                  %489 = vst [vmem:[%s485 + $0x8] sm:$0xff] %v488
                  %v490 = vld [vmem:[%s484 + $0x20] sm:$0xff]
                  %491 = vst [vmem:[%s485 + $0x10] sm:$0xff] %v490
                  %v492 = vld [vmem:[%s484 + $0x30] sm:$0xff]
                  %493 = vst [vmem:[%s485 + $0x18] sm:$0xff] %v492
                  %v494 = vld [vmem:[%s484 + $0x40] sm:$0xff]
                  %495 = vst [vmem:[%s485 + $0x20] sm:$0xff] %v494
                  %v496 = vld [vmem:[%s484 + $0x50] sm:$0xff]
                  %497 = vst [vmem:[%s485 + $0x28] sm:$0xff] %v496
                  %v498 = vld [vmem:[%s484 + $0x60] sm:$0xff]
                  %499 = vst [vmem:[%s485 + $0x30] sm:$0xff] %v498
                $region104: #{tpu_custom_call.1} parent=98 // loop_footer
                  %s483 = sadd.s32 1, %s479
                $region105: #{tpu_custom_call.1} parent=98 // loop_footer_branch
                  %478 = sbr.rel target = $region101
                $region106: #{tpu_custom_call.1} parent=98 // loop_exit
                  _
              $region99: #{tpu_custom_call.1} parent=83 // pred_fallthru
                _
              // Predicated region
              $region107: #{tpu_custom_call.1} parent=83 // pred_check
                _
              $region108: #{tpu_custom_call.1} parent=83 // pred_check_branch
                %501 = sbr.rel target = $region110
              $region109: #{tpu_custom_call.1} parent=83 // pred_region
                _
              $region110: #{tpu_custom_call.1} parent=83 // pred_fallthru
                _
            $region84: #{tpu_custom_call.1} parent=79 // pred_fallthru
              _
            // Predicated region
            $region85: #{tpu_custom_call.1} parent=79 // pred_check
              _
            $region86: #{tpu_custom_call.1} parent=79 // pred_check_branch
              %451 = sbr.rel target = $region88
            $region87: #{tpu_custom_call.1} parent=79 // pred_region
              %s453 = ssub.s32 256, 1
              loop: start=0, step=1, limit=1
              $region89: #{tpu_custom_call.1} parent=87 // loop_pre_header
                _
              $region90: #{tpu_custom_call.1} parent=87 // loop_header
                %s455 = sphi 0, %s459
                %p456 = scmp.ge.s32.totalorder %s455, 1
                %s460 = sphi %s445, %s445
                %s461 = sphi %s443, %s443
              $region91: #{tpu_custom_call.1} parent=87 // loop_header_branch
                %458 = sbr.rel (%p456) target = $region95
              $region92: #{tpu_custom_call.1} parent=87 // loop_body
                %v462 = vld [vmem:[%s460] sm:%s453]
                %463 = vst [vmem:[%s461] sm:%s453] %v462
                %v464 = vld [vmem:[%s460 + $0x10] sm:%s453]
                %465 = vst [vmem:[%s461 + $0x8] sm:%s453] %v464
                %v466 = vld [vmem:[%s460 + $0x20] sm:%s453]
                %467 = vst [vmem:[%s461 + $0x10] sm:%s453] %v466
                %v468 = vld [vmem:[%s460 + $0x30] sm:%s453]
                %469 = vst [vmem:[%s461 + $0x18] sm:%s453] %v468
                %v470 = vld [vmem:[%s460 + $0x40] sm:%s453]
                %471 = vst [vmem:[%s461 + $0x20] sm:%s453] %v470
                %v472 = vld [vmem:[%s460 + $0x50] sm:%s453]
                %473 = vst [vmem:[%s461 + $0x28] sm:%s453] %v472
                %v474 = vld [vmem:[%s460 + $0x60] sm:%s453]
                %475 = vst [vmem:[%s461 + $0x30] sm:%s453] %v474
              $region93: #{tpu_custom_call.1} parent=87 // loop_footer
                %s459 = sadd.s32 1, %s455
              $region94: #{tpu_custom_call.1} parent=87 // loop_footer_branch
                %454 = sbr.rel target = $region90
              $region95: #{tpu_custom_call.1} parent=87 // loop_exit
                _
            $region88: #{tpu_custom_call.1} parent=79 // pred_fallthru
              _
          $region80: #{tpu_custom_call.1} parent=75 // pred_fallthru
            _
          %502 = vnop
        $region76: #{tpu_custom_call.1} parent=67 // pred_fallthru
          _
      $region68: #{tpu_custom_call.1} parent=5 // pred_fallthru
        _
      %p503 = scmp.le.s32.totalorder 1, %s21
      %p504 = scmp.lt.s32.totalorder %s21, 3
      %p505 = pnand %p503, %p504
      %p506 = pneg %p505
      // Predicated region
      $region111: #{tpu_custom_call.1} parent=5 // pred_check
        _
      $region112: #{tpu_custom_call.1} parent=5 // pred_check_branch
        %508 = sbr.rel (%p505) target = $region114
      $region113: #{tpu_custom_call.1} parent=5 // pred_region
        %s509 = ssub.s32 %s21, 1
        %s510 = sand.u32 %s60, 1
        %s511 = sand.u32 %s60, 1
        %s512 = smul.addr %s511, 56
        %s513 = scalar_lea.vmem [#allocation2], %s512
        // Predicated region
        $region115: #{tpu_custom_call.1} parent=113 // pred_check
          %p514 = pneg %p73
        $region116: #{tpu_custom_call.1} parent=113 // pred_check_branch
          %516 = sbr.rel (%p514) target = $region118
        $region117: #{tpu_custom_call.1} parent=113 // pred_region
          _
        $region118: #{tpu_custom_call.1} parent=113 // pred_fallthru
          _
        %p517 = scmp.lt.s32.totalorder %s26, 1
        %s518 = scalar_select %p517, %s26, 1
        %s519 = smul.addr %s518, 8
        %s520 = scalar_lea.vmem %s0, %s519
        %p521 = pneg %p47
        %p522 = pneg %p44
        %s523 = sand.u32 %s60, 1
        %s524 = sand.u32 %s60, 1
        %s525 = smul.addr %s524, 56
        %s526 = scalar_lea.vmem [#allocation2], %s525
        %p527 = pneg %p73
        %p528 = pneg %p70
        %p529 = pneg %p94
        %p530 = pneg %p91
        %p531 = pneg %p115
        %p532 = pneg %p112
        %p533 = pneg %p136
        %p534 = pneg %p133
        %p535 = pneg %p157
        %p536 = pneg %p154
        %p537 = pneg %p178
        %p538 = pneg %p175
        %p539 = pneg %p199
        %p540 = pneg %p196
        %p541 = pneg %p220
        %p542 = pneg %p217
        %p543 = pneg %p241
        %p544 = pneg %p238
        %p545 = pneg %p262
        %p546 = pneg %p259
        %p547 = pneg %p283
        %p548 = pneg %p280
        %p549 = pneg %p304
        %p550 = pneg %p301
        %p551 = pneg %p325
        %p552 = pneg %p322
        %p553 = pneg %p346
        %p554 = pneg %p343
        %p555 = pneg %p372
        %p556 = pneg %p369
        %p557 = scmp.lt.s32.totalorder %s26, 1
        %s558 = scalar_select %p557, %s26, 1
        %s559 = smul.addr %s558, 8
        %s560 = scalar_lea.vmem %s15, %s559
        %p561 = scmp.lt.s32.totalorder %s26, 1
        %s562 = scalar_select %p561, %s26, 1
        %s563 = smul.addr %s562, 8
        %s564 = scalar_lea.vmem %s0, %s563
        %p565 = scmp.lt.s32.totalorder %s26, 1
        %s566 = scalar_select %p565, %s26, 1
        %s567 = smul.addr %s566, 8
        %s568 = scalar_lea.vmem %s15, %s567
        %v569 = vld [vmem:[%s9] sm:$0xff]
        %v570 = vld [vmem:[%s9 + $0x8] sm:$0xff]
        %v571 = vld [vmem:[%s10] sm:$0xff]
        %v572 = vld [vmem:[%s10 + $0x8] sm:$0xff]
        %v573 = vld [vmem:[%s10 + $0x10] sm:$0xff]
        %v574 = vld [vmem:[%s10 + $0x18] sm:$0xff]
        %v575 = vld [vmem:[%s12] sm:$0xff]
        %v576 = vld [vmem:[%s12 + $0x8] sm:$0xff]
        %v577 = vld [vmem:[%s12 + $0x10] sm:$0xff]
        %v578 = vld [vmem:[%s12 + $0x18] sm:$0xff]
        %v579 = vld [vmem:[%s11] sm:$0x1]
        %v580 = vld [vmem:[%s13] sm:$0x1]
        %v581 = vld [vmem:[%s2] sm:$0x1]
        %v582 = vld [vmem:[%s2 + $0x1] sm:$0x1]
        %v583 = vld [vmem:[%s2 + $0x2] sm:$0x1]
        %v584 = vld [vmem:[%s2 + $0x3] sm:$0x1]
        %v585 = vld [vmem:[%s2 + $0x4] sm:$0x1]
        %v586 = vld [vmem:[%s2 + $0x5] sm:$0x1]
        %v587 = vld [vmem:[%s2 + $0x6] sm:$0x1]
        %v588 = vld [vmem:[%s2 + $0x7] sm:$0x1]
        %v589 = vld [vmem:[%s564] sm:$0xff]
        %v590 = vld [vmem:[%s3] sm:$0x1f]
        %v591 = vld [vmem:[%s4] sm:$0x1]
        %v593 = vlaneseq
        %v594 = vshrl.u32 %v593, 7
        %v595 = vsub.s32 0, %v594
        %v596 = vrot.slane %v591, %v595
        %vm598 = vcmask 39936
        %v600 = vsel %vm598, %v589, 0
        %vm602 = vcmask 1044480
        %v604 = vsel %vm602, %v590, 0
        %606 = vmatprep.subr.mxu0 0.0
        %607 = vmatpush1.msra.mxu0 0.0
        %608 = vmatprep.subr.mxu0 0.0
        %609 = vmatpush1.msra.mxu0 0.0
        %610 = vmatprep.subr.mxu0 0.0
        %611 = vmatpush1.msra.mxu0 0.0
        %612 = vmatprep.subr.mxu0 0.0
        %613 = vmatpush1.msra.mxu0 0.0
        %614 = vmatprep.subr.mxu0 0.0
        %615 = vmatpush1.msra.mxu0 0.0
        %616 = vmatprep.subr.mxu0 0.0
        %617 = vmatpush1.msra.mxu0 0.0
        %618 = vmatprep.subr.mxu0 0.0
        %619 = vmatpush1.msra.mxu0 0.0
        %620 = vmatprep.subr.mxu0 0.0
        %621 = vmatpush1.msra.mxu0 0.0
        %622 = vmatprep.subr.mxu0 0.0
        %623 = vmatpush1.msra.mxu0 0.0
        %624 = vmatprep.subr.mxu0 0.0
        %625 = vmatpush1.msra.mxu0 0.0
        %626 = vmatprep.subr.mxu0 0.0
        %627 = vmatpush1.msra.mxu0 0.0
        %628 = vmatprep.subr.mxu0 0.0
        %629 = vmatpush1.msra.mxu0 0.0
        %630 = vmatprep.subr.mxu0 0.0
        %631 = vmatpush1.msra.mxu0 0.0
        %632 = vmatprep.subr.mxu0 0.0
        %633 = vmatpush1.msra.mxu0 0.0
        %634 = vmatprep.subr.mxu0 0.0
        %635 = vmatpush1.msra.mxu0 0.0
        %636 = vmatprep.subr.mxu0 0.0
        %637 = vmatpush1.msra.mxu0 %v604
        %638 = vmatprep.subr.mxu0 0.0
        %639 = vmatpush2.msra.mxu0 0.0
        %640 = vmatprep.subr.mxu0 0.0
        %641 = vmatpush2.msra.mxu0 0.0
        %642 = vmatprep.subr.mxu0 0.0
        %643 = vmatpush2.msra.mxu0 0.0
        %644 = vmatprep.subr.mxu0 0.0
        %645 = vmatpush2.msra.mxu0 0.0
        %646 = vmatprep.subr.mxu0 0.0
        %647 = vmatpush2.msra.mxu0 0.0
        %648 = vmatprep.subr.mxu0 0.0
        %649 = vmatpush2.msra.mxu0 0.0
        %650 = vmatprep.subr.mxu0 0.0
        %651 = vmatpush2.msra.mxu0 0.0
        %652 = vmatprep.subr.mxu0 0.0
        %653 = vmatpush2.msra.mxu0 0.0
        %654 = vmatprep.subr.mxu0 0.0
        %655 = vmatpush2.msra.mxu0 0.0
        %656 = vmatprep.subr.mxu0 0.0
        %657 = vmatpush2.msra.mxu0 0.0
        %658 = vmatprep.subr.mxu0 0.0
        %659 = vmatpush2.msra.mxu0 0.0
        %660 = vmatprep.subr.mxu0 0.0
        %661 = vmatpush2.msra.mxu0 0.0
        %662 = vmatprep.subr.mxu0 0.0
        %663 = vmatpush2.msra.mxu0 0.0
        %664 = vmatprep.subr.mxu0 0.0
        %665 = vmatpush2.msra.mxu0 0.0
        %666 = vmatprep.subr.mxu0 0.0
        %667 = vmatpush2.msra.mxu0 0.0
        %668 = vmatprep.subr.mxu0 0.0
        %669 = vmatpush2.msra.mxu0 0.0
        %670 = vmatprep.mubr.f32.mxu0 0.0
        %671 = vmatmul.mubr.f32.gmra.mxu0 %v600
        %v672 = vpop.f32.mrf.mxu0
        %v673 = vadd.f32 %v596, %v672
        %v674 = vpop.f32.mrf.mxu0
        %675 = vdwg.mxu0
        %v676 = vmul.f32 %v673, 0.909
        %v677 = vxor.u32 %v673, 2147483648
        %v678 = vmul.f32 %v677, 1.442695
        %v679 = vpow.pop %v678
        %v680 = vadd.f32 %v679, 1.0
        %v681 = vrcp.pop %v680
        %v682 = vmul.f32 1.0, %v681
        %v683 = vmul.f32 %v676, %v682
        %v684 = vld [vmem:[%s5] sm:$0xff]
        %v685 = vld [vmem:[%s5 + $0x8] sm:$0xff]
        %v686 = vld [vmem:[%s5 + $0x10] sm:$0xff]
        %v687 = vld [vmem:[%s5 + $0x18] sm:$0xff]
        %v688 = vld [vmem:[%s6] sm:$0x1]
        %v690 = vlaneseq
        %v691 = vshrl.u32 %v690, 7
        %v692 = vsub.s32 0, %v691
        %v693 = vrot.slane %v688, %v692
        %vm695 = vcmask 261120
        %v697 = vsel %vm695, %v683, 0
        %699 = vmatprep.subr.mxu0 0.0
        %700 = vmatpush1.msra.mxu0 0.0
        %701 = vmatprep.subr.mxu0 0.0
        %702 = vmatpush1.msra.mxu0 0.0
        %703 = vmatprep.subr.mxu0 0.0
        %704 = vmatpush1.msra.mxu0 0.0
        %705 = vmatprep.subr.mxu0 0.0
        %706 = vmatpush1.msra.mxu0 0.0
        %707 = vmatprep.subr.mxu0 0.0
        %708 = vmatpush1.msra.mxu0 0.0
        %709 = vmatprep.subr.mxu0 0.0
        %710 = vmatpush1.msra.mxu0 0.0
        %711 = vmatprep.subr.mxu0 0.0
        %712 = vmatpush1.msra.mxu0 0.0
        %713 = vmatprep.subr.mxu0 0.0
        %714 = vmatpush1.msra.mxu0 0.0
        %715 = vmatprep.subr.mxu0 0.0
        %716 = vmatpush1.msra.mxu0 0.0
        %717 = vmatprep.subr.mxu0 0.0
        %718 = vmatpush1.msra.mxu0 0.0
        %719 = vmatprep.subr.mxu0 0.0
        %720 = vmatpush1.msra.mxu0 0.0
        %721 = vmatprep.subr.mxu0 0.0
        %722 = vmatpush1.msra.mxu0 0.0
        %723 = vmatprep.subr.mxu0 0.0
        %724 = vmatpush1.msra.mxu0 %v687
        %725 = vmatprep.subr.mxu0 0.0
        %726 = vmatpush1.msra.mxu0 %v686
        %727 = vmatprep.subr.mxu0 0.0
        %728 = vmatpush1.msra.mxu0 %v685
        %729 = vmatprep.subr.mxu0 0.0
        %730 = vmatpush1.msra.mxu0 %v684
        %731 = vmatprep.subr.mxu0 0.0
        %732 = vmatpush2.msra.mxu0 0.0
        %733 = vmatprep.subr.mxu0 0.0
        %734 = vmatpush2.msra.mxu0 0.0
        %735 = vmatprep.subr.mxu0 0.0
        %736 = vmatpush2.msra.mxu0 0.0
        %737 = vmatprep.subr.mxu0 0.0
        %738 = vmatpush2.msra.mxu0 0.0
        %739 = vmatprep.subr.mxu0 0.0
        %740 = vmatpush2.msra.mxu0 0.0
        %741 = vmatprep.subr.mxu0 0.0
        %742 = vmatpush2.msra.mxu0 0.0
        %743 = vmatprep.subr.mxu0 0.0
        %744 = vmatpush2.msra.mxu0 0.0
        %745 = vmatprep.subr.mxu0 0.0
        %746 = vmatpush2.msra.mxu0 0.0
        %747 = vmatprep.subr.mxu0 0.0
        %748 = vmatpush2.msra.mxu0 0.0
        %749 = vmatprep.subr.mxu0 0.0
        %750 = vmatpush2.msra.mxu0 0.0
        %751 = vmatprep.subr.mxu0 0.0
        %752 = vmatpush2.msra.mxu0 0.0
        %753 = vmatprep.subr.mxu0 0.0
        %754 = vmatpush2.msra.mxu0 0.0
        %755 = vmatprep.subr.mxu0 0.0
        %756 = vmatpush2.msra.mxu0 0.0
        %757 = vmatprep.subr.mxu0 0.0
        %758 = vmatpush2.msra.mxu0 0.0
        %759 = vmatprep.subr.mxu0 0.0
        %760 = vmatpush2.msra.mxu0 0.0
        %761 = vmatprep.subr.mxu0 0.0
        %762 = vmatpush2.msra.mxu0 0.0
        %763 = vmatprep.mubr.f32.mxu0 0.0
        %764 = vmatmul.mubr.f32.gmra.mxu0 %v697
        %v765 = vpop.f32.mrf.mxu0
        %v766 = vadd.f32 %v693, %v765
        %v767 = vpop.f32.mrf.mxu0
        %768 = vdwg.mxu0
        %v769 = vmul.f32 %v766, 0.909
        %v770 = vxor.u32 %v766, 2147483648
        %v771 = vmul.f32 %v770, 1.442695
        %v772 = vpow.pop %v771
        %v773 = vadd.f32 %v772, 1.0
        %v774 = vrcp.pop %v773
        %v775 = vmul.f32 1.0, %v774
        %v776 = vmul.f32 %v769, %v775
        %v777 = vld [vmem:[%s7] sm:$0xff]
        %v778 = vld [vmem:[%s7 + $0x8] sm:$0xff]
        %v779 = vld [vmem:[%s7 + $0x10] sm:$0xff]
        %v780 = vld [vmem:[%s7 + $0x18] sm:$0xff]
        %v781 = vld [vmem:[%s8] sm:$0x1]
        %v783 = vlaneseq
        %v784 = vshrl.u32 %v783, 7
        %v785 = vsub.s32 0, %v784
        %v786 = vrot.slane %v781, %v785
        %v789 = vsel %vm695, %v776, 0
        %791 = vmatprep.subr.mxu0 0.0
        %792 = vmatpush1.msra.mxu0 0.0
        %793 = vmatprep.subr.mxu0 0.0
        %794 = vmatpush1.msra.mxu0 0.0
        %795 = vmatprep.subr.mxu0 0.0
        %796 = vmatpush1.msra.mxu0 0.0
        %797 = vmatprep.subr.mxu0 0.0
        %798 = vmatpush1.msra.mxu0 0.0
        %799 = vmatprep.subr.mxu0 0.0
        %800 = vmatpush1.msra.mxu0 0.0
        %801 = vmatprep.subr.mxu0 0.0
        %802 = vmatpush1.msra.mxu0 0.0
        %803 = vmatprep.subr.mxu0 0.0
        %804 = vmatpush1.msra.mxu0 0.0
        %805 = vmatprep.subr.mxu0 0.0
        %806 = vmatpush1.msra.mxu0 0.0
        %807 = vmatprep.subr.mxu0 0.0
        %808 = vmatpush1.msra.mxu0 0.0
        %809 = vmatprep.subr.mxu0 0.0
        %810 = vmatpush1.msra.mxu0 0.0
        %811 = vmatprep.subr.mxu0 0.0
        %812 = vmatpush1.msra.mxu0 0.0
        %813 = vmatprep.subr.mxu0 0.0
        %814 = vmatpush1.msra.mxu0 0.0
        %815 = vmatprep.subr.mxu0 0.0
        %816 = vmatpush1.msra.mxu0 %v780
        %817 = vmatprep.subr.mxu0 0.0
        %818 = vmatpush1.msra.mxu0 %v779
        %819 = vmatprep.subr.mxu0 0.0
        %820 = vmatpush1.msra.mxu0 %v778
        %821 = vmatprep.subr.mxu0 0.0
        %822 = vmatpush1.msra.mxu0 %v777
        %823 = vmatprep.subr.mxu0 0.0
        %824 = vmatpush2.msra.mxu0 0.0
        %825 = vmatprep.subr.mxu0 0.0
        %826 = vmatpush2.msra.mxu0 0.0
        %827 = vmatprep.subr.mxu0 0.0
        %828 = vmatpush2.msra.mxu0 0.0
        %829 = vmatprep.subr.mxu0 0.0
        %830 = vmatpush2.msra.mxu0 0.0
        %831 = vmatprep.subr.mxu0 0.0
        %832 = vmatpush2.msra.mxu0 0.0
        %833 = vmatprep.subr.mxu0 0.0
        %834 = vmatpush2.msra.mxu0 0.0
        %835 = vmatprep.subr.mxu0 0.0
        %836 = vmatpush2.msra.mxu0 0.0
        %837 = vmatprep.subr.mxu0 0.0
        %838 = vmatpush2.msra.mxu0 0.0
        %839 = vmatprep.subr.mxu0 0.0
        %840 = vmatpush2.msra.mxu0 0.0
        %841 = vmatprep.subr.mxu0 0.0
        %842 = vmatpush2.msra.mxu0 0.0
        %843 = vmatprep.subr.mxu0 0.0
        %844 = vmatpush2.msra.mxu0 0.0
        %845 = vmatprep.subr.mxu0 0.0
        %846 = vmatpush2.msra.mxu0 0.0
        %847 = vmatprep.subr.mxu0 0.0
        %848 = vmatpush2.msra.mxu0 0.0
        %849 = vmatprep.subr.mxu0 0.0
        %850 = vmatpush2.msra.mxu0 0.0
        %851 = vmatprep.subr.mxu0 0.0
        %852 = vmatpush2.msra.mxu0 0.0
        %853 = vmatprep.subr.mxu0 0.0
        %854 = vmatpush2.msra.mxu0 0.0
        %855 = vmatprep.mubr.f32.mxu0 0.0
        %856 = vmatmul.mubr.f32.gmra.mxu0 %v789
        %v857 = vpop.f32.mrf.mxu0
        %v858 = vadd.f32 %v786, %v857
        %v859 = vpop.f32.mrf.mxu0
        %860 = vdwg.mxu0
        %v861 = vld [vmem:[%s513] sm:$0xff]
        %v862 = vlaneseq
        %v863 = vshrl.u32 %v862, 7
        %v864 = vsub.s32 0, %v863
        %v865 = vrot.slane %v581, %v864
        %vm866 = vcmask 130048
        %v868 = vsel %vm866, %v858, 0
        %870 = vmatprep.subr.mxu0 0.0
        %871 = vmatpush1.msra.mxu0 0.0
        %872 = vmatprep.subr.mxu0 0.0
        %873 = vmatpush1.msra.mxu0 0.0
        %874 = vmatprep.subr.mxu0 0.0
        %875 = vmatpush1.msra.mxu0 0.0
        %876 = vmatprep.subr.mxu0 0.0
        %877 = vmatpush1.msra.mxu0 0.0
        %878 = vmatprep.subr.mxu0 0.0
        %879 = vmatpush1.msra.mxu0 0.0
        %880 = vmatprep.subr.mxu0 0.0
        %881 = vmatpush1.msra.mxu0 0.0
        %882 = vmatprep.subr.mxu0 0.0
        %883 = vmatpush1.msra.mxu0 0.0
        %884 = vmatprep.subr.mxu0 0.0
        %885 = vmatpush1.msra.mxu0 0.0
        %886 = vmatprep.subr.mxu0 0.0
        %887 = vmatpush1.msra.mxu0 0.0
        %888 = vmatprep.subr.mxu0 0.0
        %889 = vmatpush1.msra.mxu0 0.0
        %890 = vmatprep.subr.mxu0 0.0
        %891 = vmatpush1.msra.mxu0 0.0
        %892 = vmatprep.subr.mxu0 0.0
        %893 = vmatpush1.msra.mxu0 0.0
        %894 = vmatprep.subr.mxu0 0.0
        %895 = vmatpush1.msra.mxu0 0.0
        %896 = vmatprep.subr.mxu0 0.0
        %897 = vmatpush1.msra.mxu0 0.0
        %898 = vmatprep.subr.mxu0 0.0
        %899 = vmatpush1.msra.mxu0 %v570
        %900 = vmatprep.subr.mxu0 0.0
        %901 = vmatpush1.msra.mxu0 %v569
        %902 = vmatprep.subr.mxu0 0.0
        %903 = vmatpush2.msra.mxu0 0.0
        %904 = vmatprep.subr.mxu0 0.0
        %905 = vmatpush2.msra.mxu0 0.0
        %906 = vmatprep.subr.mxu0 0.0
        %907 = vmatpush2.msra.mxu0 0.0
        %908 = vmatprep.subr.mxu0 0.0
        %909 = vmatpush2.msra.mxu0 0.0
        %910 = vmatprep.subr.mxu0 0.0
        %911 = vmatpush2.msra.mxu0 0.0
        %912 = vmatprep.subr.mxu0 0.0
        %913 = vmatpush2.msra.mxu0 0.0
        %914 = vmatprep.subr.mxu0 0.0
        %915 = vmatpush2.msra.mxu0 0.0
        %916 = vmatprep.subr.mxu0 0.0
        %917 = vmatpush2.msra.mxu0 0.0
        %918 = vmatprep.subr.mxu0 0.0
        %919 = vmatpush2.msra.mxu0 0.0
        %920 = vmatprep.subr.mxu0 0.0
        %921 = vmatpush2.msra.mxu0 0.0
        %922 = vmatprep.subr.mxu0 0.0
        %923 = vmatpush2.msra.mxu0 0.0
        %924 = vmatprep.subr.mxu0 0.0
        %925 = vmatpush2.msra.mxu0 0.0
        %926 = vmatprep.subr.mxu0 0.0
        %927 = vmatpush2.msra.mxu0 0.0
        %928 = vmatprep.subr.mxu0 0.0
        %929 = vmatpush2.msra.mxu0 0.0
        %930 = vmatprep.subr.mxu0 0.0
        %931 = vmatpush2.msra.mxu0 0.0
        %932 = vmatprep.subr.mxu0 0.0
        %933 = vmatpush2.msra.mxu0 0.0
        %934 = vmatprep.mubr.f32.mxu0 0.0
        %935 = vmatmul.mubr.f32.gmra.mxu0 %v868
        %v936 = vpop.f32.mrf.mxu0
        %v937 = vadd.f32 %v865, %v936
        %v938 = vpop.f32.mrf.mxu0
        %939 = vdwg.mxu0
        %v940 = vmul.f32 %v937, 0.909
        %v941 = vxor.u32 %v937, 2147483648
        %v942 = vmul.f32 %v941, 1.442695
        %v943 = vpow.pop %v942
        %v944 = vadd.f32 %v943, 1.0
        %v945 = vrcp.pop %v944
        %v946 = vmul.f32 1.0, %v945
        %v947 = vmul.f32 %v940, %v946
        %v949 = vlaneseq
        %v950 = vshrl.u32 %v949, 7
        %v951 = vsub.s32 0, %v950
        %v952 = vrot.slane %v579, %v951
        %v955 = vsel %vm695, %v947, 0
        %957 = vmatprep.subr.mxu0 0.0
        %958 = vmatpush1.msra.mxu0 0.0
        %959 = vmatprep.subr.mxu0 0.0
        %960 = vmatpush1.msra.mxu0 0.0
        %961 = vmatprep.subr.mxu0 0.0
        %962 = vmatpush1.msra.mxu0 0.0
        %963 = vmatprep.subr.mxu0 0.0
        %964 = vmatpush1.msra.mxu0 0.0
        %965 = vmatprep.subr.mxu0 0.0
        %966 = vmatpush1.msra.mxu0 0.0
        %967 = vmatprep.subr.mxu0 0.0
        %968 = vmatpush1.msra.mxu0 0.0
        %969 = vmatprep.subr.mxu0 0.0
        %970 = vmatpush1.msra.mxu0 0.0
        %971 = vmatprep.subr.mxu0 0.0
        %972 = vmatpush1.msra.mxu0 0.0
        %973 = vmatprep.subr.mxu0 0.0
        %974 = vmatpush1.msra.mxu0 0.0
        %975 = vmatprep.subr.mxu0 0.0
        %976 = vmatpush1.msra.mxu0 0.0
        %977 = vmatprep.subr.mxu0 0.0
        %978 = vmatpush1.msra.mxu0 0.0
        %979 = vmatprep.subr.mxu0 0.0
        %980 = vmatpush1.msra.mxu0 0.0
        %981 = vmatprep.subr.mxu0 0.0
        %982 = vmatpush1.msra.mxu0 %v574
        %983 = vmatprep.subr.mxu0 0.0
        %984 = vmatpush1.msra.mxu0 %v573
        %985 = vmatprep.subr.mxu0 0.0
        %986 = vmatpush1.msra.mxu0 %v572
        %987 = vmatprep.subr.mxu0 0.0
        %988 = vmatpush1.msra.mxu0 %v571
        %989 = vmatprep.subr.mxu0 0.0
        %990 = vmatpush2.msra.mxu0 0.0
        %991 = vmatprep.subr.mxu0 0.0
        %992 = vmatpush2.msra.mxu0 0.0
        %993 = vmatprep.subr.mxu0 0.0
        %994 = vmatpush2.msra.mxu0 0.0
        %995 = vmatprep.subr.mxu0 0.0
        %996 = vmatpush2.msra.mxu0 0.0
        %997 = vmatprep.subr.mxu0 0.0
        %998 = vmatpush2.msra.mxu0 0.0
        %999 = vmatprep.subr.mxu0 0.0
        %1000 = vmatpush2.msra.mxu0 0.0
        %1001 = vmatprep.subr.mxu0 0.0
        %1002 = vmatpush2.msra.mxu0 0.0
        %1003 = vmatprep.subr.mxu0 0.0
        %1004 = vmatpush2.msra.mxu0 0.0
        %1005 = vmatprep.subr.mxu0 0.0
        %1006 = vmatpush2.msra.mxu0 0.0
        %1007 = vmatprep.subr.mxu0 0.0
        %1008 = vmatpush2.msra.mxu0 0.0
        %1009 = vmatprep.subr.mxu0 0.0
        %1010 = vmatpush2.msra.mxu0 0.0
        %1011 = vmatprep.subr.mxu0 0.0
        %1012 = vmatpush2.msra.mxu0 0.0
        %1013 = vmatprep.subr.mxu0 0.0
        %1014 = vmatpush2.msra.mxu0 0.0
        %1015 = vmatprep.subr.mxu0 0.0
        %1016 = vmatpush2.msra.mxu0 0.0
        %1017 = vmatprep.subr.mxu0 0.0
        %1018 = vmatpush2.msra.mxu0 0.0
        %1019 = vmatprep.subr.mxu0 0.0
        %1020 = vmatpush2.msra.mxu0 0.0
        %1021 = vmatprep.mubr.f32.mxu0 0.0
        %1022 = vmatmul.mubr.f32.gmra.mxu0 %v955
        %v1023 = vpop.f32.mrf.mxu0
        %v1024 = vadd.f32 %v952, %v1023
        %v1025 = vpop.f32.mrf.mxu0
        %1026 = vdwg.mxu0
        %v1027 = vmul.f32 %v1024, 0.909
        %v1028 = vxor.u32 %v1024, 2147483648
        %v1029 = vmul.f32 %v1028, 1.442695
        %v1030 = vpow.pop %v1029
        %v1031 = vadd.f32 %v1030, 1.0
        %v1032 = vrcp.pop %v1031
        %v1033 = vmul.f32 1.0, %v1032
        %v1034 = vmul.f32 %v1027, %v1033
        %v1036 = vlaneseq
        %v1037 = vshrl.u32 %v1036, 7
        %v1038 = vsub.s32 0, %v1037
        %v1039 = vrot.slane %v580, %v1038
        %v1042 = vsel %vm695, %v1034, 0
        %1044 = vmatprep.subr.mxu0 0.0
        %1045 = vmatpush1.msra.mxu0 0.0
        %1046 = vmatprep.subr.mxu0 0.0
        %1047 = vmatpush1.msra.mxu0 0.0
        %1048 = vmatprep.subr.mxu0 0.0
        %1049 = vmatpush1.msra.mxu0 0.0
        %1050 = vmatprep.subr.mxu0 0.0
        %1051 = vmatpush1.msra.mxu0 0.0
        %1052 = vmatprep.subr.mxu0 0.0
        %1053 = vmatpush1.msra.mxu0 0.0
        %1054 = vmatprep.subr.mxu0 0.0
        %1055 = vmatpush1.msra.mxu0 0.0
        %1056 = vmatprep.subr.mxu0 0.0
        %1057 = vmatpush1.msra.mxu0 0.0
        %1058 = vmatprep.subr.mxu0 0.0
        %1059 = vmatpush1.msra.mxu0 0.0
        %1060 = vmatprep.subr.mxu0 0.0
        %1061 = vmatpush1.msra.mxu0 0.0
        %1062 = vmatprep.subr.mxu0 0.0
        %1063 = vmatpush1.msra.mxu0 0.0
        %1064 = vmatprep.subr.mxu0 0.0
        %1065 = vmatpush1.msra.mxu0 0.0
        %1066 = vmatprep.subr.mxu0 0.0
        %1067 = vmatpush1.msra.mxu0 0.0
        %1068 = vmatprep.subr.mxu0 0.0
        %1069 = vmatpush1.msra.mxu0 %v578
        %1070 = vmatprep.subr.mxu0 0.0
        %1071 = vmatpush1.msra.mxu0 %v577
        %1072 = vmatprep.subr.mxu0 0.0
        %1073 = vmatpush1.msra.mxu0 %v576
        %1074 = vmatprep.subr.mxu0 0.0
        %1075 = vmatpush1.msra.mxu0 %v575
        %1076 = vmatprep.subr.mxu0 0.0
        %1077 = vmatpush2.msra.mxu0 0.0
        %1078 = vmatprep.subr.mxu0 0.0
        %1079 = vmatpush2.msra.mxu0 0.0
        %1080 = vmatprep.subr.mxu0 0.0
        %1081 = vmatpush2.msra.mxu0 0.0
        %1082 = vmatprep.subr.mxu0 0.0
        %1083 = vmatpush2.msra.mxu0 0.0
        %1084 = vmatprep.subr.mxu0 0.0
        %1085 = vmatpush2.msra.mxu0 0.0
        %1086 = vmatprep.subr.mxu0 0.0
        %1087 = vmatpush2.msra.mxu0 0.0
        %1088 = vmatprep.subr.mxu0 0.0
        %1089 = vmatpush2.msra.mxu0 0.0
        %1090 = vmatprep.subr.mxu0 0.0
        %1091 = vmatpush2.msra.mxu0 0.0
        %1092 = vmatprep.subr.mxu0 0.0
        %1093 = vmatpush2.msra.mxu0 0.0
        %1094 = vmatprep.subr.mxu0 0.0
        %1095 = vmatpush2.msra.mxu0 0.0
        %1096 = vmatprep.subr.mxu0 0.0
        %1097 = vmatpush2.msra.mxu0 0.0
        %1098 = vmatprep.subr.mxu0 0.0
        %1099 = vmatpush2.msra.mxu0 0.0
        %1100 = vmatprep.subr.mxu0 0.0
        %1101 = vmatpush2.msra.mxu0 0.0
        %1102 = vmatprep.subr.mxu0 0.0
        %1103 = vmatpush2.msra.mxu0 0.0
        %1104 = vmatprep.subr.mxu0 0.0
        %1105 = vmatpush2.msra.mxu0 0.0
        %1106 = vmatprep.subr.mxu0 0.0
        %1107 = vmatpush2.msra.mxu0 0.0
        %1108 = vmatprep.mubr.f32.mxu0 0.0
        %1109 = vmatmul.mubr.f32.gmra.mxu0 %v1042
        %v1110 = vpop.f32.mrf.mxu0
        %v1111 = vadd.f32 %v1039, %v1110
        %v1112 = vpop.f32.mrf.mxu0
        %1113 = vdwg.mxu0
        %v1114 = vtanh.pop %v1111
        %1116 = vset.pattern.permute.xlu0 0
        %1117 = vperm.xlu0 %1116, %v861
        %v1118 = vpop.permute.xlu0 %1117
        %v1120 = vmul.f32 %v1114, %v1118
        %1121 = vset.pattern.permute.xlu0 1
        %1122 = vperm.xlu0 %1121, %v861
        %v1123 = vpop.permute.xlu0 %1122
        %v1125 = vmul.f32 %v1114, %v1123
        %1127 = vrot.lane.b32.xlu0 %v1125, 112
        %v1128 = vpop.permute.xlu0 %1127
        %v1130 = vadd.f32 %v1120, %v1128
        %1131 = vset.pattern.permute.xlu0 2
        %1132 = vperm.xlu0 %1131, %v861
        %v1133 = vpop.permute.xlu0 %1132
        %v1135 = vmul.f32 %v1114, %v1133
        %1137 = vrot.lane.b32.xlu0 %v1135, 96
        %v1138 = vpop.permute.xlu0 %1137
        %v1140 = vadd.f32 %v1130, %v1138
        %1141 = vset.pattern.permute.xlu0 3
        %1142 = vperm.xlu0 %1141, %v861
        %v1143 = vpop.permute.xlu0 %1142
        %v1145 = vmul.f32 %v1114, %v1143
        %1147 = vrot.lane.b32.xlu0 %v1145, 80
        %v1148 = vpop.permute.xlu0 %1147
        %v1150 = vadd.f32 %v1140, %v1148
        %1151 = vset.pattern.permute.xlu0 4
        %1152 = vperm.xlu0 %1151, %v861
        %v1153 = vpop.permute.xlu0 %1152
        %v1155 = vmul.f32 %v1114, %v1153
        %1157 = vrot.lane.b32.xlu0 %v1155, 64
        %v1158 = vpop.permute.xlu0 %1157
        %v1160 = vadd.f32 %v1150, %v1158
        %v1161 = vmul.f32 %v858, 2.0
        %v1162 = vsub.f32 %v1161, %v858
        %v1163 = vadd.f32 %v1162, %v1160
        %v1164 = vlaneseq
        %v1165 = vshrl.u32 %v1164, 7
        %v1166 = vsub.s32 0, %v1165
        %v1167 = vrot.slane %v582, %v1166
        %v1169 = vsel %vm866, %v1163, 0
        %1171 = vmatprep.subr.mxu0 0.0
        %1172 = vmatpush1.msra.mxu0 0.0
        %1173 = vmatprep.subr.mxu0 0.0
        %1174 = vmatpush1.msra.mxu0 0.0
        %1175 = vmatprep.subr.mxu0 0.0
        %1176 = vmatpush1.msra.mxu0 0.0
        %1177 = vmatprep.subr.mxu0 0.0
        %1178 = vmatpush1.msra.mxu0 0.0
        %1179 = vmatprep.subr.mxu0 0.0
        %1180 = vmatpush1.msra.mxu0 0.0
        %1181 = vmatprep.subr.mxu0 0.0
        %1182 = vmatpush1.msra.mxu0 0.0
        %1183 = vmatprep.subr.mxu0 0.0
        %1184 = vmatpush1.msra.mxu0 0.0
        %1185 = vmatprep.subr.mxu0 0.0
        %1186 = vmatpush1.msra.mxu0 0.0
        %1187 = vmatprep.subr.mxu0 0.0
        %1188 = vmatpush1.msra.mxu0 0.0
        %1189 = vmatprep.subr.mxu0 0.0
        %1190 = vmatpush1.msra.mxu0 0.0
        %1191 = vmatprep.subr.mxu0 0.0
        %1192 = vmatpush1.msra.mxu0 0.0
        %1193 = vmatprep.subr.mxu0 0.0
        %1194 = vmatpush1.msra.mxu0 0.0
        %1195 = vmatprep.subr.mxu0 0.0
        %1196 = vmatpush1.msra.mxu0 0.0
        %1197 = vmatprep.subr.mxu0 0.0
        %1198 = vmatpush1.msra.mxu0 0.0
        %1199 = vmatprep.subr.mxu0 0.0
        %1200 = vmatpush1.msra.mxu0 %v570
        %1201 = vmatprep.subr.mxu0 0.0
        %1202 = vmatpush1.msra.mxu0 %v569
        %1203 = vmatprep.subr.mxu0 0.0
        %1204 = vmatpush2.msra.mxu0 0.0
        %1205 = vmatprep.subr.mxu0 0.0
        %1206 = vmatpush2.msra.mxu0 0.0
        %1207 = vmatprep.subr.mxu0 0.0
        %1208 = vmatpush2.msra.mxu0 0.0
        %1209 = vmatprep.subr.mxu0 0.0
        %1210 = vmatpush2.msra.mxu0 0.0
        %1211 = vmatprep.subr.mxu0 0.0
        %1212 = vmatpush2.msra.mxu0 0.0
        %1213 = vmatprep.subr.mxu0 0.0
        %1214 = vmatpush2.msra.mxu0 0.0
        %1215 = vmatprep.subr.mxu0 0.0
        %1216 = vmatpush2.msra.mxu0 0.0
        %1217 = vmatprep.subr.mxu0 0.0
        %1218 = vmatpush2.msra.mxu0 0.0
        %1219 = vmatprep.subr.mxu0 0.0
        %1220 = vmatpush2.msra.mxu0 0.0
        %1221 = vmatprep.subr.mxu0 0.0
        %1222 = vmatpush2.msra.mxu0 0.0
        %1223 = vmatprep.subr.mxu0 0.0
        %1224 = vmatpush2.msra.mxu0 0.0
        %1225 = vmatprep.subr.mxu0 0.0
        %1226 = vmatpush2.msra.mxu0 0.0
        %1227 = vmatprep.subr.mxu0 0.0
        %1228 = vmatpush2.msra.mxu0 0.0
        %1229 = vmatprep.subr.mxu0 0.0
        %1230 = vmatpush2.msra.mxu0 0.0
        %1231 = vmatprep.subr.mxu0 0.0
        %1232 = vmatpush2.msra.mxu0 0.0
        %1233 = vmatprep.subr.mxu0 0.0
        %1234 = vmatpush2.msra.mxu0 0.0
        %1235 = vmatprep.mubr.f32.mxu0 0.0
        %1236 = vmatmul.mubr.f32.gmra.mxu0 %v1169
        %v1237 = vpop.f32.mrf.mxu0
        %v1238 = vadd.f32 %v1167, %v1237
        %v1239 = vpop.f32.mrf.mxu0
        %1240 = vdwg.mxu0
        %v1241 = vmul.f32 %v1238, 0.909
        %v1242 = vxor.u32 %v1238, 2147483648
        %v1243 = vmul.f32 %v1242, 1.442695
        %v1244 = vpow.pop %v1243
        %v1245 = vadd.f32 %v1244, 1.0
        %v1246 = vrcp.pop %v1245
        %v1247 = vmul.f32 1.0, %v1246
        %v1248 = vmul.f32 %v1241, %v1247
        %v1250 = vsel %vm695, %v1248, 0
        %1252 = vmatprep.subr.mxu0 0.0
        %1253 = vmatpush1.msra.mxu0 0.0
        %1254 = vmatprep.subr.mxu0 0.0
        %1255 = vmatpush1.msra.mxu0 0.0
        %1256 = vmatprep.subr.mxu0 0.0
        %1257 = vmatpush1.msra.mxu0 0.0
        %1258 = vmatprep.subr.mxu0 0.0
        %1259 = vmatpush1.msra.mxu0 0.0
        %1260 = vmatprep.subr.mxu0 0.0
        %1261 = vmatpush1.msra.mxu0 0.0
        %1262 = vmatprep.subr.mxu0 0.0
        %1263 = vmatpush1.msra.mxu0 0.0
        %1264 = vmatprep.subr.mxu0 0.0
        %1265 = vmatpush1.msra.mxu0 0.0
        %1266 = vmatprep.subr.mxu0 0.0
        %1267 = vmatpush1.msra.mxu0 0.0
        %1268 = vmatprep.subr.mxu0 0.0
        %1269 = vmatpush1.msra.mxu0 0.0
        %1270 = vmatprep.subr.mxu0 0.0
        %1271 = vmatpush1.msra.mxu0 0.0
        %1272 = vmatprep.subr.mxu0 0.0
        %1273 = vmatpush1.msra.mxu0 0.0
        %1274 = vmatprep.subr.mxu0 0.0
        %1275 = vmatpush1.msra.mxu0 0.0
        %1276 = vmatprep.subr.mxu0 0.0
        %1277 = vmatpush1.msra.mxu0 %v574
        %1278 = vmatprep.subr.mxu0 0.0
        %1279 = vmatpush1.msra.mxu0 %v573
        %1280 = vmatprep.subr.mxu0 0.0
        %1281 = vmatpush1.msra.mxu0 %v572
        %1282 = vmatprep.subr.mxu0 0.0
        %1283 = vmatpush1.msra.mxu0 %v571
        %1284 = vmatprep.subr.mxu0 0.0
        %1285 = vmatpush2.msra.mxu0 0.0
        %1286 = vmatprep.subr.mxu0 0.0
        %1287 = vmatpush2.msra.mxu0 0.0
        %1288 = vmatprep.subr.mxu0 0.0
        %1289 = vmatpush2.msra.mxu0 0.0
        %1290 = vmatprep.subr.mxu0 0.0
        %1291 = vmatpush2.msra.mxu0 0.0
        %1292 = vmatprep.subr.mxu0 0.0
        %1293 = vmatpush2.msra.mxu0 0.0
        %1294 = vmatprep.subr.mxu0 0.0
        %1295 = vmatpush2.msra.mxu0 0.0
        %1296 = vmatprep.subr.mxu0 0.0
        %1297 = vmatpush2.msra.mxu0 0.0
        %1298 = vmatprep.subr.mxu0 0.0
        %1299 = vmatpush2.msra.mxu0 0.0
        %1300 = vmatprep.subr.mxu0 0.0
        %1301 = vmatpush2.msra.mxu0 0.0
        %1302 = vmatprep.subr.mxu0 0.0
        %1303 = vmatpush2.msra.mxu0 0.0
        %1304 = vmatprep.subr.mxu0 0.0
        %1305 = vmatpush2.msra.mxu0 0.0
        %1306 = vmatprep.subr.mxu0 0.0
        %1307 = vmatpush2.msra.mxu0 0.0
        %1308 = vmatprep.subr.mxu0 0.0
        %1309 = vmatpush2.msra.mxu0 0.0
        %1310 = vmatprep.subr.mxu0 0.0
        %1311 = vmatpush2.msra.mxu0 0.0
        %1312 = vmatprep.subr.mxu0 0.0
        %1313 = vmatpush2.msra.mxu0 0.0
        %1314 = vmatprep.subr.mxu0 0.0
        %1315 = vmatpush2.msra.mxu0 0.0
        %1316 = vmatprep.mubr.f32.mxu0 0.0
        %1317 = vmatmul.mubr.f32.gmra.mxu0 %v1250
        %v1318 = vpop.f32.mrf.mxu0
        %v1319 = vadd.f32 %v952, %v1318
        %v1320 = vpop.f32.mrf.mxu0
        %1321 = vdwg.mxu0
        %v1322 = vmul.f32 %v1319, 0.909
        %v1323 = vxor.u32 %v1319, 2147483648
        %v1324 = vmul.f32 %v1323, 1.442695
        %v1325 = vpow.pop %v1324
        %v1326 = vadd.f32 %v1325, 1.0
        %v1327 = vrcp.pop %v1326
        %v1328 = vmul.f32 1.0, %v1327
        %v1329 = vmul.f32 %v1322, %v1328
        %v1331 = vsel %vm695, %v1329, 0
        %1333 = vmatprep.subr.mxu0 0.0
        %1334 = vmatpush1.msra.mxu0 0.0
        %1335 = vmatprep.subr.mxu0 0.0
        %1336 = vmatpush1.msra.mxu0 0.0
        %1337 = vmatprep.subr.mxu0 0.0
        %1338 = vmatpush1.msra.mxu0 0.0
        %1339 = vmatprep.subr.mxu0 0.0
        %1340 = vmatpush1.msra.mxu0 0.0
        %1341 = vmatprep.subr.mxu0 0.0
        %1342 = vmatpush1.msra.mxu0 0.0
        %1343 = vmatprep.subr.mxu0 0.0
        %1344 = vmatpush1.msra.mxu0 0.0
        %1345 = vmatprep.subr.mxu0 0.0
        %1346 = vmatpush1.msra.mxu0 0.0
        %1347 = vmatprep.subr.mxu0 0.0
        %1348 = vmatpush1.msra.mxu0 0.0
        %1349 = vmatprep.subr.mxu0 0.0
        %1350 = vmatpush1.msra.mxu0 0.0
        %1351 = vmatprep.subr.mxu0 0.0
        %1352 = vmatpush1.msra.mxu0 0.0
        %1353 = vmatprep.subr.mxu0 0.0
        %1354 = vmatpush1.msra.mxu0 0.0
        %1355 = vmatprep.subr.mxu0 0.0
        %1356 = vmatpush1.msra.mxu0 0.0
        %1357 = vmatprep.subr.mxu0 0.0
        %1358 = vmatpush1.msra.mxu0 %v578
        %1359 = vmatprep.subr.mxu0 0.0
        %1360 = vmatpush1.msra.mxu0 %v577
        %1361 = vmatprep.subr.mxu0 0.0
        %1362 = vmatpush1.msra.mxu0 %v576
        %1363 = vmatprep.subr.mxu0 0.0
        %1364 = vmatpush1.msra.mxu0 %v575
        %1365 = vmatprep.subr.mxu0 0.0
        %1366 = vmatpush2.msra.mxu0 0.0
        %1367 = vmatprep.subr.mxu0 0.0
        %1368 = vmatpush2.msra.mxu0 0.0
        %1369 = vmatprep.subr.mxu0 0.0
        %1370 = vmatpush2.msra.mxu0 0.0
        %1371 = vmatprep.subr.mxu0 0.0
        %1372 = vmatpush2.msra.mxu0 0.0
        %1373 = vmatprep.subr.mxu0 0.0
        %1374 = vmatpush2.msra.mxu0 0.0
        %1375 = vmatprep.subr.mxu0 0.0
        %1376 = vmatpush2.msra.mxu0 0.0
        %1377 = vmatprep.subr.mxu0 0.0
        %1378 = vmatpush2.msra.mxu0 0.0
        %1379 = vmatprep.subr.mxu0 0.0
        %1380 = vmatpush2.msra.mxu0 0.0
        %1381 = vmatprep.subr.mxu0 0.0
        %1382 = vmatpush2.msra.mxu0 0.0
        %1383 = vmatprep.subr.mxu0 0.0
        %1384 = vmatpush2.msra.mxu0 0.0
        %1385 = vmatprep.subr.mxu0 0.0
        %1386 = vmatpush2.msra.mxu0 0.0
        %1387 = vmatprep.subr.mxu0 0.0
        %1388 = vmatpush2.msra.mxu0 0.0
        %1389 = vmatprep.subr.mxu0 0.0
        %1390 = vmatpush2.msra.mxu0 0.0
        %1391 = vmatprep.subr.mxu0 0.0
        %1392 = vmatpush2.msra.mxu0 0.0
        %1393 = vmatprep.subr.mxu0 0.0
        %1394 = vmatpush2.msra.mxu0 0.0
        %1395 = vmatprep.subr.mxu0 0.0
        %1396 = vmatpush2.msra.mxu0 0.0
        %1397 = vmatprep.mubr.f32.mxu0 0.0
        %1398 = vmatmul.mubr.f32.gmra.mxu0 %v1331
        %v1399 = vpop.f32.mrf.mxu0
        %v1400 = vadd.f32 %v1039, %v1399
        %v1401 = vpop.f32.mrf.mxu0
        %1402 = vdwg.mxu0
        %v1403 = vtanh.pop %v1400
        %v1404 = vmul.f32 %v1403, %v1118
        %v1405 = vmul.f32 %v1403, %v1123
        %1407 = vrot.lane.b32.xlu0 %v1405, 112
        %v1408 = vpop.permute.xlu0 %1407
        %v1410 = vadd.f32 %v1404, %v1408
        %v1411 = vmul.f32 %v1403, %v1133
        %1413 = vrot.lane.b32.xlu0 %v1411, 96
        %v1414 = vpop.permute.xlu0 %1413
        %v1416 = vadd.f32 %v1410, %v1414
        %v1417 = vmul.f32 %v1403, %v1143
        %1419 = vrot.lane.b32.xlu0 %v1417, 80
        %v1420 = vpop.permute.xlu0 %1419
        %v1422 = vadd.f32 %v1416, %v1420
        %v1423 = vmul.f32 %v1403, %v1153
        %1425 = vrot.lane.b32.xlu0 %v1423, 64
        %v1426 = vpop.permute.xlu0 %1425
        %v1428 = vadd.f32 %v1422, %v1426
        %v1429 = vadd.f32 %v1160, %v1428
        %v1430 = vmul.f32 %v1429, 0.5
        %v1431 = vadd.f32 %v858, %v1430
        %v1432 = vmul.f32 %v1431, 2.0
        %v1433 = vsub.f32 %v1432, %v1163
        %v1434 = vadd.f32 %v1433, %v1428
        %s1435 = scalar_lea.vmem %s513, 8 [#allocation2]
        %v1436 = vld [vmem:[%s1435] sm:$0xff]
        %v1437 = vlaneseq
        %v1438 = vshrl.u32 %v1437, 7
        %v1439 = vsub.s32 0, %v1438
        %v1440 = vrot.slane %v583, %v1439
        %v1442 = vsel %vm866, %v1434, 0
        %1444 = vmatprep.subr.mxu0 0.0
        %1445 = vmatpush1.msra.mxu0 0.0
        %1446 = vmatprep.subr.mxu0 0.0
        %1447 = vmatpush1.msra.mxu0 0.0
        %1448 = vmatprep.subr.mxu0 0.0
        %1449 = vmatpush1.msra.mxu0 0.0
        %1450 = vmatprep.subr.mxu0 0.0
        %1451 = vmatpush1.msra.mxu0 0.0
        %1452 = vmatprep.subr.mxu0 0.0
        %1453 = vmatpush1.msra.mxu0 0.0
        %1454 = vmatprep.subr.mxu0 0.0
        %1455 = vmatpush1.msra.mxu0 0.0
        %1456 = vmatprep.subr.mxu0 0.0
        %1457 = vmatpush1.msra.mxu0 0.0
        %1458 = vmatprep.subr.mxu0 0.0
        %1459 = vmatpush1.msra.mxu0 0.0
        %1460 = vmatprep.subr.mxu0 0.0
        %1461 = vmatpush1.msra.mxu0 0.0
        %1462 = vmatprep.subr.mxu0 0.0
        %1463 = vmatpush1.msra.mxu0 0.0
        %1464 = vmatprep.subr.mxu0 0.0
        %1465 = vmatpush1.msra.mxu0 0.0
        %1466 = vmatprep.subr.mxu0 0.0
        %1467 = vmatpush1.msra.mxu0 0.0
        %1468 = vmatprep.subr.mxu0 0.0
        %1469 = vmatpush1.msra.mxu0 0.0
        %1470 = vmatprep.subr.mxu0 0.0
        %1471 = vmatpush1.msra.mxu0 0.0
        %1472 = vmatprep.subr.mxu0 0.0
        %1473 = vmatpush1.msra.mxu0 %v570
        %1474 = vmatprep.subr.mxu0 0.0
        %1475 = vmatpush1.msra.mxu0 %v569
        %1476 = vmatprep.subr.mxu0 0.0
        %1477 = vmatpush2.msra.mxu0 0.0
        %1478 = vmatprep.subr.mxu0 0.0
        %1479 = vmatpush2.msra.mxu0 0.0
        %1480 = vmatprep.subr.mxu0 0.0
        %1481 = vmatpush2.msra.mxu0 0.0
        %1482 = vmatprep.subr.mxu0 0.0
        %1483 = vmatpush2.msra.mxu0 0.0
        %1484 = vmatprep.subr.mxu0 0.0
        %1485 = vmatpush2.msra.mxu0 0.0
        %1486 = vmatprep.subr.mxu0 0.0
        %1487 = vmatpush2.msra.mxu0 0.0
        %1488 = vmatprep.subr.mxu0 0.0
        %1489 = vmatpush2.msra.mxu0 0.0
        %1490 = vmatprep.subr.mxu0 0.0
        %1491 = vmatpush2.msra.mxu0 0.0
        %1492 = vmatprep.subr.mxu0 0.0
        %1493 = vmatpush2.msra.mxu0 0.0
        %1494 = vmatprep.subr.mxu0 0.0
        %1495 = vmatpush2.msra.mxu0 0.0
        %1496 = vmatprep.subr.mxu0 0.0
        %1497 = vmatpush2.msra.mxu0 0.0
        %1498 = vmatprep.subr.mxu0 0.0
        %1499 = vmatpush2.msra.mxu0 0.0
        %1500 = vmatprep.subr.mxu0 0.0
        %1501 = vmatpush2.msra.mxu0 0.0
        %1502 = vmatprep.subr.mxu0 0.0
        %1503 = vmatpush2.msra.mxu0 0.0
        %1504 = vmatprep.subr.mxu0 0.0
        %1505 = vmatpush2.msra.mxu0 0.0
        %1506 = vmatprep.subr.mxu0 0.0
        %1507 = vmatpush2.msra.mxu0 0.0
        %1508 = vmatprep.mubr.f32.mxu0 0.0
        %1509 = vmatmul.mubr.f32.gmra.mxu0 %v1442
        %v1510 = vpop.f32.mrf.mxu0
        %v1511 = vadd.f32 %v1440, %v1510
        %v1512 = vpop.f32.mrf.mxu0
        %1513 = vdwg.mxu0
        %v1514 = vmul.f32 %v1511, 0.909
        %v1515 = vxor.u32 %v1511, 2147483648
        %v1516 = vmul.f32 %v1515, 1.442695
        %v1517 = vpow.pop %v1516
        %v1518 = vadd.f32 %v1517, 1.0
        %v1519 = vrcp.pop %v1518
        %v1520 = vmul.f32 1.0, %v1519
        %v1521 = vmul.f32 %v1514, %v1520
        %v1523 = vsel %vm695, %v1521, 0
        %1525 = vmatprep.subr.mxu0 0.0
        %1526 = vmatpush1.msra.mxu0 0.0
        %1527 = vmatprep.subr.mxu0 0.0
        %1528 = vmatpush1.msra.mxu0 0.0
        %1529 = vmatprep.subr.mxu0 0.0
        %1530 = vmatpush1.msra.mxu0 0.0
        %1531 = vmatprep.subr.mxu0 0.0
        %1532 = vmatpush1.msra.mxu0 0.0
        %1533 = vmatprep.subr.mxu0 0.0
        %1534 = vmatpush1.msra.mxu0 0.0
        %1535 = vmatprep.subr.mxu0 0.0
        %1536 = vmatpush1.msra.mxu0 0.0
        %1537 = vmatprep.subr.mxu0 0.0
        %1538 = vmatpush1.msra.mxu0 0.0
        %1539 = vmatprep.subr.mxu0 0.0
        %1540 = vmatpush1.msra.mxu0 0.0
        %1541 = vmatprep.subr.mxu0 0.0
        %1542 = vmatpush1.msra.mxu0 0.0
        %1543 = vmatprep.subr.mxu0 0.0
        %1544 = vmatpush1.msra.mxu0 0.0
        %1545 = vmatprep.subr.mxu0 0.0
        %1546 = vmatpush1.msra.mxu0 0.0
        %1547 = vmatprep.subr.mxu0 0.0
        %1548 = vmatpush1.msra.mxu0 0.0
        %1549 = vmatprep.subr.mxu0 0.0
        %1550 = vmatpush1.msra.mxu0 %v574
        %1551 = vmatprep.subr.mxu0 0.0
        %1552 = vmatpush1.msra.mxu0 %v573
        %1553 = vmatprep.subr.mxu0 0.0
        %1554 = vmatpush1.msra.mxu0 %v572
        %1555 = vmatprep.subr.mxu0 0.0
        %1556 = vmatpush1.msra.mxu0 %v571
        %1557 = vmatprep.subr.mxu0 0.0
        %1558 = vmatpush2.msra.mxu0 0.0
        %1559 = vmatprep.subr.mxu0 0.0
        %1560 = vmatpush2.msra.mxu0 0.0
        %1561 = vmatprep.subr.mxu0 0.0
        %1562 = vmatpush2.msra.mxu0 0.0
        %1563 = vmatprep.subr.mxu0 0.0
        %1564 = vmatpush2.msra.mxu0 0.0
        %1565 = vmatprep.subr.mxu0 0.0
        %1566 = vmatpush2.msra.mxu0 0.0
        %1567 = vmatprep.subr.mxu0 0.0
        %1568 = vmatpush2.msra.mxu0 0.0
        %1569 = vmatprep.subr.mxu0 0.0
        %1570 = vmatpush2.msra.mxu0 0.0
        %1571 = vmatprep.subr.mxu0 0.0
        %1572 = vmatpush2.msra.mxu0 0.0
        %1573 = vmatprep.subr.mxu0 0.0
        %1574 = vmatpush2.msra.mxu0 0.0
        %1575 = vmatprep.subr.mxu0 0.0
        %1576 = vmatpush2.msra.mxu0 0.0
        %1577 = vmatprep.subr.mxu0 0.0
        %1578 = vmatpush2.msra.mxu0 0.0
        %1579 = vmatprep.subr.mxu0 0.0
        %1580 = vmatpush2.msra.mxu0 0.0
        %1581 = vmatprep.subr.mxu0 0.0
        %1582 = vmatpush2.msra.mxu0 0.0
        %1583 = vmatprep.subr.mxu0 0.0
        %1584 = vmatpush2.msra.mxu0 0.0
        %1585 = vmatprep.subr.mxu0 0.0
        %1586 = vmatpush2.msra.mxu0 0.0
        %1587 = vmatprep.subr.mxu0 0.0
        %1588 = vmatpush2.msra.mxu0 0.0
        %1589 = vmatprep.mubr.f32.mxu0 0.0
        %1590 = vmatmul.mubr.f32.gmra.mxu0 %v1523
        %v1591 = vpop.f32.mrf.mxu0
        %v1592 = vadd.f32 %v952, %v1591
        %v1593 = vpop.f32.mrf.mxu0
        %1594 = vdwg.mxu0
        %v1595 = vmul.f32 %v1592, 0.909
        %v1596 = vxor.u32 %v1592, 2147483648
        %v1597 = vmul.f32 %v1596, 1.442695
        %v1598 = vpow.pop %v1597
        %v1599 = vadd.f32 %v1598, 1.0
        %v1600 = vrcp.pop %v1599
        %v1601 = vmul.f32 1.0, %v1600
        %v1602 = vmul.f32 %v1595, %v1601
        %v1604 = vsel %vm695, %v1602, 0
        %1606 = vmatprep.subr.mxu0 0.0
        %1607 = vmatpush1.msra.mxu0 0.0
        %1608 = vmatprep.subr.mxu0 0.0
        %1609 = vmatpush1.msra.mxu0 0.0
        %1610 = vmatprep.subr.mxu0 0.0
        %1611 = vmatpush1.msra.mxu0 0.0
        %1612 = vmatprep.subr.mxu0 0.0
        %1613 = vmatpush1.msra.mxu0 0.0
        %1614 = vmatprep.subr.mxu0 0.0
        %1615 = vmatpush1.msra.mxu0 0.0
        %1616 = vmatprep.subr.mxu0 0.0
        %1617 = vmatpush1.msra.mxu0 0.0
        %1618 = vmatprep.subr.mxu0 0.0
        %1619 = vmatpush1.msra.mxu0 0.0
        %1620 = vmatprep.subr.mxu0 0.0
        %1621 = vmatpush1.msra.mxu0 0.0
        %1622 = vmatprep.subr.mxu0 0.0
        %1623 = vmatpush1.msra.mxu0 0.0
        %1624 = vmatprep.subr.mxu0 0.0
        %1625 = vmatpush1.msra.mxu0 0.0
        %1626 = vmatprep.subr.mxu0 0.0
        %1627 = vmatpush1.msra.mxu0 0.0
        %1628 = vmatprep.subr.mxu0 0.0
        %1629 = vmatpush1.msra.mxu0 0.0
        %1630 = vmatprep.subr.mxu0 0.0
        %1631 = vmatpush1.msra.mxu0 %v578
        %1632 = vmatprep.subr.mxu0 0.0
        %1633 = vmatpush1.msra.mxu0 %v577
        %1634 = vmatprep.subr.mxu0 0.0
        %1635 = vmatpush1.msra.mxu0 %v576
        %1636 = vmatprep.subr.mxu0 0.0
        %1637 = vmatpush1.msra.mxu0 %v575
        %1638 = vmatprep.subr.mxu0 0.0
        %1639 = vmatpush2.msra.mxu0 0.0
        %1640 = vmatprep.subr.mxu0 0.0
        %1641 = vmatpush2.msra.mxu0 0.0
        %1642 = vmatprep.subr.mxu0 0.0
        %1643 = vmatpush2.msra.mxu0 0.0
        %1644 = vmatprep.subr.mxu0 0.0
        %1645 = vmatpush2.msra.mxu0 0.0
        %1646 = vmatprep.subr.mxu0 0.0
        %1647 = vmatpush2.msra.mxu0 0.0
        %1648 = vmatprep.subr.mxu0 0.0
        %1649 = vmatpush2.msra.mxu0 0.0
        %1650 = vmatprep.subr.mxu0 0.0
        %1651 = vmatpush2.msra.mxu0 0.0
        %1652 = vmatprep.subr.mxu0 0.0
        %1653 = vmatpush2.msra.mxu0 0.0
        %1654 = vmatprep.subr.mxu0 0.0
        %1655 = vmatpush2.msra.mxu0 0.0
        %1656 = vmatprep.subr.mxu0 0.0
        %1657 = vmatpush2.msra.mxu0 0.0
        %1658 = vmatprep.subr.mxu0 0.0
        %1659 = vmatpush2.msra.mxu0 0.0
        %1660 = vmatprep.subr.mxu0 0.0
        %1661 = vmatpush2.msra.mxu0 0.0
        %1662 = vmatprep.subr.mxu0 0.0
        %1663 = vmatpush2.msra.mxu0 0.0
        %1664 = vmatprep.subr.mxu0 0.0
        %1665 = vmatpush2.msra.mxu0 0.0
        %1666 = vmatprep.subr.mxu0 0.0
        %1667 = vmatpush2.msra.mxu0 0.0
        %1668 = vmatprep.subr.mxu0 0.0
        %1669 = vmatpush2.msra.mxu0 0.0
        %1670 = vmatprep.mubr.f32.mxu0 0.0
        %1671 = vmatmul.mubr.f32.gmra.mxu0 %v1604
        %v1672 = vpop.f32.mrf.mxu0
        %v1673 = vadd.f32 %v1039, %v1672
        %v1674 = vpop.f32.mrf.mxu0
        %1675 = vdwg.mxu0
        %v1676 = vtanh.pop %v1673
        %1678 = vset.pattern.permute.xlu0 0
        %1679 = vperm.xlu0 %1678, %v1436
        %v1680 = vpop.permute.xlu0 %1679
        %v1682 = vmul.f32 %v1676, %v1680
        %1683 = vset.pattern.permute.xlu0 1
        %1684 = vperm.xlu0 %1683, %v1436
        %v1685 = vpop.permute.xlu0 %1684
        %v1687 = vmul.f32 %v1676, %v1685
        %1689 = vrot.lane.b32.xlu0 %v1687, 112
        %v1690 = vpop.permute.xlu0 %1689
        %v1692 = vadd.f32 %v1682, %v1690
        %1693 = vset.pattern.permute.xlu0 2
        %1694 = vperm.xlu0 %1693, %v1436
        %v1695 = vpop.permute.xlu0 %1694
        %v1697 = vmul.f32 %v1676, %v1695
        %1699 = vrot.lane.b32.xlu0 %v1697, 96
        %v1700 = vpop.permute.xlu0 %1699
        %v1702 = vadd.f32 %v1692, %v1700
        %1703 = vset.pattern.permute.xlu0 3
        %1704 = vperm.xlu0 %1703, %v1436
        %v1705 = vpop.permute.xlu0 %1704
        %v1707 = vmul.f32 %v1676, %v1705
        %1709 = vrot.lane.b32.xlu0 %v1707, 80
        %v1710 = vpop.permute.xlu0 %1709
        %v1712 = vadd.f32 %v1702, %v1710
        %1713 = vset.pattern.permute.xlu0 4
        %1714 = vperm.xlu0 %1713, %v1436
        %v1715 = vpop.permute.xlu0 %1714
        %v1717 = vmul.f32 %v1676, %v1715
        %1719 = vrot.lane.b32.xlu0 %v1717, 64
        %v1720 = vpop.permute.xlu0 %1719
        %v1722 = vadd.f32 %v1712, %v1720
        %v1723 = vadd.f32 %v1428, %v1722
        %v1724 = vmul.f32 %v1723, 0.5
        %v1725 = vadd.f32 %v1431, %v1724
        %v1726 = vmul.f32 %v1725, 2.0
        %v1727 = vsub.f32 %v1726, %v1434
        %v1728 = vadd.f32 %v1727, %v1722
        %s1729 = scalar_lea.vmem %s513, 16 [#allocation2]
        %v1730 = vld [vmem:[%s1729] sm:$0xff]
        %v1731 = vlaneseq
        %v1732 = vshrl.u32 %v1731, 7
        %v1733 = vsub.s32 0, %v1732
        %v1734 = vrot.slane %v584, %v1733
        %v1736 = vsel %vm866, %v1728, 0
        %1738 = vmatprep.subr.mxu0 0.0
        %1739 = vmatpush1.msra.mxu0 0.0
        %1740 = vmatprep.subr.mxu0 0.0
        %1741 = vmatpush1.msra.mxu0 0.0
        %1742 = vmatprep.subr.mxu0 0.0
        %1743 = vmatpush1.msra.mxu0 0.0
        %1744 = vmatprep.subr.mxu0 0.0
        %1745 = vmatpush1.msra.mxu0 0.0
        %1746 = vmatprep.subr.mxu0 0.0
        %1747 = vmatpush1.msra.mxu0 0.0
        %1748 = vmatprep.subr.mxu0 0.0
        %1749 = vmatpush1.msra.mxu0 0.0
        %1750 = vmatprep.subr.mxu0 0.0
        %1751 = vmatpush1.msra.mxu0 0.0
        %1752 = vmatprep.subr.mxu0 0.0
        %1753 = vmatpush1.msra.mxu0 0.0
        %1754 = vmatprep.subr.mxu0 0.0
        %1755 = vmatpush1.msra.mxu0 0.0
        %1756 = vmatprep.subr.mxu0 0.0
        %1757 = vmatpush1.msra.mxu0 0.0
        %1758 = vmatprep.subr.mxu0 0.0
        %1759 = vmatpush1.msra.mxu0 0.0
        %1760 = vmatprep.subr.mxu0 0.0
        %1761 = vmatpush1.msra.mxu0 0.0
        %1762 = vmatprep.subr.mxu0 0.0
        %1763 = vmatpush1.msra.mxu0 0.0
        %1764 = vmatprep.subr.mxu0 0.0
        %1765 = vmatpush1.msra.mxu0 0.0
        %1766 = vmatprep.subr.mxu0 0.0
        %1767 = vmatpush1.msra.mxu0 %v570
        %1768 = vmatprep.subr.mxu0 0.0
        %1769 = vmatpush1.msra.mxu0 %v569
        %1770 = vmatprep.subr.mxu0 0.0
        %1771 = vmatpush2.msra.mxu0 0.0
        %1772 = vmatprep.subr.mxu0 0.0
        %1773 = vmatpush2.msra.mxu0 0.0
        %1774 = vmatprep.subr.mxu0 0.0
        %1775 = vmatpush2.msra.mxu0 0.0
        %1776 = vmatprep.subr.mxu0 0.0
        %1777 = vmatpush2.msra.mxu0 0.0
        %1778 = vmatprep.subr.mxu0 0.0
        %1779 = vmatpush2.msra.mxu0 0.0
        %1780 = vmatprep.subr.mxu0 0.0
        %1781 = vmatpush2.msra.mxu0 0.0
        %1782 = vmatprep.subr.mxu0 0.0
        %1783 = vmatpush2.msra.mxu0 0.0
        %1784 = vmatprep.subr.mxu0 0.0
        %1785 = vmatpush2.msra.mxu0 0.0
        %1786 = vmatprep.subr.mxu0 0.0
        %1787 = vmatpush2.msra.mxu0 0.0
        %1788 = vmatprep.subr.mxu0 0.0
        %1789 = vmatpush2.msra.mxu0 0.0
        %1790 = vmatprep.subr.mxu0 0.0
        %1791 = vmatpush2.msra.mxu0 0.0
        %1792 = vmatprep.subr.mxu0 0.0
        %1793 = vmatpush2.msra.mxu0 0.0
        %1794 = vmatprep.subr.mxu0 0.0
        %1795 = vmatpush2.msra.mxu0 0.0
        %1796 = vmatprep.subr.mxu0 0.0
        %1797 = vmatpush2.msra.mxu0 0.0
        %1798 = vmatprep.subr.mxu0 0.0
        %1799 = vmatpush2.msra.mxu0 0.0
        %1800 = vmatprep.subr.mxu0 0.0
        %1801 = vmatpush2.msra.mxu0 0.0
        %1802 = vmatprep.mubr.f32.mxu0 0.0
        %1803 = vmatmul.mubr.f32.gmra.mxu0 %v1736
        %v1804 = vpop.f32.mrf.mxu0
        %v1805 = vadd.f32 %v1734, %v1804
        %v1806 = vpop.f32.mrf.mxu0
        %1807 = vdwg.mxu0
        %v1808 = vmul.f32 %v1805, 0.909
        %v1809 = vxor.u32 %v1805, 2147483648
        %v1810 = vmul.f32 %v1809, 1.442695
        %v1811 = vpow.pop %v1810
        %v1812 = vadd.f32 %v1811, 1.0
        %v1813 = vrcp.pop %v1812
        %v1814 = vmul.f32 1.0, %v1813
        %v1815 = vmul.f32 %v1808, %v1814
        %v1817 = vsel %vm695, %v1815, 0
        %1819 = vmatprep.subr.mxu0 0.0
        %1820 = vmatpush1.msra.mxu0 0.0
        %1821 = vmatprep.subr.mxu0 0.0
        %1822 = vmatpush1.msra.mxu0 0.0
        %1823 = vmatprep.subr.mxu0 0.0
        %1824 = vmatpush1.msra.mxu0 0.0
        %1825 = vmatprep.subr.mxu0 0.0
        %1826 = vmatpush1.msra.mxu0 0.0
        %1827 = vmatprep.subr.mxu0 0.0
        %1828 = vmatpush1.msra.mxu0 0.0
        %1829 = vmatprep.subr.mxu0 0.0
        %1830 = vmatpush1.msra.mxu0 0.0
        %1831 = vmatprep.subr.mxu0 0.0
        %1832 = vmatpush1.msra.mxu0 0.0
        %1833 = vmatprep.subr.mxu0 0.0
        %1834 = vmatpush1.msra.mxu0 0.0
        %1835 = vmatprep.subr.mxu0 0.0
        %1836 = vmatpush1.msra.mxu0 0.0
        %1837 = vmatprep.subr.mxu0 0.0
        %1838 = vmatpush1.msra.mxu0 0.0
        %1839 = vmatprep.subr.mxu0 0.0
        %1840 = vmatpush1.msra.mxu0 0.0
        %1841 = vmatprep.subr.mxu0 0.0
        %1842 = vmatpush1.msra.mxu0 0.0
        %1843 = vmatprep.subr.mxu0 0.0
        %1844 = vmatpush1.msra.mxu0 %v574
        %1845 = vmatprep.subr.mxu0 0.0
        %1846 = vmatpush1.msra.mxu0 %v573
        %1847 = vmatprep.subr.mxu0 0.0
        %1848 = vmatpush1.msra.mxu0 %v572
        %1849 = vmatprep.subr.mxu0 0.0
        %1850 = vmatpush1.msra.mxu0 %v571
        %1851 = vmatprep.subr.mxu0 0.0
        %1852 = vmatpush2.msra.mxu0 0.0
        %1853 = vmatprep.subr.mxu0 0.0
        %1854 = vmatpush2.msra.mxu0 0.0
        %1855 = vmatprep.subr.mxu0 0.0
        %1856 = vmatpush2.msra.mxu0 0.0
        %1857 = vmatprep.subr.mxu0 0.0
        %1858 = vmatpush2.msra.mxu0 0.0
        %1859 = vmatprep.subr.mxu0 0.0
        %1860 = vmatpush2.msra.mxu0 0.0
        %1861 = vmatprep.subr.mxu0 0.0
        %1862 = vmatpush2.msra.mxu0 0.0
        %1863 = vmatprep.subr.mxu0 0.0
        %1864 = vmatpush2.msra.mxu0 0.0
        %1865 = vmatprep.subr.mxu0 0.0
        %1866 = vmatpush2.msra.mxu0 0.0
        %1867 = vmatprep.subr.mxu0 0.0
        %1868 = vmatpush2.msra.mxu0 0.0
        %1869 = vmatprep.subr.mxu0 0.0
        %1870 = vmatpush2.msra.mxu0 0.0
        %1871 = vmatprep.subr.mxu0 0.0
        %1872 = vmatpush2.msra.mxu0 0.0
        %1873 = vmatprep.subr.mxu0 0.0
        %1874 = vmatpush2.msra.mxu0 0.0
        %1875 = vmatprep.subr.mxu0 0.0
        %1876 = vmatpush2.msra.mxu0 0.0
        %1877 = vmatprep.subr.mxu0 0.0
        %1878 = vmatpush2.msra.mxu0 0.0
        %1879 = vmatprep.subr.mxu0 0.0
        %1880 = vmatpush2.msra.mxu0 0.0
        %1881 = vmatprep.subr.mxu0 0.0
        %1882 = vmatpush2.msra.mxu0 0.0
        %1883 = vmatprep.mubr.f32.mxu0 0.0
        %1884 = vmatmul.mubr.f32.gmra.mxu0 %v1817
        %v1885 = vpop.f32.mrf.mxu0
        %v1886 = vadd.f32 %v952, %v1885
        %v1887 = vpop.f32.mrf.mxu0
        %1888 = vdwg.mxu0
        %v1889 = vmul.f32 %v1886, 0.909
        %v1890 = vxor.u32 %v1886, 2147483648
        %v1891 = vmul.f32 %v1890, 1.442695
        %v1892 = vpow.pop %v1891
        %v1893 = vadd.f32 %v1892, 1.0
        %v1894 = vrcp.pop %v1893
        %v1895 = vmul.f32 1.0, %v1894
        %v1896 = vmul.f32 %v1889, %v1895
        %v1898 = vsel %vm695, %v1896, 0
        %1900 = vmatprep.subr.mxu0 0.0
        %1901 = vmatpush1.msra.mxu0 0.0
        %1902 = vmatprep.subr.mxu0 0.0
        %1903 = vmatpush1.msra.mxu0 0.0
        %1904 = vmatprep.subr.mxu0 0.0
        %1905 = vmatpush1.msra.mxu0 0.0
        %1906 = vmatprep.subr.mxu0 0.0
        %1907 = vmatpush1.msra.mxu0 0.0
        %1908 = vmatprep.subr.mxu0 0.0
        %1909 = vmatpush1.msra.mxu0 0.0
        %1910 = vmatprep.subr.mxu0 0.0
        %1911 = vmatpush1.msra.mxu0 0.0
        %1912 = vmatprep.subr.mxu0 0.0
        %1913 = vmatpush1.msra.mxu0 0.0
        %1914 = vmatprep.subr.mxu0 0.0
        %1915 = vmatpush1.msra.mxu0 0.0
        %1916 = vmatprep.subr.mxu0 0.0
        %1917 = vmatpush1.msra.mxu0 0.0
        %1918 = vmatprep.subr.mxu0 0.0
        %1919 = vmatpush1.msra.mxu0 0.0
        %1920 = vmatprep.subr.mxu0 0.0
        %1921 = vmatpush1.msra.mxu0 0.0
        %1922 = vmatprep.subr.mxu0 0.0
        %1923 = vmatpush1.msra.mxu0 0.0
        %1924 = vmatprep.subr.mxu0 0.0
        %1925 = vmatpush1.msra.mxu0 %v578
        %1926 = vmatprep.subr.mxu0 0.0
        %1927 = vmatpush1.msra.mxu0 %v577
        %1928 = vmatprep.subr.mxu0 0.0
        %1929 = vmatpush1.msra.mxu0 %v576
        %1930 = vmatprep.subr.mxu0 0.0
        %1931 = vmatpush1.msra.mxu0 %v575
        %1932 = vmatprep.subr.mxu0 0.0
        %1933 = vmatpush2.msra.mxu0 0.0
        %1934 = vmatprep.subr.mxu0 0.0
        %1935 = vmatpush2.msra.mxu0 0.0
        %1936 = vmatprep.subr.mxu0 0.0
        %1937 = vmatpush2.msra.mxu0 0.0
        %1938 = vmatprep.subr.mxu0 0.0
        %1939 = vmatpush2.msra.mxu0 0.0
        %1940 = vmatprep.subr.mxu0 0.0
        %1941 = vmatpush2.msra.mxu0 0.0
        %1942 = vmatprep.subr.mxu0 0.0
        %1943 = vmatpush2.msra.mxu0 0.0
        %1944 = vmatprep.subr.mxu0 0.0
        %1945 = vmatpush2.msra.mxu0 0.0
        %1946 = vmatprep.subr.mxu0 0.0
        %1947 = vmatpush2.msra.mxu0 0.0
        %1948 = vmatprep.subr.mxu0 0.0
        %1949 = vmatpush2.msra.mxu0 0.0
        %1950 = vmatprep.subr.mxu0 0.0
        %1951 = vmatpush2.msra.mxu0 0.0
        %1952 = vmatprep.subr.mxu0 0.0
        %1953 = vmatpush2.msra.mxu0 0.0
        %1954 = vmatprep.subr.mxu0 0.0
        %1955 = vmatpush2.msra.mxu0 0.0
        %1956 = vmatprep.subr.mxu0 0.0
        %1957 = vmatpush2.msra.mxu0 0.0
        %1958 = vmatprep.subr.mxu0 0.0
        %1959 = vmatpush2.msra.mxu0 0.0
        %1960 = vmatprep.subr.mxu0 0.0
        %1961 = vmatpush2.msra.mxu0 0.0
        %1962 = vmatprep.subr.mxu0 0.0
        %1963 = vmatpush2.msra.mxu0 0.0
        %1964 = vmatprep.mubr.f32.mxu0 0.0
        %1965 = vmatmul.mubr.f32.gmra.mxu0 %v1898
        %v1966 = vpop.f32.mrf.mxu0
        %v1967 = vadd.f32 %v1039, %v1966
        %v1968 = vpop.f32.mrf.mxu0
        %1969 = vdwg.mxu0
        %v1970 = vtanh.pop %v1967
        %1972 = vset.pattern.permute.xlu0 0
        %1973 = vperm.xlu0 %1972, %v1730
        %v1974 = vpop.permute.xlu0 %1973
        %v1976 = vmul.f32 %v1970, %v1974
        %1977 = vset.pattern.permute.xlu0 1
        %1978 = vperm.xlu0 %1977, %v1730
        %v1979 = vpop.permute.xlu0 %1978
        %v1981 = vmul.f32 %v1970, %v1979
        %1983 = vrot.lane.b32.xlu0 %v1981, 112
        %v1984 = vpop.permute.xlu0 %1983
        %v1986 = vadd.f32 %v1976, %v1984
        %1987 = vset.pattern.permute.xlu0 2
        %1988 = vperm.xlu0 %1987, %v1730
        %v1989 = vpop.permute.xlu0 %1988
        %v1991 = vmul.f32 %v1970, %v1989
        %1993 = vrot.lane.b32.xlu0 %v1991, 96
        %v1994 = vpop.permute.xlu0 %1993
        %v1996 = vadd.f32 %v1986, %v1994
        %1997 = vset.pattern.permute.xlu0 3
        %1998 = vperm.xlu0 %1997, %v1730
        %v1999 = vpop.permute.xlu0 %1998
        %v2001 = vmul.f32 %v1970, %v1999
        %2003 = vrot.lane.b32.xlu0 %v2001, 80
        %v2004 = vpop.permute.xlu0 %2003
        %v2006 = vadd.f32 %v1996, %v2004
        %2007 = vset.pattern.permute.xlu0 4
        %2008 = vperm.xlu0 %2007, %v1730
        %v2009 = vpop.permute.xlu0 %2008
        %v2011 = vmul.f32 %v1970, %v2009
        %2013 = vrot.lane.b32.xlu0 %v2011, 64
        %v2014 = vpop.permute.xlu0 %2013
        %v2016 = vadd.f32 %v2006, %v2014
        %v2017 = vadd.f32 %v1722, %v2016
        %v2018 = vmul.f32 %v2017, 0.5
        %v2019 = vadd.f32 %v1725, %v2018
        %v2020 = vmul.f32 %v2019, 2.0
        %v2021 = vsub.f32 %v2020, %v1728
        %v2022 = vadd.f32 %v2021, %v2016
        %s2023 = scalar_lea.vmem %s513, 24 [#allocation2]
        %v2024 = vld [vmem:[%s2023] sm:$0xff]
        %v2025 = vlaneseq
        %v2026 = vshrl.u32 %v2025, 7
        %v2027 = vsub.s32 0, %v2026
        %v2028 = vrot.slane %v585, %v2027
        %v2030 = vsel %vm866, %v2022, 0
        %2032 = vmatprep.subr.mxu0 0.0
        %2033 = vmatpush1.msra.mxu0 0.0
        %2034 = vmatprep.subr.mxu0 0.0
        %2035 = vmatpush1.msra.mxu0 0.0
        %2036 = vmatprep.subr.mxu0 0.0
        %2037 = vmatpush1.msra.mxu0 0.0
        %2038 = vmatprep.subr.mxu0 0.0
        %2039 = vmatpush1.msra.mxu0 0.0
        %2040 = vmatprep.subr.mxu0 0.0
        %2041 = vmatpush1.msra.mxu0 0.0
        %2042 = vmatprep.subr.mxu0 0.0
        %2043 = vmatpush1.msra.mxu0 0.0
        %2044 = vmatprep.subr.mxu0 0.0
        %2045 = vmatpush1.msra.mxu0 0.0
        %2046 = vmatprep.subr.mxu0 0.0
        %2047 = vmatpush1.msra.mxu0 0.0
        %2048 = vmatprep.subr.mxu0 0.0
        %2049 = vmatpush1.msra.mxu0 0.0
        %2050 = vmatprep.subr.mxu0 0.0
        %2051 = vmatpush1.msra.mxu0 0.0
        %2052 = vmatprep.subr.mxu0 0.0
        %2053 = vmatpush1.msra.mxu0 0.0
        %2054 = vmatprep.subr.mxu0 0.0
        %2055 = vmatpush1.msra.mxu0 0.0
        %2056 = vmatprep.subr.mxu0 0.0
        %2057 = vmatpush1.msra.mxu0 0.0
        %2058 = vmatprep.subr.mxu0 0.0
        %2059 = vmatpush1.msra.mxu0 0.0
        %2060 = vmatprep.subr.mxu0 0.0
        %2061 = vmatpush1.msra.mxu0 %v570
        %2062 = vmatprep.subr.mxu0 0.0
        %2063 = vmatpush1.msra.mxu0 %v569
        %2064 = vmatprep.subr.mxu0 0.0
        %2065 = vmatpush2.msra.mxu0 0.0
        %2066 = vmatprep.subr.mxu0 0.0
        %2067 = vmatpush2.msra.mxu0 0.0
        %2068 = vmatprep.subr.mxu0 0.0
        %2069 = vmatpush2.msra.mxu0 0.0
        %2070 = vmatprep.subr.mxu0 0.0
        %2071 = vmatpush2.msra.mxu0 0.0
        %2072 = vmatprep.subr.mxu0 0.0
        %2073 = vmatpush2.msra.mxu0 0.0
        %2074 = vmatprep.subr.mxu0 0.0
        %2075 = vmatpush2.msra.mxu0 0.0
        %2076 = vmatprep.subr.mxu0 0.0
        %2077 = vmatpush2.msra.mxu0 0.0
        %2078 = vmatprep.subr.mxu0 0.0
        %2079 = vmatpush2.msra.mxu0 0.0
        %2080 = vmatprep.subr.mxu0 0.0
        %2081 = vmatpush2.msra.mxu0 0.0
        %2082 = vmatprep.subr.mxu0 0.0
        %2083 = vmatpush2.msra.mxu0 0.0
        %2084 = vmatprep.subr.mxu0 0.0
        %2085 = vmatpush2.msra.mxu0 0.0
        %2086 = vmatprep.subr.mxu0 0.0
        %2087 = vmatpush2.msra.mxu0 0.0
        %2088 = vmatprep.subr.mxu0 0.0
        %2089 = vmatpush2.msra.mxu0 0.0
        %2090 = vmatprep.subr.mxu0 0.0
        %2091 = vmatpush2.msra.mxu0 0.0
        %2092 = vmatprep.subr.mxu0 0.0
        %2093 = vmatpush2.msra.mxu0 0.0
        %2094 = vmatprep.subr.mxu0 0.0
        %2095 = vmatpush2.msra.mxu0 0.0
        %2096 = vmatprep.mubr.f32.mxu0 0.0
        %2097 = vmatmul.mubr.f32.gmra.mxu0 %v2030
        %v2098 = vpop.f32.mrf.mxu0
        %v2099 = vadd.f32 %v2028, %v2098
        %v2100 = vpop.f32.mrf.mxu0
        %2101 = vdwg.mxu0
        %v2102 = vmul.f32 %v2099, 0.909
        %v2103 = vxor.u32 %v2099, 2147483648
        %v2104 = vmul.f32 %v2103, 1.442695
        %v2105 = vpow.pop %v2104
        %v2106 = vadd.f32 %v2105, 1.0
        %v2107 = vrcp.pop %v2106
        %v2108 = vmul.f32 1.0, %v2107
        %v2109 = vmul.f32 %v2102, %v2108
        %v2111 = vsel %vm695, %v2109, 0
        %2113 = vmatprep.subr.mxu0 0.0
        %2114 = vmatpush1.msra.mxu0 0.0
        %2115 = vmatprep.subr.mxu0 0.0
        %2116 = vmatpush1.msra.mxu0 0.0
        %2117 = vmatprep.subr.mxu0 0.0
        %2118 = vmatpush1.msra.mxu0 0.0
        %2119 = vmatprep.subr.mxu0 0.0
        %2120 = vmatpush1.msra.mxu0 0.0
        %2121 = vmatprep.subr.mxu0 0.0
        %2122 = vmatpush1.msra.mxu0 0.0
        %2123 = vmatprep.subr.mxu0 0.0
        %2124 = vmatpush1.msra.mxu0 0.0
        %2125 = vmatprep.subr.mxu0 0.0
        %2126 = vmatpush1.msra.mxu0 0.0
        %2127 = vmatprep.subr.mxu0 0.0
        %2128 = vmatpush1.msra.mxu0 0.0
        %2129 = vmatprep.subr.mxu0 0.0
        %2130 = vmatpush1.msra.mxu0 0.0
        %2131 = vmatprep.subr.mxu0 0.0
        %2132 = vmatpush1.msra.mxu0 0.0
        %2133 = vmatprep.subr.mxu0 0.0
        %2134 = vmatpush1.msra.mxu0 0.0
        %2135 = vmatprep.subr.mxu0 0.0
        %2136 = vmatpush1.msra.mxu0 0.0
        %2137 = vmatprep.subr.mxu0 0.0
        %2138 = vmatpush1.msra.mxu0 %v574
        %2139 = vmatprep.subr.mxu0 0.0
        %2140 = vmatpush1.msra.mxu0 %v573
        %2141 = vmatprep.subr.mxu0 0.0
        %2142 = vmatpush1.msra.mxu0 %v572
        %2143 = vmatprep.subr.mxu0 0.0
        %2144 = vmatpush1.msra.mxu0 %v571
        %2145 = vmatprep.subr.mxu0 0.0
        %2146 = vmatpush2.msra.mxu0 0.0
        %2147 = vmatprep.subr.mxu0 0.0
        %2148 = vmatpush2.msra.mxu0 0.0
        %2149 = vmatprep.subr.mxu0 0.0
        %2150 = vmatpush2.msra.mxu0 0.0
        %2151 = vmatprep.subr.mxu0 0.0
        %2152 = vmatpush2.msra.mxu0 0.0
        %2153 = vmatprep.subr.mxu0 0.0
        %2154 = vmatpush2.msra.mxu0 0.0
        %2155 = vmatprep.subr.mxu0 0.0
        %2156 = vmatpush2.msra.mxu0 0.0
        %2157 = vmatprep.subr.mxu0 0.0
        %2158 = vmatpush2.msra.mxu0 0.0
        %2159 = vmatprep.subr.mxu0 0.0
        %2160 = vmatpush2.msra.mxu0 0.0
        %2161 = vmatprep.subr.mxu0 0.0
        %2162 = vmatpush2.msra.mxu0 0.0
        %2163 = vmatprep.subr.mxu0 0.0
        %2164 = vmatpush2.msra.mxu0 0.0
        %2165 = vmatprep.subr.mxu0 0.0
        %2166 = vmatpush2.msra.mxu0 0.0
        %2167 = vmatprep.subr.mxu0 0.0
        %2168 = vmatpush2.msra.mxu0 0.0
        %2169 = vmatprep.subr.mxu0 0.0
        %2170 = vmatpush2.msra.mxu0 0.0
        %2171 = vmatprep.subr.mxu0 0.0
        %2172 = vmatpush2.msra.mxu0 0.0
        %2173 = vmatprep.subr.mxu0 0.0
        %2174 = vmatpush2.msra.mxu0 0.0
        %2175 = vmatprep.subr.mxu0 0.0
        %2176 = vmatpush2.msra.mxu0 0.0
        %2177 = vmatprep.mubr.f32.mxu0 0.0
        %2178 = vmatmul.mubr.f32.gmra.mxu0 %v2111
        %v2179 = vpop.f32.mrf.mxu0
        %v2180 = vadd.f32 %v952, %v2179
        %v2181 = vpop.f32.mrf.mxu0
        %2182 = vdwg.mxu0
        %v2183 = vmul.f32 %v2180, 0.909
        %v2184 = vxor.u32 %v2180, 2147483648
        %v2185 = vmul.f32 %v2184, 1.442695
        %v2186 = vpow.pop %v2185
        %v2187 = vadd.f32 %v2186, 1.0
        %v2188 = vrcp.pop %v2187
        %v2189 = vmul.f32 1.0, %v2188
        %v2190 = vmul.f32 %v2183, %v2189
        %v2192 = vsel %vm695, %v2190, 0
        %2194 = vmatprep.subr.mxu0 0.0
        %2195 = vmatpush1.msra.mxu0 0.0
        %2196 = vmatprep.subr.mxu0 0.0
        %2197 = vmatpush1.msra.mxu0 0.0
        %2198 = vmatprep.subr.mxu0 0.0
        %2199 = vmatpush1.msra.mxu0 0.0
        %2200 = vmatprep.subr.mxu0 0.0
        %2201 = vmatpush1.msra.mxu0 0.0
        %2202 = vmatprep.subr.mxu0 0.0
        %2203 = vmatpush1.msra.mxu0 0.0
        %2204 = vmatprep.subr.mxu0 0.0
        %2205 = vmatpush1.msra.mxu0 0.0
        %2206 = vmatprep.subr.mxu0 0.0
        %2207 = vmatpush1.msra.mxu0 0.0
        %2208 = vmatprep.subr.mxu0 0.0
        %2209 = vmatpush1.msra.mxu0 0.0
        %2210 = vmatprep.subr.mxu0 0.0
        %2211 = vmatpush1.msra.mxu0 0.0
        %2212 = vmatprep.subr.mxu0 0.0
        %2213 = vmatpush1.msra.mxu0 0.0
        %2214 = vmatprep.subr.mxu0 0.0
        %2215 = vmatpush1.msra.mxu0 0.0
        %2216 = vmatprep.subr.mxu0 0.0
        %2217 = vmatpush1.msra.mxu0 0.0
        %2218 = vmatprep.subr.mxu0 0.0
        %2219 = vmatpush1.msra.mxu0 %v578
        %2220 = vmatprep.subr.mxu0 0.0
        %2221 = vmatpush1.msra.mxu0 %v577
        %2222 = vmatprep.subr.mxu0 0.0
        %2223 = vmatpush1.msra.mxu0 %v576
        %2224 = vmatprep.subr.mxu0 0.0
        %2225 = vmatpush1.msra.mxu0 %v575
        %2226 = vmatprep.subr.mxu0 0.0
        %2227 = vmatpush2.msra.mxu0 0.0
        %2228 = vmatprep.subr.mxu0 0.0
        %2229 = vmatpush2.msra.mxu0 0.0
        %2230 = vmatprep.subr.mxu0 0.0
        %2231 = vmatpush2.msra.mxu0 0.0
        %2232 = vmatprep.subr.mxu0 0.0
        %2233 = vmatpush2.msra.mxu0 0.0
        %2234 = vmatprep.subr.mxu0 0.0
        %2235 = vmatpush2.msra.mxu0 0.0
        %2236 = vmatprep.subr.mxu0 0.0
        %2237 = vmatpush2.msra.mxu0 0.0
        %2238 = vmatprep.subr.mxu0 0.0
        %2239 = vmatpush2.msra.mxu0 0.0
        %2240 = vmatprep.subr.mxu0 0.0
        %2241 = vmatpush2.msra.mxu0 0.0
        %2242 = vmatprep.subr.mxu0 0.0
        %2243 = vmatpush2.msra.mxu0 0.0
        %2244 = vmatprep.subr.mxu0 0.0
        %2245 = vmatpush2.msra.mxu0 0.0
        %2246 = vmatprep.subr.mxu0 0.0
        %2247 = vmatpush2.msra.mxu0 0.0
        %2248 = vmatprep.subr.mxu0 0.0
        %2249 = vmatpush2.msra.mxu0 0.0
        %2250 = vmatprep.subr.mxu0 0.0
        %2251 = vmatpush2.msra.mxu0 0.0
        %2252 = vmatprep.subr.mxu0 0.0
        %2253 = vmatpush2.msra.mxu0 0.0
        %2254 = vmatprep.subr.mxu0 0.0
        %2255 = vmatpush2.msra.mxu0 0.0
        %2256 = vmatprep.subr.mxu0 0.0
        %2257 = vmatpush2.msra.mxu0 0.0
        %2258 = vmatprep.mubr.f32.mxu0 0.0
        %2259 = vmatmul.mubr.f32.gmra.mxu0 %v2192
        %v2260 = vpop.f32.mrf.mxu0
        %v2261 = vadd.f32 %v1039, %v2260
        %v2262 = vpop.f32.mrf.mxu0
        %2263 = vdwg.mxu0
        %v2264 = vtanh.pop %v2261
        %2266 = vset.pattern.permute.xlu0 0
        %2267 = vperm.xlu0 %2266, %v2024
        %v2268 = vpop.permute.xlu0 %2267
        %v2270 = vmul.f32 %v2264, %v2268
        %2271 = vset.pattern.permute.xlu0 1
        %2272 = vperm.xlu0 %2271, %v2024
        %v2273 = vpop.permute.xlu0 %2272
        %v2275 = vmul.f32 %v2264, %v2273
        %2277 = vrot.lane.b32.xlu0 %v2275, 112
        %v2278 = vpop.permute.xlu0 %2277
        %v2280 = vadd.f32 %v2270, %v2278
        %2281 = vset.pattern.permute.xlu0 2
        %2282 = vperm.xlu0 %2281, %v2024
        %v2283 = vpop.permute.xlu0 %2282
        %v2285 = vmul.f32 %v2264, %v2283
        %2287 = vrot.lane.b32.xlu0 %v2285, 96
        %v2288 = vpop.permute.xlu0 %2287
        %v2290 = vadd.f32 %v2280, %v2288
        %2291 = vset.pattern.permute.xlu0 3
        %2292 = vperm.xlu0 %2291, %v2024
        %v2293 = vpop.permute.xlu0 %2292
        %v2295 = vmul.f32 %v2264, %v2293
        %2297 = vrot.lane.b32.xlu0 %v2295, 80
        %v2298 = vpop.permute.xlu0 %2297
        %v2300 = vadd.f32 %v2290, %v2298
        %2301 = vset.pattern.permute.xlu0 4
        %2302 = vperm.xlu0 %2301, %v2024
        %v2303 = vpop.permute.xlu0 %2302
        %v2305 = vmul.f32 %v2264, %v2303
        %2307 = vrot.lane.b32.xlu0 %v2305, 64
        %v2308 = vpop.permute.xlu0 %2307
        %v2310 = vadd.f32 %v2300, %v2308
        %v2311 = vadd.f32 %v2016, %v2310
        %v2312 = vmul.f32 %v2311, 0.5
        %v2313 = vadd.f32 %v2019, %v2312
        %v2314 = vmul.f32 %v2313, 2.0
        %v2315 = vsub.f32 %v2314, %v2022
        %v2316 = vadd.f32 %v2315, %v2310
        %s2317 = scalar_lea.vmem %s513, 32 [#allocation2]
        %v2318 = vld [vmem:[%s2317] sm:$0xff]
        %v2319 = vlaneseq
        %v2320 = vshrl.u32 %v2319, 7
        %v2321 = vsub.s32 0, %v2320
        %v2322 = vrot.slane %v586, %v2321
        %v2324 = vsel %vm866, %v2316, 0
        %2326 = vmatprep.subr.mxu0 0.0
        %2327 = vmatpush1.msra.mxu0 0.0
        %2328 = vmatprep.subr.mxu0 0.0
        %2329 = vmatpush1.msra.mxu0 0.0
        %2330 = vmatprep.subr.mxu0 0.0
        %2331 = vmatpush1.msra.mxu0 0.0
        %2332 = vmatprep.subr.mxu0 0.0
        %2333 = vmatpush1.msra.mxu0 0.0
        %2334 = vmatprep.subr.mxu0 0.0
        %2335 = vmatpush1.msra.mxu0 0.0
        %2336 = vmatprep.subr.mxu0 0.0
        %2337 = vmatpush1.msra.mxu0 0.0
        %2338 = vmatprep.subr.mxu0 0.0
        %2339 = vmatpush1.msra.mxu0 0.0
        %2340 = vmatprep.subr.mxu0 0.0
        %2341 = vmatpush1.msra.mxu0 0.0
        %2342 = vmatprep.subr.mxu0 0.0
        %2343 = vmatpush1.msra.mxu0 0.0
        %2344 = vmatprep.subr.mxu0 0.0
        %2345 = vmatpush1.msra.mxu0 0.0
        %2346 = vmatprep.subr.mxu0 0.0
        %2347 = vmatpush1.msra.mxu0 0.0
        %2348 = vmatprep.subr.mxu0 0.0
        %2349 = vmatpush1.msra.mxu0 0.0
        %2350 = vmatprep.subr.mxu0 0.0
        %2351 = vmatpush1.msra.mxu0 0.0
        %2352 = vmatprep.subr.mxu0 0.0
        %2353 = vmatpush1.msra.mxu0 0.0
        %2354 = vmatprep.subr.mxu0 0.0
        %2355 = vmatpush1.msra.mxu0 %v570
        %2356 = vmatprep.subr.mxu0 0.0
        %2357 = vmatpush1.msra.mxu0 %v569
        %2358 = vmatprep.subr.mxu0 0.0
        %2359 = vmatpush2.msra.mxu0 0.0
        %2360 = vmatprep.subr.mxu0 0.0
        %2361 = vmatpush2.msra.mxu0 0.0
        %2362 = vmatprep.subr.mxu0 0.0
        %2363 = vmatpush2.msra.mxu0 0.0
        %2364 = vmatprep.subr.mxu0 0.0
        %2365 = vmatpush2.msra.mxu0 0.0
        %2366 = vmatprep.subr.mxu0 0.0
        %2367 = vmatpush2.msra.mxu0 0.0
        %2368 = vmatprep.subr.mxu0 0.0
        %2369 = vmatpush2.msra.mxu0 0.0
        %2370 = vmatprep.subr.mxu0 0.0
        %2371 = vmatpush2.msra.mxu0 0.0
        %2372 = vmatprep.subr.mxu0 0.0
        %2373 = vmatpush2.msra.mxu0 0.0
        %2374 = vmatprep.subr.mxu0 0.0
        %2375 = vmatpush2.msra.mxu0 0.0
        %2376 = vmatprep.subr.mxu0 0.0
        %2377 = vmatpush2.msra.mxu0 0.0
        %2378 = vmatprep.subr.mxu0 0.0
        %2379 = vmatpush2.msra.mxu0 0.0
        %2380 = vmatprep.subr.mxu0 0.0
        %2381 = vmatpush2.msra.mxu0 0.0
        %2382 = vmatprep.subr.mxu0 0.0
        %2383 = vmatpush2.msra.mxu0 0.0
        %2384 = vmatprep.subr.mxu0 0.0
        %2385 = vmatpush2.msra.mxu0 0.0
        %2386 = vmatprep.subr.mxu0 0.0
        %2387 = vmatpush2.msra.mxu0 0.0
        %2388 = vmatprep.subr.mxu0 0.0
        %2389 = vmatpush2.msra.mxu0 0.0
        %2390 = vmatprep.mubr.f32.mxu0 0.0
        %2391 = vmatmul.mubr.f32.gmra.mxu0 %v2324
        %v2392 = vpop.f32.mrf.mxu0
        %v2393 = vadd.f32 %v2322, %v2392
        %v2394 = vpop.f32.mrf.mxu0
        %2395 = vdwg.mxu0
        %v2396 = vmul.f32 %v2393, 0.909
        %v2397 = vxor.u32 %v2393, 2147483648
        %v2398 = vmul.f32 %v2397, 1.442695
        %v2399 = vpow.pop %v2398
        %v2400 = vadd.f32 %v2399, 1.0
        %v2401 = vrcp.pop %v2400
        %v2402 = vmul.f32 1.0, %v2401
        %v2403 = vmul.f32 %v2396, %v2402
        %v2405 = vsel %vm695, %v2403, 0
        %2407 = vmatprep.subr.mxu0 0.0
        %2408 = vmatpush1.msra.mxu0 0.0
        %2409 = vmatprep.subr.mxu0 0.0
        %2410 = vmatpush1.msra.mxu0 0.0
        %2411 = vmatprep.subr.mxu0 0.0
        %2412 = vmatpush1.msra.mxu0 0.0
        %2413 = vmatprep.subr.mxu0 0.0
        %2414 = vmatpush1.msra.mxu0 0.0
        %2415 = vmatprep.subr.mxu0 0.0
        %2416 = vmatpush1.msra.mxu0 0.0
        %2417 = vmatprep.subr.mxu0 0.0
        %2418 = vmatpush1.msra.mxu0 0.0
        %2419 = vmatprep.subr.mxu0 0.0
        %2420 = vmatpush1.msra.mxu0 0.0
        %2421 = vmatprep.subr.mxu0 0.0
        %2422 = vmatpush1.msra.mxu0 0.0
        %2423 = vmatprep.subr.mxu0 0.0
        %2424 = vmatpush1.msra.mxu0 0.0
        %2425 = vmatprep.subr.mxu0 0.0
        %2426 = vmatpush1.msra.mxu0 0.0
        %2427 = vmatprep.subr.mxu0 0.0
        %2428 = vmatpush1.msra.mxu0 0.0
        %2429 = vmatprep.subr.mxu0 0.0
        %2430 = vmatpush1.msra.mxu0 0.0
        %2431 = vmatprep.subr.mxu0 0.0
        %2432 = vmatpush1.msra.mxu0 %v574
        %2433 = vmatprep.subr.mxu0 0.0
        %2434 = vmatpush1.msra.mxu0 %v573
        %2435 = vmatprep.subr.mxu0 0.0
        %2436 = vmatpush1.msra.mxu0 %v572
        %2437 = vmatprep.subr.mxu0 0.0
        %2438 = vmatpush1.msra.mxu0 %v571
        %2439 = vmatprep.subr.mxu0 0.0
        %2440 = vmatpush2.msra.mxu0 0.0
        %2441 = vmatprep.subr.mxu0 0.0
        %2442 = vmatpush2.msra.mxu0 0.0
        %2443 = vmatprep.subr.mxu0 0.0
        %2444 = vmatpush2.msra.mxu0 0.0
        %2445 = vmatprep.subr.mxu0 0.0
        %2446 = vmatpush2.msra.mxu0 0.0
        %2447 = vmatprep.subr.mxu0 0.0
        %2448 = vmatpush2.msra.mxu0 0.0
        %2449 = vmatprep.subr.mxu0 0.0
        %2450 = vmatpush2.msra.mxu0 0.0
        %2451 = vmatprep.subr.mxu0 0.0
        %2452 = vmatpush2.msra.mxu0 0.0
        %2453 = vmatprep.subr.mxu0 0.0
        %2454 = vmatpush2.msra.mxu0 0.0
        %2455 = vmatprep.subr.mxu0 0.0
        %2456 = vmatpush2.msra.mxu0 0.0
        %2457 = vmatprep.subr.mxu0 0.0
        %2458 = vmatpush2.msra.mxu0 0.0
        %2459 = vmatprep.subr.mxu0 0.0
        %2460 = vmatpush2.msra.mxu0 0.0
        %2461 = vmatprep.subr.mxu0 0.0
        %2462 = vmatpush2.msra.mxu0 0.0
        %2463 = vmatprep.subr.mxu0 0.0
        %2464 = vmatpush2.msra.mxu0 0.0
        %2465 = vmatprep.subr.mxu0 0.0
        %2466 = vmatpush2.msra.mxu0 0.0
        %2467 = vmatprep.subr.mxu0 0.0
        %2468 = vmatpush2.msra.mxu0 0.0
        %2469 = vmatprep.subr.mxu0 0.0
        %2470 = vmatpush2.msra.mxu0 0.0
        %2471 = vmatprep.mubr.f32.mxu0 0.0
        %2472 = vmatmul.mubr.f32.gmra.mxu0 %v2405
        %v2473 = vpop.f32.mrf.mxu0
        %v2474 = vadd.f32 %v952, %v2473
        %v2475 = vpop.f32.mrf.mxu0
        %2476 = vdwg.mxu0
        %v2477 = vmul.f32 %v2474, 0.909
        %v2478 = vxor.u32 %v2474, 2147483648
        %v2479 = vmul.f32 %v2478, 1.442695
        %v2480 = vpow.pop %v2479
        %v2481 = vadd.f32 %v2480, 1.0
        %v2482 = vrcp.pop %v2481
        %v2483 = vmul.f32 1.0, %v2482
        %v2484 = vmul.f32 %v2477, %v2483
        %v2486 = vsel %vm695, %v2484, 0
        %2488 = vmatprep.subr.mxu0 0.0
        %2489 = vmatpush1.msra.mxu0 0.0
        %2490 = vmatprep.subr.mxu0 0.0
        %2491 = vmatpush1.msra.mxu0 0.0
        %2492 = vmatprep.subr.mxu0 0.0
        %2493 = vmatpush1.msra.mxu0 0.0
        %2494 = vmatprep.subr.mxu0 0.0
        %2495 = vmatpush1.msra.mxu0 0.0
        %2496 = vmatprep.subr.mxu0 0.0
        %2497 = vmatpush1.msra.mxu0 0.0
        %2498 = vmatprep.subr.mxu0 0.0
        %2499 = vmatpush1.msra.mxu0 0.0
        %2500 = vmatprep.subr.mxu0 0.0
        %2501 = vmatpush1.msra.mxu0 0.0
        %2502 = vmatprep.subr.mxu0 0.0
        %2503 = vmatpush1.msra.mxu0 0.0
        %2504 = vmatprep.subr.mxu0 0.0
        %2505 = vmatpush1.msra.mxu0 0.0
        %2506 = vmatprep.subr.mxu0 0.0
        %2507 = vmatpush1.msra.mxu0 0.0
        %2508 = vmatprep.subr.mxu0 0.0
        %2509 = vmatpush1.msra.mxu0 0.0
        %2510 = vmatprep.subr.mxu0 0.0
        %2511 = vmatpush1.msra.mxu0 0.0
        %2512 = vmatprep.subr.mxu0 0.0
        %2513 = vmatpush1.msra.mxu0 %v578
        %2514 = vmatprep.subr.mxu0 0.0
        %2515 = vmatpush1.msra.mxu0 %v577
        %2516 = vmatprep.subr.mxu0 0.0
        %2517 = vmatpush1.msra.mxu0 %v576
        %2518 = vmatprep.subr.mxu0 0.0
        %2519 = vmatpush1.msra.mxu0 %v575
        %2520 = vmatprep.subr.mxu0 0.0
        %2521 = vmatpush2.msra.mxu0 0.0
        %2522 = vmatprep.subr.mxu0 0.0
        %2523 = vmatpush2.msra.mxu0 0.0
        %2524 = vmatprep.subr.mxu0 0.0
        %2525 = vmatpush2.msra.mxu0 0.0
        %2526 = vmatprep.subr.mxu0 0.0
        %2527 = vmatpush2.msra.mxu0 0.0
        %2528 = vmatprep.subr.mxu0 0.0
        %2529 = vmatpush2.msra.mxu0 0.0
        %2530 = vmatprep.subr.mxu0 0.0
        %2531 = vmatpush2.msra.mxu0 0.0
        %2532 = vmatprep.subr.mxu0 0.0
        %2533 = vmatpush2.msra.mxu0 0.0
        %2534 = vmatprep.subr.mxu0 0.0
        %2535 = vmatpush2.msra.mxu0 0.0
        %2536 = vmatprep.subr.mxu0 0.0
        %2537 = vmatpush2.msra.mxu0 0.0
        %2538 = vmatprep.subr.mxu0 0.0
        %2539 = vmatpush2.msra.mxu0 0.0
        %2540 = vmatprep.subr.mxu0 0.0
        %2541 = vmatpush2.msra.mxu0 0.0
        %2542 = vmatprep.subr.mxu0 0.0
        %2543 = vmatpush2.msra.mxu0 0.0
        %2544 = vmatprep.subr.mxu0 0.0
        %2545 = vmatpush2.msra.mxu0 0.0
        %2546 = vmatprep.subr.mxu0 0.0
        %2547 = vmatpush2.msra.mxu0 0.0
        %2548 = vmatprep.subr.mxu0 0.0
        %2549 = vmatpush2.msra.mxu0 0.0
        %2550 = vmatprep.subr.mxu0 0.0
        %2551 = vmatpush2.msra.mxu0 0.0
        %2552 = vmatprep.mubr.f32.mxu0 0.0
        %2553 = vmatmul.mubr.f32.gmra.mxu0 %v2486
        %v2554 = vpop.f32.mrf.mxu0
        %v2555 = vadd.f32 %v1039, %v2554
        %v2556 = vpop.f32.mrf.mxu0
        %2557 = vdwg.mxu0
        %v2558 = vtanh.pop %v2555
        %2560 = vset.pattern.permute.xlu0 0
        %2561 = vperm.xlu0 %2560, %v2318
        %v2562 = vpop.permute.xlu0 %2561
        %v2564 = vmul.f32 %v2558, %v2562
        %2565 = vset.pattern.permute.xlu0 1
        %2566 = vperm.xlu0 %2565, %v2318
        %v2567 = vpop.permute.xlu0 %2566
        %v2569 = vmul.f32 %v2558, %v2567
        %2571 = vrot.lane.b32.xlu0 %v2569, 112
        %v2572 = vpop.permute.xlu0 %2571
        %v2574 = vadd.f32 %v2564, %v2572
        %2575 = vset.pattern.permute.xlu0 2
        %2576 = vperm.xlu0 %2575, %v2318
        %v2577 = vpop.permute.xlu0 %2576
        %v2579 = vmul.f32 %v2558, %v2577
        %2581 = vrot.lane.b32.xlu0 %v2579, 96
        %v2582 = vpop.permute.xlu0 %2581
        %v2584 = vadd.f32 %v2574, %v2582
        %2585 = vset.pattern.permute.xlu0 3
        %2586 = vperm.xlu0 %2585, %v2318
        %v2587 = vpop.permute.xlu0 %2586
        %v2589 = vmul.f32 %v2558, %v2587
        %2591 = vrot.lane.b32.xlu0 %v2589, 80
        %v2592 = vpop.permute.xlu0 %2591
        %v2594 = vadd.f32 %v2584, %v2592
        %2595 = vset.pattern.permute.xlu0 4
        %2596 = vperm.xlu0 %2595, %v2318
        %v2597 = vpop.permute.xlu0 %2596
        %v2599 = vmul.f32 %v2558, %v2597
        %2601 = vrot.lane.b32.xlu0 %v2599, 64
        %v2602 = vpop.permute.xlu0 %2601
        %v2604 = vadd.f32 %v2594, %v2602
        %v2605 = vadd.f32 %v2310, %v2604
        %v2606 = vmul.f32 %v2605, 0.5
        %v2607 = vadd.f32 %v2313, %v2606
        %v2608 = vmul.f32 %v2607, 2.0
        %v2609 = vsub.f32 %v2608, %v2316
        %v2610 = vadd.f32 %v2609, %v2604
        %s2611 = scalar_lea.vmem %s513, 40 [#allocation2]
        %v2612 = vld [vmem:[%s2611] sm:$0xff]
        %v2613 = vlaneseq
        %v2614 = vshrl.u32 %v2613, 7
        %v2615 = vsub.s32 0, %v2614
        %v2616 = vrot.slane %v587, %v2615
        %v2618 = vsel %vm866, %v2610, 0
        %2620 = vmatprep.subr.mxu0 0.0
        %2621 = vmatpush1.msra.mxu0 0.0
        %2622 = vmatprep.subr.mxu0 0.0
        %2623 = vmatpush1.msra.mxu0 0.0
        %2624 = vmatprep.subr.mxu0 0.0
        %2625 = vmatpush1.msra.mxu0 0.0
        %2626 = vmatprep.subr.mxu0 0.0
        %2627 = vmatpush1.msra.mxu0 0.0
        %2628 = vmatprep.subr.mxu0 0.0
        %2629 = vmatpush1.msra.mxu0 0.0
        %2630 = vmatprep.subr.mxu0 0.0
        %2631 = vmatpush1.msra.mxu0 0.0
        %2632 = vmatprep.subr.mxu0 0.0
        %2633 = vmatpush1.msra.mxu0 0.0
        %2634 = vmatprep.subr.mxu0 0.0
        %2635 = vmatpush1.msra.mxu0 0.0
        %2636 = vmatprep.subr.mxu0 0.0
        %2637 = vmatpush1.msra.mxu0 0.0
        %2638 = vmatprep.subr.mxu0 0.0
        %2639 = vmatpush1.msra.mxu0 0.0
        %2640 = vmatprep.subr.mxu0 0.0
        %2641 = vmatpush1.msra.mxu0 0.0
        %2642 = vmatprep.subr.mxu0 0.0
        %2643 = vmatpush1.msra.mxu0 0.0
        %2644 = vmatprep.subr.mxu0 0.0
        %2645 = vmatpush1.msra.mxu0 0.0
        %2646 = vmatprep.subr.mxu0 0.0
        %2647 = vmatpush1.msra.mxu0 0.0
        %2648 = vmatprep.subr.mxu0 0.0
        %2649 = vmatpush1.msra.mxu0 %v570
        %2650 = vmatprep.subr.mxu0 0.0
        %2651 = vmatpush1.msra.mxu0 %v569
        %2652 = vmatprep.subr.mxu0 0.0
        %2653 = vmatpush2.msra.mxu0 0.0
        %2654 = vmatprep.subr.mxu0 0.0
        %2655 = vmatpush2.msra.mxu0 0.0
        %2656 = vmatprep.subr.mxu0 0.0
        %2657 = vmatpush2.msra.mxu0 0.0
        %2658 = vmatprep.subr.mxu0 0.0
        %2659 = vmatpush2.msra.mxu0 0.0
        %2660 = vmatprep.subr.mxu0 0.0
        %2661 = vmatpush2.msra.mxu0 0.0
        %2662 = vmatprep.subr.mxu0 0.0
        %2663 = vmatpush2.msra.mxu0 0.0
        %2664 = vmatprep.subr.mxu0 0.0
        %2665 = vmatpush2.msra.mxu0 0.0
        %2666 = vmatprep.subr.mxu0 0.0
        %2667 = vmatpush2.msra.mxu0 0.0
        %2668 = vmatprep.subr.mxu0 0.0
        %2669 = vmatpush2.msra.mxu0 0.0
        %2670 = vmatprep.subr.mxu0 0.0
        %2671 = vmatpush2.msra.mxu0 0.0
        %2672 = vmatprep.subr.mxu0 0.0
        %2673 = vmatpush2.msra.mxu0 0.0
        %2674 = vmatprep.subr.mxu0 0.0
        %2675 = vmatpush2.msra.mxu0 0.0
        %2676 = vmatprep.subr.mxu0 0.0
        %2677 = vmatpush2.msra.mxu0 0.0
        %2678 = vmatprep.subr.mxu0 0.0
        %2679 = vmatpush2.msra.mxu0 0.0
        %2680 = vmatprep.subr.mxu0 0.0
        %2681 = vmatpush2.msra.mxu0 0.0
        %2682 = vmatprep.subr.mxu0 0.0
        %2683 = vmatpush2.msra.mxu0 0.0
        %2684 = vmatprep.mubr.f32.mxu0 0.0
        %2685 = vmatmul.mubr.f32.gmra.mxu0 %v2618
        %v2686 = vpop.f32.mrf.mxu0
        %v2687 = vadd.f32 %v2616, %v2686
        %v2688 = vpop.f32.mrf.mxu0
        %2689 = vdwg.mxu0
        %v2690 = vmul.f32 %v2687, 0.909
        %v2691 = vxor.u32 %v2687, 2147483648
        %v2692 = vmul.f32 %v2691, 1.442695
        %v2693 = vpow.pop %v2692
        %v2694 = vadd.f32 %v2693, 1.0
        %v2695 = vrcp.pop %v2694
        %v2696 = vmul.f32 1.0, %v2695
        %v2697 = vmul.f32 %v2690, %v2696
        %v2699 = vsel %vm695, %v2697, 0
        %2701 = vmatprep.subr.mxu0 0.0
        %2702 = vmatpush1.msra.mxu0 0.0
        %2703 = vmatprep.subr.mxu0 0.0
        %2704 = vmatpush1.msra.mxu0 0.0
        %2705 = vmatprep.subr.mxu0 0.0
        %2706 = vmatpush1.msra.mxu0 0.0
        %2707 = vmatprep.subr.mxu0 0.0
        %2708 = vmatpush1.msra.mxu0 0.0
        %2709 = vmatprep.subr.mxu0 0.0
        %2710 = vmatpush1.msra.mxu0 0.0
        %2711 = vmatprep.subr.mxu0 0.0
        %2712 = vmatpush1.msra.mxu0 0.0
        %2713 = vmatprep.subr.mxu0 0.0
        %2714 = vmatpush1.msra.mxu0 0.0
        %2715 = vmatprep.subr.mxu0 0.0
        %2716 = vmatpush1.msra.mxu0 0.0
        %2717 = vmatprep.subr.mxu0 0.0
        %2718 = vmatpush1.msra.mxu0 0.0
        %2719 = vmatprep.subr.mxu0 0.0
        %2720 = vmatpush1.msra.mxu0 0.0
        %2721 = vmatprep.subr.mxu0 0.0
        %2722 = vmatpush1.msra.mxu0 0.0
        %2723 = vmatprep.subr.mxu0 0.0
        %2724 = vmatpush1.msra.mxu0 0.0
        %2725 = vmatprep.subr.mxu0 0.0
        %2726 = vmatpush1.msra.mxu0 %v574
        %2727 = vmatprep.subr.mxu0 0.0
        %2728 = vmatpush1.msra.mxu0 %v573
        %2729 = vmatprep.subr.mxu0 0.0
        %2730 = vmatpush1.msra.mxu0 %v572
        %2731 = vmatprep.subr.mxu0 0.0
        %2732 = vmatpush1.msra.mxu0 %v571
        %2733 = vmatprep.subr.mxu0 0.0
        %2734 = vmatpush2.msra.mxu0 0.0
        %2735 = vmatprep.subr.mxu0 0.0
        %2736 = vmatpush2.msra.mxu0 0.0
        %2737 = vmatprep.subr.mxu0 0.0
        %2738 = vmatpush2.msra.mxu0 0.0
        %2739 = vmatprep.subr.mxu0 0.0
        %2740 = vmatpush2.msra.mxu0 0.0
        %2741 = vmatprep.subr.mxu0 0.0
        %2742 = vmatpush2.msra.mxu0 0.0
        %2743 = vmatprep.subr.mxu0 0.0
        %2744 = vmatpush2.msra.mxu0 0.0
        %2745 = vmatprep.subr.mxu0 0.0
        %2746 = vmatpush2.msra.mxu0 0.0
        %2747 = vmatprep.subr.mxu0 0.0
        %2748 = vmatpush2.msra.mxu0 0.0
        %2749 = vmatprep.subr.mxu0 0.0
        %2750 = vmatpush2.msra.mxu0 0.0
        %2751 = vmatprep.subr.mxu0 0.0
        %2752 = vmatpush2.msra.mxu0 0.0
        %2753 = vmatprep.subr.mxu0 0.0
        %2754 = vmatpush2.msra.mxu0 0.0
        %2755 = vmatprep.subr.mxu0 0.0
        %2756 = vmatpush2.msra.mxu0 0.0
        %2757 = vmatprep.subr.mxu0 0.0
        %2758 = vmatpush2.msra.mxu0 0.0
        %2759 = vmatprep.subr.mxu0 0.0
        %2760 = vmatpush2.msra.mxu0 0.0
        %2761 = vmatprep.subr.mxu0 0.0
        %2762 = vmatpush2.msra.mxu0 0.0
        %2763 = vmatprep.subr.mxu0 0.0
        %2764 = vmatpush2.msra.mxu0 0.0
        %2765 = vmatprep.mubr.f32.mxu0 0.0
        %2766 = vmatmul.mubr.f32.gmra.mxu0 %v2699
        %v2767 = vpop.f32.mrf.mxu0
        %v2768 = vadd.f32 %v952, %v2767
        %v2769 = vpop.f32.mrf.mxu0
        %2770 = vdwg.mxu0
        %v2771 = vmul.f32 %v2768, 0.909
        %v2772 = vxor.u32 %v2768, 2147483648
        %v2773 = vmul.f32 %v2772, 1.442695
        %v2774 = vpow.pop %v2773
        %v2775 = vadd.f32 %v2774, 1.0
        %v2776 = vrcp.pop %v2775
        %v2777 = vmul.f32 1.0, %v2776
        %v2778 = vmul.f32 %v2771, %v2777
        %v2780 = vsel %vm695, %v2778, 0
        %2782 = vmatprep.subr.mxu0 0.0
        %2783 = vmatpush1.msra.mxu0 0.0
        %2784 = vmatprep.subr.mxu0 0.0
        %2785 = vmatpush1.msra.mxu0 0.0
        %2786 = vmatprep.subr.mxu0 0.0
        %2787 = vmatpush1.msra.mxu0 0.0
        %2788 = vmatprep.subr.mxu0 0.0
        %2789 = vmatpush1.msra.mxu0 0.0
        %2790 = vmatprep.subr.mxu0 0.0
        %2791 = vmatpush1.msra.mxu0 0.0
        %2792 = vmatprep.subr.mxu0 0.0
        %2793 = vmatpush1.msra.mxu0 0.0
        %2794 = vmatprep.subr.mxu0 0.0
        %2795 = vmatpush1.msra.mxu0 0.0
        %2796 = vmatprep.subr.mxu0 0.0
        %2797 = vmatpush1.msra.mxu0 0.0
        %2798 = vmatprep.subr.mxu0 0.0
        %2799 = vmatpush1.msra.mxu0 0.0
        %2800 = vmatprep.subr.mxu0 0.0
        %2801 = vmatpush1.msra.mxu0 0.0
        %2802 = vmatprep.subr.mxu0 0.0
        %2803 = vmatpush1.msra.mxu0 0.0
        %2804 = vmatprep.subr.mxu0 0.0
        %2805 = vmatpush1.msra.mxu0 0.0
        %2806 = vmatprep.subr.mxu0 0.0
        %2807 = vmatpush1.msra.mxu0 %v578
        %2808 = vmatprep.subr.mxu0 0.0
        %2809 = vmatpush1.msra.mxu0 %v577
        %2810 = vmatprep.subr.mxu0 0.0
        %2811 = vmatpush1.msra.mxu0 %v576
        %2812 = vmatprep.subr.mxu0 0.0
        %2813 = vmatpush1.msra.mxu0 %v575
        %2814 = vmatprep.subr.mxu0 0.0
        %2815 = vmatpush2.msra.mxu0 0.0
        %2816 = vmatprep.subr.mxu0 0.0
        %2817 = vmatpush2.msra.mxu0 0.0
        %2818 = vmatprep.subr.mxu0 0.0
        %2819 = vmatpush2.msra.mxu0 0.0
        %2820 = vmatprep.subr.mxu0 0.0
        %2821 = vmatpush2.msra.mxu0 0.0
        %2822 = vmatprep.subr.mxu0 0.0
        %2823 = vmatpush2.msra.mxu0 0.0
        %2824 = vmatprep.subr.mxu0 0.0
        %2825 = vmatpush2.msra.mxu0 0.0
        %2826 = vmatprep.subr.mxu0 0.0
        %2827 = vmatpush2.msra.mxu0 0.0
        %2828 = vmatprep.subr.mxu0 0.0
        %2829 = vmatpush2.msra.mxu0 0.0
        %2830 = vmatprep.subr.mxu0 0.0
        %2831 = vmatpush2.msra.mxu0 0.0
        %2832 = vmatprep.subr.mxu0 0.0
        %2833 = vmatpush2.msra.mxu0 0.0
        %2834 = vmatprep.subr.mxu0 0.0
        %2835 = vmatpush2.msra.mxu0 0.0
        %2836 = vmatprep.subr.mxu0 0.0
        %2837 = vmatpush2.msra.mxu0 0.0
        %2838 = vmatprep.subr.mxu0 0.0
        %2839 = vmatpush2.msra.mxu0 0.0
        %2840 = vmatprep.subr.mxu0 0.0
        %2841 = vmatpush2.msra.mxu0 0.0
        %2842 = vmatprep.subr.mxu0 0.0
        %2843 = vmatpush2.msra.mxu0 0.0
        %2844 = vmatprep.subr.mxu0 0.0
        %2845 = vmatpush2.msra.mxu0 0.0
        %2846 = vmatprep.mubr.f32.mxu0 0.0
        %2847 = vmatmul.mubr.f32.gmra.mxu0 %v2780
        %v2848 = vpop.f32.mrf.mxu0
        %v2849 = vadd.f32 %v1039, %v2848
        %v2850 = vpop.f32.mrf.mxu0
        %2851 = vdwg.mxu0
        %v2852 = vtanh.pop %v2849
        %2854 = vset.pattern.permute.xlu0 0
        %2855 = vperm.xlu0 %2854, %v2612
        %v2856 = vpop.permute.xlu0 %2855
        %v2858 = vmul.f32 %v2852, %v2856
        %2859 = vset.pattern.permute.xlu0 1
        %2860 = vperm.xlu0 %2859, %v2612
        %v2861 = vpop.permute.xlu0 %2860
        %v2863 = vmul.f32 %v2852, %v2861
        %2865 = vrot.lane.b32.xlu0 %v2863, 112
        %v2866 = vpop.permute.xlu0 %2865
        %v2868 = vadd.f32 %v2858, %v2866
        %2869 = vset.pattern.permute.xlu0 2
        %2870 = vperm.xlu0 %2869, %v2612
        %v2871 = vpop.permute.xlu0 %2870
        %v2873 = vmul.f32 %v2852, %v2871
        %2875 = vrot.lane.b32.xlu0 %v2873, 96
        %v2876 = vpop.permute.xlu0 %2875
        %v2878 = vadd.f32 %v2868, %v2876
        %2879 = vset.pattern.permute.xlu0 3
        %2880 = vperm.xlu0 %2879, %v2612
        %v2881 = vpop.permute.xlu0 %2880
        %v2883 = vmul.f32 %v2852, %v2881
        %2885 = vrot.lane.b32.xlu0 %v2883, 80
        %v2886 = vpop.permute.xlu0 %2885
        %v2888 = vadd.f32 %v2878, %v2886
        %2889 = vset.pattern.permute.xlu0 4
        %2890 = vperm.xlu0 %2889, %v2612
        %v2891 = vpop.permute.xlu0 %2890
        %v2893 = vmul.f32 %v2852, %v2891
        %2895 = vrot.lane.b32.xlu0 %v2893, 64
        %v2896 = vpop.permute.xlu0 %2895
        %v2898 = vadd.f32 %v2888, %v2896
        %v2899 = vadd.f32 %v2604, %v2898
        %v2900 = vmul.f32 %v2899, 0.5
        %v2901 = vadd.f32 %v2607, %v2900
        %v2902 = vmul.f32 %v2901, 2.0
        %v2903 = vsub.f32 %v2902, %v2610
        %v2904 = vadd.f32 %v2903, %v2898
        %s2905 = scalar_lea.vmem %s513, 48 [#allocation2]
        %v2906 = vld [vmem:[%s2905] sm:$0xff]
        %v2907 = vlaneseq
        %v2908 = vshrl.u32 %v2907, 7
        %v2909 = vsub.s32 0, %v2908
        %v2910 = vrot.slane %v588, %v2909
        %v2912 = vsel %vm866, %v2904, 0
        %2914 = vmatprep.subr.mxu0 0.0
        %2915 = vmatpush1.msra.mxu0 0.0
        %2916 = vmatprep.subr.mxu0 0.0
        %2917 = vmatpush1.msra.mxu0 0.0
        %2918 = vmatprep.subr.mxu0 0.0
        %2919 = vmatpush1.msra.mxu0 0.0
        %2920 = vmatprep.subr.mxu0 0.0
        %2921 = vmatpush1.msra.mxu0 0.0
        %2922 = vmatprep.subr.mxu0 0.0
        %2923 = vmatpush1.msra.mxu0 0.0
        %2924 = vmatprep.subr.mxu0 0.0
        %2925 = vmatpush1.msra.mxu0 0.0
        %2926 = vmatprep.subr.mxu0 0.0
        %2927 = vmatpush1.msra.mxu0 0.0
        %2928 = vmatprep.subr.mxu0 0.0
        %2929 = vmatpush1.msra.mxu0 0.0
        %2930 = vmatprep.subr.mxu0 0.0
        %2931 = vmatpush1.msra.mxu0 0.0
        %2932 = vmatprep.subr.mxu0 0.0
        %2933 = vmatpush1.msra.mxu0 0.0
        %2934 = vmatprep.subr.mxu0 0.0
        %2935 = vmatpush1.msra.mxu0 0.0
        %2936 = vmatprep.subr.mxu0 0.0
        %2937 = vmatpush1.msra.mxu0 0.0
        %2938 = vmatprep.subr.mxu0 0.0
        %2939 = vmatpush1.msra.mxu0 0.0
        %2940 = vmatprep.subr.mxu0 0.0
        %2941 = vmatpush1.msra.mxu0 0.0
        %2942 = vmatprep.subr.mxu0 0.0
        %2943 = vmatpush1.msra.mxu0 %v570
        %2944 = vmatprep.subr.mxu0 0.0
        %2945 = vmatpush1.msra.mxu0 %v569
        %2946 = vmatprep.subr.mxu0 0.0
        %2947 = vmatpush2.msra.mxu0 0.0
        %2948 = vmatprep.subr.mxu0 0.0
        %2949 = vmatpush2.msra.mxu0 0.0
        %2950 = vmatprep.subr.mxu0 0.0
        %2951 = vmatpush2.msra.mxu0 0.0
        %2952 = vmatprep.subr.mxu0 0.0
        %2953 = vmatpush2.msra.mxu0 0.0
        %2954 = vmatprep.subr.mxu0 0.0
        %2955 = vmatpush2.msra.mxu0 0.0
        %2956 = vmatprep.subr.mxu0 0.0
        %2957 = vmatpush2.msra.mxu0 0.0
        %2958 = vmatprep.subr.mxu0 0.0
        %2959 = vmatpush2.msra.mxu0 0.0
        %2960 = vmatprep.subr.mxu0 0.0
        %2961 = vmatpush2.msra.mxu0 0.0
        %2962 = vmatprep.subr.mxu0 0.0
        %2963 = vmatpush2.msra.mxu0 0.0
        %2964 = vmatprep.subr.mxu0 0.0
        %2965 = vmatpush2.msra.mxu0 0.0
        %2966 = vmatprep.subr.mxu0 0.0
        %2967 = vmatpush2.msra.mxu0 0.0
        %2968 = vmatprep.subr.mxu0 0.0
        %2969 = vmatpush2.msra.mxu0 0.0
        %2970 = vmatprep.subr.mxu0 0.0
        %2971 = vmatpush2.msra.mxu0 0.0
        %2972 = vmatprep.subr.mxu0 0.0
        %2973 = vmatpush2.msra.mxu0 0.0
        %2974 = vmatprep.subr.mxu0 0.0
        %2975 = vmatpush2.msra.mxu0 0.0
        %2976 = vmatprep.subr.mxu0 0.0
        %2977 = vmatpush2.msra.mxu0 0.0
        %2978 = vmatprep.mubr.f32.mxu0 0.0
        %2979 = vmatmul.mubr.f32.gmra.mxu0 %v2912
        %v2980 = vpop.f32.mrf.mxu0
        %v2981 = vadd.f32 %v2910, %v2980
        %v2982 = vpop.f32.mrf.mxu0
        %2983 = vdwg.mxu0
        %v2984 = vmul.f32 %v2981, 0.909
        %v2985 = vxor.u32 %v2981, 2147483648
        %v2986 = vmul.f32 %v2985, 1.442695
        %v2987 = vpow.pop %v2986
        %v2988 = vadd.f32 %v2987, 1.0
        %v2989 = vrcp.pop %v2988
        %v2990 = vmul.f32 1.0, %v2989
        %v2991 = vmul.f32 %v2984, %v2990
        %v2993 = vsel %vm695, %v2991, 0
        %2995 = vmatprep.subr.mxu0 0.0
        %2996 = vmatpush1.msra.mxu0 0.0
        %2997 = vmatprep.subr.mxu0 0.0
        %2998 = vmatpush1.msra.mxu0 0.0
        %2999 = vmatprep.subr.mxu0 0.0
        %3000 = vmatpush1.msra.mxu0 0.0
        %3001 = vmatprep.subr.mxu0 0.0
        %3002 = vmatpush1.msra.mxu0 0.0
        %3003 = vmatprep.subr.mxu0 0.0
        %3004 = vmatpush1.msra.mxu0 0.0
        %3005 = vmatprep.subr.mxu0 0.0
        %3006 = vmatpush1.msra.mxu0 0.0
        %3007 = vmatprep.subr.mxu0 0.0
        %3008 = vmatpush1.msra.mxu0 0.0
        %3009 = vmatprep.subr.mxu0 0.0
        %3010 = vmatpush1.msra.mxu0 0.0
        %3011 = vmatprep.subr.mxu0 0.0
        %3012 = vmatpush1.msra.mxu0 0.0
        %3013 = vmatprep.subr.mxu0 0.0
        %3014 = vmatpush1.msra.mxu0 0.0
        %3015 = vmatprep.subr.mxu0 0.0
        %3016 = vmatpush1.msra.mxu0 0.0
        %3017 = vmatprep.subr.mxu0 0.0
        %3018 = vmatpush1.msra.mxu0 0.0
        %3019 = vmatprep.subr.mxu0 0.0
        %3020 = vmatpush1.msra.mxu0 %v574
        %3021 = vmatprep.subr.mxu0 0.0
        %3022 = vmatpush1.msra.mxu0 %v573
        %3023 = vmatprep.subr.mxu0 0.0
        %3024 = vmatpush1.msra.mxu0 %v572
        %3025 = vmatprep.subr.mxu0 0.0
        %3026 = vmatpush1.msra.mxu0 %v571
        %3027 = vmatprep.subr.mxu0 0.0
        %3028 = vmatpush2.msra.mxu0 0.0
        %3029 = vmatprep.subr.mxu0 0.0
        %3030 = vmatpush2.msra.mxu0 0.0
        %3031 = vmatprep.subr.mxu0 0.0
        %3032 = vmatpush2.msra.mxu0 0.0
        %3033 = vmatprep.subr.mxu0 0.0
        %3034 = vmatpush2.msra.mxu0 0.0
        %3035 = vmatprep.subr.mxu0 0.0
        %3036 = vmatpush2.msra.mxu0 0.0
        %3037 = vmatprep.subr.mxu0 0.0
        %3038 = vmatpush2.msra.mxu0 0.0
        %3039 = vmatprep.subr.mxu0 0.0
        %3040 = vmatpush2.msra.mxu0 0.0
        %3041 = vmatprep.subr.mxu0 0.0
        %3042 = vmatpush2.msra.mxu0 0.0
        %3043 = vmatprep.subr.mxu0 0.0
        %3044 = vmatpush2.msra.mxu0 0.0
        %3045 = vmatprep.subr.mxu0 0.0
        %3046 = vmatpush2.msra.mxu0 0.0
        %3047 = vmatprep.subr.mxu0 0.0
        %3048 = vmatpush2.msra.mxu0 0.0
        %3049 = vmatprep.subr.mxu0 0.0
        %3050 = vmatpush2.msra.mxu0 0.0
        %3051 = vmatprep.subr.mxu0 0.0
        %3052 = vmatpush2.msra.mxu0 0.0
        %3053 = vmatprep.subr.mxu0 0.0
        %3054 = vmatpush2.msra.mxu0 0.0
        %3055 = vmatprep.subr.mxu0 0.0
        %3056 = vmatpush2.msra.mxu0 0.0
        %3057 = vmatprep.subr.mxu0 0.0
        %3058 = vmatpush2.msra.mxu0 0.0
        %3059 = vmatprep.mubr.f32.mxu0 0.0
        %3060 = vmatmul.mubr.f32.gmra.mxu0 %v2993
        %v3061 = vpop.f32.mrf.mxu0
        %v3062 = vadd.f32 %v952, %v3061
        %v3063 = vpop.f32.mrf.mxu0
        %3064 = vdwg.mxu0
        %v3065 = vmul.f32 %v3062, 0.909
        %v3066 = vxor.u32 %v3062, 2147483648
        %v3067 = vmul.f32 %v3066, 1.442695
        %v3068 = vpow.pop %v3067
        %v3069 = vadd.f32 %v3068, 1.0
        %v3070 = vrcp.pop %v3069
        %v3071 = vmul.f32 1.0, %v3070
        %v3072 = vmul.f32 %v3065, %v3071
        %v3074 = vsel %vm695, %v3072, 0
        %3076 = vmatprep.subr.mxu0 0.0
        %3077 = vmatpush1.msra.mxu0 0.0
        %3078 = vmatprep.subr.mxu0 0.0
        %3079 = vmatpush1.msra.mxu0 0.0
        %3080 = vmatprep.subr.mxu0 0.0
        %3081 = vmatpush1.msra.mxu0 0.0
        %3082 = vmatprep.subr.mxu0 0.0
        %3083 = vmatpush1.msra.mxu0 0.0
        %3084 = vmatprep.subr.mxu0 0.0
        %3085 = vmatpush1.msra.mxu0 0.0
        %3086 = vmatprep.subr.mxu0 0.0
        %3087 = vmatpush1.msra.mxu0 0.0
        %3088 = vmatprep.subr.mxu0 0.0
        %3089 = vmatpush1.msra.mxu0 0.0
        %3090 = vmatprep.subr.mxu0 0.0
        %3091 = vmatpush1.msra.mxu0 0.0
        %3092 = vmatprep.subr.mxu0 0.0
        %3093 = vmatpush1.msra.mxu0 0.0
        %3094 = vmatprep.subr.mxu0 0.0
        %3095 = vmatpush1.msra.mxu0 0.0
        %3096 = vmatprep.subr.mxu0 0.0
        %3097 = vmatpush1.msra.mxu0 0.0
        %3098 = vmatprep.subr.mxu0 0.0
        %3099 = vmatpush1.msra.mxu0 0.0
        %3100 = vmatprep.subr.mxu0 0.0
        %3101 = vmatpush1.msra.mxu0 %v578
        %3102 = vmatprep.subr.mxu0 0.0
        %3103 = vmatpush1.msra.mxu0 %v577
        %3104 = vmatprep.subr.mxu0 0.0
        %3105 = vmatpush1.msra.mxu0 %v576
        %3106 = vmatprep.subr.mxu0 0.0
        %3107 = vmatpush1.msra.mxu0 %v575
        %3108 = vmatprep.subr.mxu0 0.0
        %3109 = vmatpush2.msra.mxu0 0.0
        %3110 = vmatprep.subr.mxu0 0.0
        %3111 = vmatpush2.msra.mxu0 0.0
        %3112 = vmatprep.subr.mxu0 0.0
        %3113 = vmatpush2.msra.mxu0 0.0
        %3114 = vmatprep.subr.mxu0 0.0
        %3115 = vmatpush2.msra.mxu0 0.0
        %3116 = vmatprep.subr.mxu0 0.0
        %3117 = vmatpush2.msra.mxu0 0.0
        %3118 = vmatprep.subr.mxu0 0.0
        %3119 = vmatpush2.msra.mxu0 0.0
        %3120 = vmatprep.subr.mxu0 0.0
        %3121 = vmatpush2.msra.mxu0 0.0
        %3122 = vmatprep.subr.mxu0 0.0
        %3123 = vmatpush2.msra.mxu0 0.0
        %3124 = vmatprep.subr.mxu0 0.0
        %3125 = vmatpush2.msra.mxu0 0.0
        %3126 = vmatprep.subr.mxu0 0.0
        %3127 = vmatpush2.msra.mxu0 0.0
        %3128 = vmatprep.subr.mxu0 0.0
        %3129 = vmatpush2.msra.mxu0 0.0
        %3130 = vmatprep.subr.mxu0 0.0
        %3131 = vmatpush2.msra.mxu0 0.0
        %3132 = vmatprep.subr.mxu0 0.0
        %3133 = vmatpush2.msra.mxu0 0.0
        %3134 = vmatprep.subr.mxu0 0.0
        %3135 = vmatpush2.msra.mxu0 0.0
        %3136 = vmatprep.subr.mxu0 0.0
        %3137 = vmatpush2.msra.mxu0 0.0
        %3138 = vmatprep.subr.mxu0 0.0
        %3139 = vmatpush2.msra.mxu0 0.0
        %3140 = vmatprep.mubr.f32.mxu0 0.0
        %3141 = vmatmul.mubr.f32.gmra.mxu0 %v3074
        %v3142 = vpop.f32.mrf.mxu0
        %v3143 = vadd.f32 %v1039, %v3142
        %v3144 = vpop.f32.mrf.mxu0
        %3145 = vdwg.mxu0
        %v3146 = vtanh.pop %v3143
        %3148 = vset.pattern.permute.xlu0 0
        %3149 = vperm.xlu0 %3148, %v2906
        %v3150 = vpop.permute.xlu0 %3149
        %v3152 = vmul.f32 %v3146, %v3150
        %3153 = vset.pattern.permute.xlu0 1
        %3154 = vperm.xlu0 %3153, %v2906
        %v3155 = vpop.permute.xlu0 %3154
        %v3157 = vmul.f32 %v3146, %v3155
        %3159 = vrot.lane.b32.xlu0 %v3157, 112
        %v3160 = vpop.permute.xlu0 %3159
        %v3162 = vadd.f32 %v3152, %v3160
        %3163 = vset.pattern.permute.xlu0 2
        %3164 = vperm.xlu0 %3163, %v2906
        %v3165 = vpop.permute.xlu0 %3164
        %v3167 = vmul.f32 %v3146, %v3165
        %3169 = vrot.lane.b32.xlu0 %v3167, 96
        %v3170 = vpop.permute.xlu0 %3169
        %v3172 = vadd.f32 %v3162, %v3170
        %3173 = vset.pattern.permute.xlu0 3
        %3174 = vperm.xlu0 %3173, %v2906
        %v3175 = vpop.permute.xlu0 %3174
        %v3177 = vmul.f32 %v3146, %v3175
        %3179 = vrot.lane.b32.xlu0 %v3177, 80
        %v3180 = vpop.permute.xlu0 %3179
        %v3182 = vadd.f32 %v3172, %v3180
        %3183 = vset.pattern.permute.xlu0 4
        %3184 = vperm.xlu0 %3183, %v2906
        %v3185 = vpop.permute.xlu0 %3184
        %v3187 = vmul.f32 %v3146, %v3185
        %3189 = vrot.lane.b32.xlu0 %v3187, 64
        %v3190 = vpop.permute.xlu0 %3189
        %v3192 = vadd.f32 %v3182, %v3190
        %v3193 = vadd.f32 %v2898, %v3192
        %v3194 = vmul.f32 %v3193, 0.5
        %v3195 = vadd.f32 %v2901, %v3194
        %v3196 = vld [vmem:[%s14] sm:$0x1]
        %v3198 = vlaneseq
        %v3199 = vshrl.u32 %v3198, 7
        %v3200 = vsub.s32 0, %v3199
        %v3201 = vrot.slane %v3196, %v3200
        %v3203 = vmul.f32 %v3195, %v3201
        %v3204 = vsel %vm866, %v3203, 0.0
        %3205 = vadd.xlane.f32.xlu0 %v3204
        %v3206 = vpop.xlane.xlu0 %3205
        %vm3207 = vcmask 7168
        %3208 = vst.msk [vmem:[%s568] sm:$0xff] %vm3207, %v3206
        %p3209 = scmp.lt.s32.totalorder %s26, 1
        %s3210 = scalar_select %p3209, %s26, 1
        %s3211 = smul.addr %s3210, 8
        %s3212 = scalar_lea.vmem %s15, %s3211
        // Predicated region
        $region119: #{tpu_custom_call.1} parent=113 // pred_check
          %p3213 = pneg %p369
        $region120: #{tpu_custom_call.1} parent=113 // pred_check_branch
          %3215 = sbr.rel (%p3213) target = $region122
        $region121: #{tpu_custom_call.1} parent=113 // pred_region
          _
        $region122: #{tpu_custom_call.1} parent=113 // pred_fallthru
          _
      $region114: #{tpu_custom_call.1} parent=5 // pred_fallthru
        _
      %p3216 = scmp.le.s32.totalorder 2, %s21
      // Predicated region
      $region123: #{tpu_custom_call.1} parent=5 // pred_check
        %p3217 = pneg %p3216
      $region124: #{tpu_custom_call.1} parent=5 // pred_check_branch
        %3219 = sbr.rel (%p3217) target = $region126
      $region125: #{tpu_custom_call.1} parent=5 // pred_region
        %s3220 = ssub.s32 %s21, 2
        // Predicated region
        $region127: #{tpu_custom_call.1} parent=125 // pred_check
          %p3221 = pneg %p375
        $region128: #{tpu_custom_call.1} parent=125 // pred_check_branch
          %3223 = sbr.rel (%p3221) target = $region130
        $region129: #{tpu_custom_call.1} parent=125 // pred_region
          %p3224 = scmp.lt.s32.totalorder %s27, 1
          %s3225 = scalar_select %p3224, %s27, 1
          %s3226 = smul.addr %s3225, 8
          %s3227 = scalar_lea.vmem %s15, %s3226
        $region130: #{tpu_custom_call.1} parent=125 // pred_fallthru
          _
      $region126: #{tpu_custom_call.1} parent=5 // pred_fallthru
        _
    $region6: #{tpu_custom_call.1} parent=1 // loop_footer
      %s25 = sadd.s32 1, %s21
    $region7: #{tpu_custom_call.1} parent=1 // loop_footer_branch
      %20 = sbr.rel target = $region3
    $region8: #{tpu_custom_call.1} parent=1 // loop_exit
      _

</llo_original>
